<compile_context>
chip_gen: v7x
topology: tpu7x:2x2x1
jax: 0.10.0
libtpu: 0.0.40
codegen_flags: <defaults>
</compile_context>

<pallas_src>
import math

import numpy as np
import jax
import jax.numpy as jnp
from jax.experimental import pallas as pl
from jax.experimental.pallas import tpu as pltpu

# ---------------- small config consistent with the module's __init__ ----------------
HIDDEN = 256
NUM_HEADS = 4
QK_NOPE = 64
QK_ROPE = 32
V_HEAD = 64
Q_LORA = 128
KV_LORA = 128
QK_HEAD = QK_NOPE + QK_ROPE          # 96
T = 128                              # prefill tokens
RMS_EPS = 1e-6
ROPE_THETA = 10000.0
ROPE_SCALING = dict(factor=40.0, beta_fast=32.0, beta_slow=1.0,
                    mscale=1.0, mscale_all_dim=1.0,
                    original_max_position_embeddings=512)
HALF_ROPE = QK_ROPE // 2             # 16


def yarn_get_mscale(scale: float = 1.0, mscale: float = 1.0) -> float:
    if scale <= 1:
        return 1.0
    return 0.1 * mscale * math.log(scale) + 1.0


def build_yarn_rope_half_tables(positions: np.ndarray, rotary_dim: int, base: float, rs: dict):
    """DeepSeek yarn-RoPE cos/sin half-tables [T, rotary_dim//2] with mscale folded."""
    factor = rs["factor"]
    beta_fast, beta_slow = rs["beta_fast"], rs["beta_slow"]
    mscale, mscale_all_dim = rs["mscale"], rs["mscale_all_dim"]
    orig_max = rs["original_max_position_embeddings"]

    pos_freqs = base ** (np.arange(0, rotary_dim, 2, dtype=np.float64) / rotary_dim)
    inv_extra = 1.0 / pos_freqs
    inv_inter = 1.0 / (factor * pos_freqs)

    def corr_dim(n_rot):
        return (rotary_dim * math.log(orig_max / (n_rot * 2 * math.pi))) / (2 * math.log(base))

    low = max(math.floor(corr_dim(beta_fast)), 0)
    high = min(math.ceil(corr_dim(beta_slow)), rotary_dim - 1)
    if low == high:
        high = high + 0.001
    ramp = np.clip((np.arange(rotary_dim // 2, dtype=np.float64) - low) / (high - low), 0, 1)
    inv_freq_mask = 1.0 - ramp
    inv_freq = inv_inter * (1 - inv_freq_mask) + inv_extra * inv_freq_mask

    m = yarn_get_mscale(factor, mscale) / yarn_get_mscale(factor, mscale_all_dim)
    t = positions.astype(np.float64)
    freqs = np.einsum("t,d->td", t, inv_freq)
    cos_h = (np.cos(freqs) * m).astype(np.float32)
    sin_h = (np.sin(freqs) * m).astype(np.float32)
    return cos_h, sin_h


# ---------------- one-time host-side weight repack (NOT part of the jitted forward) --
def repack_weights(wqa, wqb, wkva, wkvb, wo, scale):
    """Absorb kv_b into q_b / o_proj, de-interleave rope columns, fold the attention
    scale into q weights.  Returns bf16 device arrays ready for the kernel."""
    wqa = np.asarray(wqa); wqb = np.asarray(wqb)
    wkva = np.asarray(wkva); wkvb = np.asarray(wkvb); wo = np.asarray(wo)

    # kv_a: de-interleave the rope columns -> [kv_c(128) | k_pe_even(16) | k_pe_odd(16)]
    perm = np.concatenate([np.arange(0, QK_ROPE, 2), np.arange(1, QK_ROPE, 2)])
    kva_cols = np.arange(KV_LORA + QK_ROPE)
    kva_cols[KV_LORA:] = KV_LORA + perm
    wkva_p = wkva[:, kva_cols]

    wq_abs = np.zeros((Q_LORA, NUM_HEADS * KV_LORA), np.float32)
    wq_re = np.zeros((Q_LORA, NUM_HEADS * HALF_ROPE), np.float32)
    wq_ro = np.zeros((Q_LORA, NUM_HEADS * HALF_ROPE), np.float32)
    w_vo = np.zeros((NUM_HEADS, KV_LORA, HIDDEN), np.float32)
    for h in range(NUM_HEADS):
        wq_nope_h = wqb[:, h * QK_HEAD: h * QK_HEAD + QK_NOPE]                       # [128,64]
        wq_rope_h = wqb[:, h * QK_HEAD + QK_NOPE: (h + 1) * QK_HEAD]                 # [128,32]
        wk_nope_h = wkvb[:, h * (QK_NOPE + V_HEAD): h * (QK_NOPE + V_HEAD) + QK_NOPE]  # [128,64]
        wv_h = wkvb[:, h * (QK_NOPE + V_HEAD) + QK_NOPE: (h + 1) * (QK_NOPE + V_HEAD)]  # [128,64]
        wo_h = wo[h * V_HEAD:(h + 1) * V_HEAD, :]                                    # [64,256]

        wq_abs[:, h * KV_LORA:(h + 1) * KV_LORA] = scale * (wq_nope_h @ wk_nope_h.T)
        wq_re[:, h * HALF_ROPE:(h + 1) * HALF_ROPE] = scale * wq_rope_h[:, 0::2]
        wq_ro[:, h * HALF_ROPE:(h + 1) * HALF_ROPE] = scale * wq_rope_h[:, 1::2]
        w_vo[h] = wv_h @ wo_h

    bf = jnp.bfloat16
    return (jnp.asarray(wqa, bf), jnp.asarray(wq_abs, bf), jnp.asarray(wq_re, bf),
            jnp.asarray(wq_ro, bf), jnp.asarray(wkva_p, bf), jnp.asarray(w_vo, bf))


# ---------------- in-kernel helper ----------------
def _rmsnorm(x, gamma, eps):
    var = jnp.mean(x * x, axis=-1, keepdims=True)
    return (x * jax.lax.rsqrt(var + eps)) * gamma


# ---------------- fused kernel ----------------
def mla_fused_kernel(h_ref, wqa_ref, gq_ref, wq_abs_ref, wq_re_ref, wq_ro_ref,
                     wkva_ref, gkv_ref, w_vo_ref, cos_ref, sin_ref, out_ref):
    f32, bf16 = jnp.float32, jnp.bfloat16
    TQ = h_ref.shape[0]
    h_all = h_ref[...].astype(bf16)                                    # [T, HIDDEN]

    # ---- KV latent path (runs once: grid=(1,)) ----
    kva = jnp.dot(h_all, wkva_ref[...], preferred_element_type=f32)    # [T, 160]
    kv_c = _rmsnorm(kva[:, :KV_LORA], gkv_ref[...], RMS_EPS)           # [T, 128] f32
    kv_c_b = kv_c.astype(bf16)

    cos = cos_ref[...]                                                 # [T, 64] (cos_h x4 heads)
    sin = sin_ref[...]
    cos_k = cos[:, :HALF_ROPE]                                         # [T, 16]
    sin_k = sin[:, :HALF_ROPE]
    k_e = kva[:, KV_LORA:KV_LORA + HALF_ROPE]
    k_o = kva[:, KV_LORA + HALF_ROPE:]
    k_first = (k_e * cos_k - k_o * sin_k).astype(bf16)                 # [T, 16]
    k_second = (k_o * cos_k + k_e * sin_k).astype(bf16)                # [T, 16]

    # ---- Q latent path (attention scale pre-folded into the repacked weights) ----
    q_c = jnp.dot(h_all, wqa_ref[...], preferred_element_type=f32)     # [T, 128]
    q_cn = _rmsnorm(q_c, gq_ref[...], RMS_EPS).astype(bf16)
    q_abs = jnp.dot(q_cn, wq_abs_ref[...], preferred_element_type=f32).astype(bf16)  # [T, 512]
    q_e = jnp.dot(q_cn, wq_re_ref[...], preferred_element_type=f32)    # [T, 64]
    q_o = jnp.dot(q_cn, wq_ro_ref[...], preferred_element_type=f32)    # [T, 64]
    # full-width VPU RoPE (de-interleaved even/odd basis folded into the weights)
    q_first = (q_e * cos - q_o * sin).astype(bf16)                     # [T, 64]
    q_second = (q_o * cos + q_e * sin).astype(bf16)                    # [T, 64]

    # causal mask
    rows = jax.lax.broadcasted_iota(jnp.int32, (TQ, TQ), 0)
    cols = jax.lax.broadcasted_iota(jnp.int32, (TQ, TQ), 1)
    causal = cols <= rows

    nt = (((1,), (1,)), ((), ()))                                      # contract minor dims
    out_acc = jnp.zeros((TQ, HIDDEN), f32)

    # per-head attention (4 heads, statically unrolled; no lane concats in the loop)
    for hd in range(NUM_HEADS):
        s = jax.lax.dot_general(q_abs[:, hd * KV_LORA:(hd + 1) * KV_LORA], kv_c_b,
                                nt, preferred_element_type=f32)        # 128-deep, [T,T]
        s = s + jax.lax.dot_general(q_first[:, hd * HALF_ROPE:(hd + 1) * HALF_ROPE],
                                    k_first, nt, preferred_element_type=f32)
        s = s + jax.lax.dot_general(q_second[:, hd * HALF_ROPE:(hd + 1) * HALF_ROPE],
                                    k_second, nt, preferred_element_type=f32)
        s = jnp.where(causal, s, -1e30)
        m = jnp.max(s, axis=-1, keepdims=True)
        p = jnp.exp(s - m)
        l = jnp.sum(p, axis=-1, keepdims=True)
        p_b = (p / l).astype(bf16)
        ctx = jnp.dot(p_b, kv_c_b, preferred_element_type=f32).astype(bf16)   # [T, 128]
        out_acc = out_acc + jnp.dot(ctx, w_vo_ref[hd], preferred_element_type=f32)  # [T, 256]

    out_ref[...] = out_acc                                             # lane-dense [T, 256]


# ---------------- wrapper ----------------
@jax.jit
def mla_forward(hidden, wqa_b, gq, wq_abs_b, wq_re_b, wq_ro_b, wkva_b, gkv, w_vo_b,
                cos_t, sin_t):
    T_, H = hidden.shape
    full2 = lambda i: (0, 0)
    out = pl.pallas_call(
        mla_fused_kernel,
        out_shape=jax.ShapeDtypeStruct((T_, HIDDEN), jnp.float32),
        grid=(1,),
        in_specs=[
            pl.BlockSpec((T_, H), full2),
            pl.BlockSpec((H, Q_LORA), full2),
            pl.BlockSpec((1, Q_LORA), full2),
            pl.BlockSpec((Q_LORA, NUM_HEADS * KV_LORA), full2),
            pl.BlockSpec((Q_LORA, NUM_HEADS * HALF_ROPE), full2),
            pl.BlockSpec((Q_LORA, NUM_HEADS * HALF_ROPE), full2),
            pl.BlockSpec((H, KV_LORA + QK_ROPE), full2),
            pl.BlockSpec((1, KV_LORA), full2),
            pl.BlockSpec((NUM_HEADS, KV_LORA, HIDDEN), lambda i: (0, 0, 0)),
            pl.BlockSpec((T_, NUM_HEADS * HALF_ROPE), full2),
            pl.BlockSpec((T_, NUM_HEADS * HALF_ROPE), full2),
        ],
        out_specs=pl.BlockSpec((T_, HIDDEN), full2),
        compiler_params=pltpu.CompilerParams(dimension_semantics=("arbitrary",)),
    )(hidden, wqa_b, gq, wq_abs_b, wq_re_b, wq_ro_b, wkva_b, gkv, w_vo_b, cos_t, sin_t)
    return out


# ---------------- pure-JAX reference (original, un-absorbed, interleaved layout) -----
def mla_reference(hidden, wqa, gq, wqb, wkva, gkv, wkvb, wo, cos_h, sin_h, scale):
    def rms(x, g):
        return x * jax.lax.rsqrt(jnp.mean(x * x, -1, keepdims=True) + RMS_EPS) * g

    def rope2d(x):  # interleaved (is_neox_style=False)
        x1, x2 = x[:, 0::2], x[:, 1::2]
        o1 = x1 * cos_h - x2 * sin_h
        o2 = x2 * cos_h + x1 * sin_h
        return jnp.stack([o1, o2], axis=-1).reshape(x.shape)

    q_c = rms(hidden @ wqa, gq)
    qf = (q_c @ wqb).reshape(T, NUM_HEADS, QK_HEAD)
    q_nope, q_pe = qf[..., :QK_NOPE], qf[..., QK_NOPE:]
    q_pe = jax.vmap(rope2d)(q_pe.transpose(1, 0, 2)).transpose(1, 0, 2)

    kva = hidden @ wkva
    kv_c = rms(kva[:, :KV_LORA], gkv)
    k_pe = rope2d(kva[:, KV_LORA:])

    kv = (kv_c @ wkvb).reshape(T, NUM_HEADS, QK_NOPE + V_HEAD)
    k_nope, v = kv[..., :QK_NOPE], kv[..., QK_NOPE:]

    q_full = jnp.concatenate([q_nope, q_pe], axis=-1)
    k_full = jnp.concatenate(
        [k_nope, jnp.broadcast_to(k_pe[:, None, :], (T, NUM_HEADS, QK_ROPE))], axis=-1)

    scores = jnp.einsum("qhd,khd->hqk", q_full, k_full) * scale
    row = jnp.arange(T)[:, None]
    col = jnp.arange(T)[None, :]
    scores = jnp.where((col <= row)[None], scores, -1e30)
    p = jax.nn.softmax(scores, axis=-1)
    out = jnp.einsum("hqk,khd->qhd", p, v).reshape(T, NUM_HEADS * V_HEAD)
    return out @ wo


if __name__ == "__main__":
    key = jax.random.PRNGKey(0)
    ks = jax.random.split(key, 8)

    # deterministic synthetic parameters (shapes follow the module's __init__)
    wqa = jax.random.normal(ks[0], (HIDDEN, Q_LORA), jnp.float32) * (HIDDEN ** -0.5)
    wqb = jax.random.normal(ks[1], (Q_LORA, NUM_HEADS * QK_HEAD), jnp.float32) * (Q_LORA ** -0.5)
    wkva = jax.random.normal(ks[2], (HIDDEN, KV_LORA + QK_ROPE), jnp.float32) * (HIDDEN ** -0.5)
    wkvb = jax.random.normal(ks[3], (KV_LORA, NUM_HEADS * (QK_NOPE + V_HEAD)), jnp.float32) * (KV_LORA ** -0.5)
    wo = jax.random.normal(ks[4], (NUM_HEADS * V_HEAD, HIDDEN), jnp.float32) * ((NUM_HEADS * V_HEAD) ** -0.5)
    gq = jnp.ones((1, Q_LORA), jnp.float32)
    gkv = jnp.ones((1, KV_LORA), jnp.float32)

    hidden_states = jax.random.normal(ks[5], (T, HIDDEN), jnp.float32)
    positions = np.arange(T, dtype=np.int64)

    # yarn rope half-tables + attention scaling (mscale^2 folded in, as in the module)
    cos_h_np, sin_h_np = build_yarn_rope_half_tables(positions, QK_ROPE, ROPE_THETA, ROPE_SCALING)
    mscale_all = yarn_get_mscale(ROPE_SCALING["factor"], float(ROPE_SCALING["mscale_all_dim"]))
    scale = (QK_HEAD ** -0.5) * mscale_all * mscale_all

    # one-time weight repack / absorption (outside the jitted forward)
    wqa_b, wq_abs_b, wq_re_b, wq_ro_b, wkva_b, w_vo_b = repack_weights(
        np.asarray(wqa), np.asarray(wqb), np.asarray(wkva), np.asarray(wkvb),
        np.asarray(wo), scale)
    cos_t = jnp.asarray(np.tile(cos_h_np, (1, NUM_HEADS)))   # [T, 64]
    sin_t = jnp.asarray(np.tile(sin_h_np, (1, NUM_HEADS)))   # [T, 64]

    out = mla_forward(hidden_states, wqa_b, gq, wq_abs_b, wq_re_b, wq_ro_b,
                      wkva_b, gkv, w_vo_b, cos_t, sin_t)
    out = jax.block_until_ready(out)

    ref = jax.block_until_ready(
        mla_reference(hidden_states, wqa, gq, wqb, wkva, gkv, wkvb, wo,
                      jnp.asarray(cos_h_np), jnp.asarray(sin_h_np), scale))

    err = np.asarray(jnp.abs(out - ref))
    ref_np = np.asarray(ref)
    rel_rms = float(np.linalg.norm(err) / (np.linalg.norm(ref_np) + 1e-12))
    max_abs = float(err.max())
    assert np.isfinite(max_abs), "non-finite output"
    # bf16 MXU operands -> relative-RMS check plus a gross-error guard
    assert rel_rms < 2e-2 and max_abs < 1.5e-1, f"mismatch: rel_rms={rel_rms}, max_abs={max_abs}"
    print("KERNEL_OK")
</pallas_src>

<mosaic_0001>
module attributes {stable_mosaic.version = 11 : i64} {
  func.func @mla_fused_kernel(%arg0: i32, %arg1: memref<128x256xf32, #tpu.memory_space<vmem>>, %arg2: memref<256x128xbf16, #tpu.memory_space<vmem>>, %arg3: memref<1x128xf32, #tpu.memory_space<vmem>>, %arg4: memref<128x512xbf16, #tpu.memory_space<vmem>>, %arg5: memref<128x64xbf16, #tpu.memory_space<vmem>>, %arg6: memref<128x64xbf16, #tpu.memory_space<vmem>>, %arg7: memref<256x160xbf16, #tpu.memory_space<vmem>>, %arg8: memref<1x128xf32, #tpu.memory_space<vmem>>, %arg9: memref<4x128x256xbf16, #tpu.memory_space<vmem>>, %arg10: memref<128x64xf32, #tpu.memory_space<vmem>>, %arg11: memref<128x64xf32, #tpu.memory_space<vmem>>, %arg12: memref<128x256xf32, #tpu.memory_space<vmem>>) attributes {dimension_semantics = [#tpu.dimension_semantics<arbitrary>], iteration_bounds = array<i64: 1>, scalar_prefetch = 0 : i64, scratch_operands = 0 : i64, tpu.core_type = #tpu.core_type<tc>, window_params = [{pipeline_mode = #tpu.pipeline_mode<synchronous>, transform_indices = @transform_0, window_bounds = array<i64: 128, 256>}, {pipeline_mode = #tpu.pipeline_mode<synchronous>, transform_indices = @transform_1, window_bounds = array<i64: 256, 128>}, {pipeline_mode = #tpu.pipeline_mode<synchronous>, transform_indices = @transform_2, window_bounds = array<i64: 1, 128>}, {pipeline_mode = #tpu.pipeline_mode<synchronous>, transform_indices = @transform_3, window_bounds = array<i64: 128, 512>}, {pipeline_mode = #tpu.pipeline_mode<synchronous>, transform_indices = @transform_4, window_bounds = array<i64: 128, 64>}, {pipeline_mode = #tpu.pipeline_mode<synchronous>, transform_indices = @transform_5, window_bounds = array<i64: 128, 64>}, {pipeline_mode = #tpu.pipeline_mode<synchronous>, transform_indices = @transform_6, window_bounds = array<i64: 256, 160>}, {pipeline_mode = #tpu.pipeline_mode<synchronous>, transform_indices = @transform_7, window_bounds = array<i64: 1, 128>}, {pipeline_mode = #tpu.pipeline_mode<synchronous>, transform_indices = @transform_8, window_bounds = array<i64: 4, 128, 256>}, {pipeline_mode = #tpu.pipeline_mode<synchronous>, transform_indices = @transform_9, window_bounds = array<i64: 128, 64>}, {pipeline_mode = #tpu.pipeline_mode<synchronous>, transform_indices = @transform_10, window_bounds = array<i64: 128, 64>}, {pipeline_mode = #tpu.pipeline_mode<synchronous>, transform_indices = @transform_11, window_bounds = array<i64: 128, 256>}]} {
    %c0 = arith.constant 0 : index
    %c0_0 = arith.constant 0 : index
    %0 = vector.load %arg1[%c0, %c0_0] : memref<128x256xf32, #tpu.memory_space<vmem>>, vector<128x256xf32>
    %1 = arith.truncf %0 : vector<128x256xf32> to vector<128x256xbf16>
    %c0_1 = arith.constant 0 : index
    %c0_2 = arith.constant 0 : index
    %2 = vector.load %arg7[%c0_1, %c0_2] : memref<256x160xbf16, #tpu.memory_space<vmem>>, vector<256x160xbf16>
    %cst = arith.constant dense<0.000000e+00> : vector<128x160xf32>
    %3 = tpu.matmul %1, %2, %cst {dimension_numbers = #tpu.dot_dimension_numbers<[1], [0], [0], [1], [0, 0, 1, 1], [], []>} : vector<128x256xbf16>, vector<256x160xbf16>, vector<128x160xf32> -> vector<128x160xf32>
    %4 = vector.extract_strided_slice %3 {offsets = [0, 0], sizes = [128, 128], strides = [1, 1]} : vector<128x160xf32> to vector<128x128xf32>
    %c0_3 = arith.constant 0 : index
    %c0_4 = arith.constant 0 : index
    %5 = vector.load %arg8[%c0_3, %c0_4] : memref<1x128xf32, #tpu.memory_space<vmem>>, vector<1x128xf32>
    %6 = arith.mulf %4, %4 : vector<128x128xf32>
    %cst_5 = arith.constant dense<0.000000e+00> : vector<128xf32>
    %7 = vector.multi_reduction <add>, %6, %cst_5 [1] : vector<128x128xf32> to vector<128xf32>
    %8 = vector.shape_cast %7 : vector<128xf32> to vector<128x1xf32>
    %cst_6 = arith.constant 1.280000e+02 : f32
    %9 = vector.broadcast %cst_6 : f32 to vector<128x1xf32>
    %10 = arith.divf %8, %9 : vector<128x1xf32>
    %cst_7 = arith.constant 9.99999997E-7 : f32
    %11 = vector.broadcast %cst_7 : f32 to vector<128x1xf32>
    %12 = arith.addf %10, %11 : vector<128x1xf32>
    %13 = math.rsqrt %12 : vector<128x1xf32>
    %14 = vector.broadcast %13 : vector<128x1xf32> to vector<128x128xf32>
    %15 = arith.mulf %4, %14 : vector<128x128xf32>
    %16 = vector.broadcast %5 : vector<1x128xf32> to vector<128x128xf32>
    %17 = arith.mulf %15, %16 : vector<128x128xf32>
    %18 = arith.truncf %17 : vector<128x128xf32> to vector<128x128xbf16>
    %c0_8 = arith.constant 0 : index
    %c0_9 = arith.constant 0 : index
    %19 = vector.load %arg10[%c0_8, %c0_9] : memref<128x64xf32, #tpu.memory_space<vmem>>, vector<128x64xf32>
    %c0_10 = arith.constant 0 : index
    %c0_11 = arith.constant 0 : index
    %20 = vector.load %arg11[%c0_10, %c0_11] : memref<128x64xf32, #tpu.memory_space<vmem>>, vector<128x64xf32>
    %21 = vector.extract_strided_slice %19 {offsets = [0, 0], sizes = [128, 16], strides = [1, 1]} : vector<128x64xf32> to vector<128x16xf32>
    %22 = vector.extract_strided_slice %20 {offsets = [0, 0], sizes = [128, 16], strides = [1, 1]} : vector<128x64xf32> to vector<128x16xf32>
    %23 = vector.extract_strided_slice %3 {offsets = [0, 128], sizes = [128, 16], strides = [1, 1]} : vector<128x160xf32> to vector<128x16xf32>
    %24 = vector.extract_strided_slice %3 {offsets = [0, 144], sizes = [128, 16], strides = [1, 1]} : vector<128x160xf32> to vector<128x16xf32>
    %25 = arith.mulf %23, %21 : vector<128x16xf32>
    %26 = arith.mulf %24, %22 : vector<128x16xf32>
    %27 = arith.subf %25, %26 : vector<128x16xf32>
    %28 = arith.truncf %27 : vector<128x16xf32> to vector<128x16xbf16>
    %29 = arith.mulf %24, %21 : vector<128x16xf32>
    %30 = arith.mulf %23, %22 : vector<128x16xf32>
    %31 = arith.addf %29, %30 : vector<128x16xf32>
    %32 = arith.truncf %31 : vector<128x16xf32> to vector<128x16xbf16>
    %c0_12 = arith.constant 0 : index
    %c0_13 = arith.constant 0 : index
    %33 = vector.load %arg2[%c0_12, %c0_13] : memref<256x128xbf16, #tpu.memory_space<vmem>>, vector<256x128xbf16>
    %cst_14 = arith.constant dense<0.000000e+00> : vector<128x128xf32>
    %34 = tpu.matmul %1, %33, %cst_14 {dimension_numbers = #tpu.dot_dimension_numbers<[1], [0], [0], [1], [0, 0, 1, 1], [], []>} : vector<128x256xbf16>, vector<256x128xbf16>, vector<128x128xf32> -> vector<128x128xf32>
    %c0_15 = arith.constant 0 : index
    %c0_16 = arith.constant 0 : index
    %35 = vector.load %arg3[%c0_15, %c0_16] : memref<1x128xf32, #tpu.memory_space<vmem>>, vector<1x128xf32>
    %36 = arith.mulf %34, %34 : vector<128x128xf32>
    %cst_17 = arith.constant dense<0.000000e+00> : vector<128xf32>
    %37 = vector.multi_reduction <add>, %36, %cst_17 [1] : vector<128x128xf32> to vector<128xf32>
    %38 = vector.shape_cast %37 : vector<128xf32> to vector<128x1xf32>
    %cst_18 = arith.constant 1.280000e+02 : f32
    %39 = vector.broadcast %cst_18 : f32 to vector<128x1xf32>
    %40 = arith.divf %38, %39 : vector<128x1xf32>
    %cst_19 = arith.constant 9.99999997E-7 : f32
    %41 = vector.broadcast %cst_19 : f32 to vector<128x1xf32>
    %42 = arith.addf %40, %41 : vector<128x1xf32>
    %43 = math.rsqrt %42 : vector<128x1xf32>
    %44 = vector.broadcast %43 : vector<128x1xf32> to vector<128x128xf32>
    %45 = arith.mulf %34, %44 : vector<128x128xf32>
    %46 = vector.broadcast %35 : vector<1x128xf32> to vector<128x128xf32>
    %47 = arith.mulf %45, %46 : vector<128x128xf32>
    %48 = arith.truncf %47 : vector<128x128xf32> to vector<128x128xbf16>
    %c0_20 = arith.constant 0 : index
    %c0_21 = arith.constant 0 : index
    %49 = vector.load %arg4[%c0_20, %c0_21] : memref<128x512xbf16, #tpu.memory_space<vmem>>, vector<128x512xbf16>
    %cst_22 = arith.constant dense<0.000000e+00> : vector<128x512xf32>
    %50 = tpu.matmul %48, %49, %cst_22 {dimension_numbers = #tpu.dot_dimension_numbers<[1], [0], [0], [1], [0, 0, 1, 1], [], []>} : vector<128x128xbf16>, vector<128x512xbf16>, vector<128x512xf32> -> vector<128x512xf32>
    %51 = arith.truncf %50 : vector<128x512xf32> to vector<128x512xbf16>
    %c0_23 = arith.constant 0 : index
    %c0_24 = arith.constant 0 : index
    %52 = vector.load %arg5[%c0_23, %c0_24] : memref<128x64xbf16, #tpu.memory_space<vmem>>, vector<128x64xbf16>
    %cst_25 = arith.constant dense<0.000000e+00> : vector<128x64xf32>
    %53 = tpu.matmul %48, %52, %cst_25 {dimension_numbers = #tpu.dot_dimension_numbers<[1], [0], [0], [1], [0, 0, 1, 1], [], []>} : vector<128x128xbf16>, vector<128x64xbf16>, vector<128x64xf32> -> vector<128x64xf32>
    %c0_26 = arith.constant 0 : index
    %c0_27 = arith.constant 0 : index
    %54 = vector.load %arg6[%c0_26, %c0_27] : memref<128x64xbf16, #tpu.memory_space<vmem>>, vector<128x64xbf16>
    %cst_28 = arith.constant dense<0.000000e+00> : vector<128x64xf32>
    %55 = tpu.matmul %48, %54, %cst_28 {dimension_numbers = #tpu.dot_dimension_numbers<[1], [0], [0], [1], [0, 0, 1, 1], [], []>} : vector<128x128xbf16>, vector<128x64xbf16>, vector<128x64xf32> -> vector<128x64xf32>
    %56 = arith.mulf %53, %19 : vector<128x64xf32>
    %57 = arith.mulf %55, %20 : vector<128x64xf32>
    %58 = arith.subf %56, %57 : vector<128x64xf32>
    %59 = arith.truncf %58 : vector<128x64xf32> to vector<128x64xbf16>
    %60 = arith.mulf %55, %19 : vector<128x64xf32>
    %61 = arith.mulf %53, %20 : vector<128x64xf32>
    %62 = arith.addf %60, %61 : vector<128x64xf32>
    %63 = arith.truncf %62 : vector<128x64xf32> to vector<128x64xbf16>
    %64 = tpu.iota {dimensions = array<i32: 0>} : vector<128x128xi32>
    %65 = tpu.iota {dimensions = array<i32: 1>} : vector<128x128xi32>
    %66 = arith.cmpi sle, %65, %64 : vector<128x128xi32>
    %cst_29 = arith.constant 0.000000e+00 : f32
    %67 = vector.broadcast %cst_29 : f32 to vector<128x256xf32>
    %68 = vector.extract_strided_slice %51 {offsets = [0, 0], sizes = [128, 128], strides = [1, 1]} : vector<128x512xbf16> to vector<128x128xbf16>
    %cst_30 = arith.constant dense<0.000000e+00> : vector<128x128xf32>
    %69 = tpu.matmul %68, %18, %cst_30 {dimension_numbers = #tpu.dot_dimension_numbers<[1], [1], [0], [0], [0, 0, 1, 0], [], []>} : vector<128x128xbf16>, vector<128x128xbf16>, vector<128x128xf32> -> vector<128x128xf32>
    %70 = vector.extract_strided_slice %59 {offsets = [0, 0], sizes = [128, 16], strides = [1, 1]} : vector<128x64xbf16> to vector<128x16xbf16>
    %cst_31 = arith.constant dense<0.000000e+00> : vector<128x128xf32>
    %71 = tpu.matmul %70, %28, %cst_31 {dimension_numbers = #tpu.dot_dimension_numbers<[1], [1], [0], [0], [0, 0, 1, 0], [], []>} : vector<128x16xbf16>, vector<128x16xbf16>, vector<128x128xf32> -> vector<128x128xf32>
    %72 = arith.addf %69, %71 : vector<128x128xf32>
    %73 = vector.extract_strided_slice %63 {offsets = [0, 0], sizes = [128, 16], strides = [1, 1]} : vector<128x64xbf16> to vector<128x16xbf16>
    %cst_32 = arith.constant dense<0.000000e+00> : vector<128x128xf32>
    %74 = tpu.matmul %73, %32, %cst_32 {dimension_numbers = #tpu.dot_dimension_numbers<[1], [1], [0], [0], [0, 0, 1, 0], [], []>} : vector<128x16xbf16>, vector<128x16xbf16>, vector<128x128xf32> -> vector<128x128xf32>
    %75 = arith.addf %72, %74 : vector<128x128xf32>
    %cst_33 = arith.constant -1.000000e+30 : f32
    %76 = vector.broadcast %cst_33 : f32 to vector<128x128xf32>
    %77 = arith.select %66, %75, %76 : vector<128x128xi1>, vector<128x128xf32>
    %cst_34 = arith.constant dense<0xFF800000> : vector<128xf32>
    %78 = vector.multi_reduction <maximumf>, %77, %cst_34 [1] : vector<128x128xf32> to vector<128xf32>
    %79 = vector.shape_cast %78 : vector<128xf32> to vector<128x1xf32>
    %80 = vector.broadcast %79 : vector<128x1xf32> to vector<128x128xf32>
    %81 = arith.subf %77, %80 : vector<128x128xf32>
    %82 = math.exp %81 : vector<128x128xf32>
    %cst_35 = arith.constant dense<0.000000e+00> : vector<128xf32>
    %83 = vector.multi_reduction <add>, %82, %cst_35 [1] : vector<128x128xf32> to vector<128xf32>
    %84 = vector.shape_cast %83 : vector<128xf32> to vector<128x1xf32>
    %85 = vector.broadcast %84 : vector<128x1xf32> to vector<128x128xf32>
    %86 = arith.divf %82, %85 : vector<128x128xf32>
    %87 = arith.truncf %86 : vector<128x128xf32> to vector<128x128xbf16>
    %cst_36 = arith.constant dense<0.000000e+00> : vector<128x128xf32>
    %88 = tpu.matmul %87, %18, %cst_36 {dimension_numbers = #tpu.dot_dimension_numbers<[1], [0], [0], [1], [0, 0, 1, 1], [], []>} : vector<128x128xbf16>, vector<128x128xbf16>, vector<128x128xf32> -> vector<128x128xf32>
    %89 = arith.truncf %88 : vector<128x128xf32> to vector<128x128xbf16>
    %c0_37 = arith.constant 0 : index
    %c0_38 = arith.constant 0 : index
    %c0_39 = arith.constant 0 : index
    %90 = vector.load %arg9[%c0_37, %c0_38, %c0_39] : memref<4x128x256xbf16, #tpu.memory_space<vmem>>, vector<1x128x256xbf16>
    %91 = vector.shape_cast %90 : vector<1x128x256xbf16> to vector<128x256xbf16>
    %cst_40 = arith.constant dense<0.000000e+00> : vector<128x256xf32>
    %92 = tpu.matmul %89, %91, %cst_40 {dimension_numbers = #tpu.dot_dimension_numbers<[1], [0], [0], [1], [0, 0, 1, 1], [], []>} : vector<128x128xbf16>, vector<128x256xbf16>, vector<128x256xf32> -> vector<128x256xf32>
    %93 = arith.addf %67, %92 : vector<128x256xf32>
    %94 = vector.extract_strided_slice %51 {offsets = [0, 128], sizes = [128, 128], strides = [1, 1]} : vector<128x512xbf16> to vector<128x128xbf16>
    %cst_41 = arith.constant dense<0.000000e+00> : vector<128x128xf32>
    %95 = tpu.matmul %94, %18, %cst_41 {dimension_numbers = #tpu.dot_dimension_numbers<[1], [1], [0], [0], [0, 0, 1, 0], [], []>} : vector<128x128xbf16>, vector<128x128xbf16>, vector<128x128xf32> -> vector<128x128xf32>
    %96 = vector.extract_strided_slice %59 {offsets = [0, 16], sizes = [128, 16], strides = [1, 1]} : vector<128x64xbf16> to vector<128x16xbf16>
    %cst_42 = arith.constant dense<0.000000e+00> : vector<128x128xf32>
    %97 = tpu.matmul %96, %28, %cst_42 {dimension_numbers = #tpu.dot_dimension_numbers<[1], [1], [0], [0], [0, 0, 1, 0], [], []>} : vector<128x16xbf16>, vector<128x16xbf16>, vector<128x128xf32> -> vector<128x128xf32>
    %98 = arith.addf %95, %97 : vector<128x128xf32>
    %99 = vector.extract_strided_slice %63 {offsets = [0, 16], sizes = [128, 16], strides = [1, 1]} : vector<128x64xbf16> to vector<128x16xbf16>
    %cst_43 = arith.constant dense<0.000000e+00> : vector<128x128xf32>
    %100 = tpu.matmul %99, %32, %cst_43 {dimension_numbers = #tpu.dot_dimension_numbers<[1], [1], [0], [0], [0, 0, 1, 0], [], []>} : vector<128x16xbf16>, vector<128x16xbf16>, vector<128x128xf32> -> vector<128x128xf32>
    %101 = arith.addf %98, %100 : vector<128x128xf32>
    %cst_44 = arith.constant -1.000000e+30 : f32
    %102 = vector.broadcast %cst_44 : f32 to vector<128x128xf32>
    %103 = arith.select %66, %101, %102 : vector<128x128xi1>, vector<128x128xf32>
    %cst_45 = arith.constant dense<0xFF800000> : vector<128xf32>
    %104 = vector.multi_reduction <maximumf>, %103, %cst_45 [1] : vector<128x128xf32> to vector<128xf32>
    %105 = vector.shape_cast %104 : vector<128xf32> to vector<128x1xf32>
    %106 = vector.broadcast %105 : vector<128x1xf32> to vector<128x128xf32>
    %107 = arith.subf %103, %106 : vector<128x128xf32>
    %108 = math.exp %107 : vector<128x128xf32>
    %cst_46 = arith.constant dense<0.000000e+00> : vector<128xf32>
    %109 = vector.multi_reduction <add>, %108, %cst_46 [1] : vector<128x128xf32> to vector<128xf32>
    %110 = vector.shape_cast %109 : vector<128xf32> to vector<128x1xf32>
    %111 = vector.broadcast %110 : vector<128x1xf32> to vector<128x128xf32>
    %112 = arith.divf %108, %111 : vector<128x128xf32>
    %113 = arith.truncf %112 : vector<128x128xf32> to vector<128x128xbf16>
    %cst_47 = arith.constant dense<0.000000e+00> : vector<128x128xf32>
    %114 = tpu.matmul %113, %18, %cst_47 {dimension_numbers = #tpu.dot_dimension_numbers<[1], [0], [0], [1], [0, 0, 1, 1], [], []>} : vector<128x128xbf16>, vector<128x128xbf16>, vector<128x128xf32> -> vector<128x128xf32>
    %115 = arith.truncf %114 : vector<128x128xf32> to vector<128x128xbf16>
    %c1 = arith.constant 1 : index
    %c0_48 = arith.constant 0 : index
    %c0_49 = arith.constant 0 : index
    %116 = vector.load %arg9[%c1, %c0_48, %c0_49] : memref<4x128x256xbf16, #tpu.memory_space<vmem>>, vector<1x128x256xbf16>
    %117 = vector.shape_cast %116 : vector<1x128x256xbf16> to vector<128x256xbf16>
    %cst_50 = arith.constant dense<0.000000e+00> : vector<128x256xf32>
    %118 = tpu.matmul %115, %117, %cst_50 {dimension_numbers = #tpu.dot_dimension_numbers<[1], [0], [0], [1], [0, 0, 1, 1], [], []>} : vector<128x128xbf16>, vector<128x256xbf16>, vector<128x256xf32> -> vector<128x256xf32>
    %119 = arith.addf %93, %118 : vector<128x256xf32>
    %120 = vector.extract_strided_slice %51 {offsets = [0, 256], sizes = [128, 128], strides = [1, 1]} : vector<128x512xbf16> to vector<128x128xbf16>
    %cst_51 = arith.constant dense<0.000000e+00> : vector<128x128xf32>
    %121 = tpu.matmul %120, %18, %cst_51 {dimension_numbers = #tpu.dot_dimension_numbers<[1], [1], [0], [0], [0, 0, 1, 0], [], []>} : vector<128x128xbf16>, vector<128x128xbf16>, vector<128x128xf32> -> vector<128x128xf32>
    %122 = vector.extract_strided_slice %59 {offsets = [0, 32], sizes = [128, 16], strides = [1, 1]} : vector<128x64xbf16> to vector<128x16xbf16>
    %cst_52 = arith.constant dense<0.000000e+00> : vector<128x128xf32>
    %123 = tpu.matmul %122, %28, %cst_52 {dimension_numbers = #tpu.dot_dimension_numbers<[1], [1], [0], [0], [0, 0, 1, 0], [], []>} : vector<128x16xbf16>, vector<128x16xbf16>, vector<128x128xf32> -> vector<128x128xf32>
    %124 = arith.addf %121, %123 : vector<128x128xf32>
    %125 = vector.extract_strided_slice %63 {offsets = [0, 32], sizes = [128, 16], strides = [1, 1]} : vector<128x64xbf16> to vector<128x16xbf16>
    %cst_53 = arith.constant dense<0.000000e+00> : vector<128x128xf32>
    %126 = tpu.matmul %125, %32, %cst_53 {dimension_numbers = #tpu.dot_dimension_numbers<[1], [1], [0], [0], [0, 0, 1, 0], [], []>} : vector<128x16xbf16>, vector<128x16xbf16>, vector<128x128xf32> -> vector<128x128xf32>
    %127 = arith.addf %124, %126 : vector<128x128xf32>
    %cst_54 = arith.constant -1.000000e+30 : f32
    %128 = vector.broadcast %cst_54 : f32 to vector<128x128xf32>
    %129 = arith.select %66, %127, %128 : vector<128x128xi1>, vector<128x128xf32>
    %cst_55 = arith.constant dense<0xFF800000> : vector<128xf32>
    %130 = vector.multi_reduction <maximumf>, %129, %cst_55 [1] : vector<128x128xf32> to vector<128xf32>
    %131 = vector.shape_cast %130 : vector<128xf32> to vector<128x1xf32>
    %132 = vector.broadcast %131 : vector<128x1xf32> to vector<128x128xf32>
    %133 = arith.subf %129, %132 : vector<128x128xf32>
    %134 = math.exp %133 : vector<128x128xf32>
    %cst_56 = arith.constant dense<0.000000e+00> : vector<128xf32>
    %135 = vector.multi_reduction <add>, %134, %cst_56 [1] : vector<128x128xf32> to vector<128xf32>
    %136 = vector.shape_cast %135 : vector<128xf32> to vector<128x1xf32>
    %137 = vector.broadcast %136 : vector<128x1xf32> to vector<128x128xf32>
    %138 = arith.divf %134, %137 : vector<128x128xf32>
    %139 = arith.truncf %138 : vector<128x128xf32> to vector<128x128xbf16>
    %cst_57 = arith.constant dense<0.000000e+00> : vector<128x128xf32>
    %140 = tpu.matmul %139, %18, %cst_57 {dimension_numbers = #tpu.dot_dimension_numbers<[1], [0], [0], [1], [0, 0, 1, 1], [], []>} : vector<128x128xbf16>, vector<128x128xbf16>, vector<128x128xf32> -> vector<128x128xf32>
    %141 = arith.truncf %140 : vector<128x128xf32> to vector<128x128xbf16>
    %c2 = arith.constant 2 : index
    %c0_58 = arith.constant 0 : index
    %c0_59 = arith.constant 0 : index
    %142 = vector.load %arg9[%c2, %c0_58, %c0_59] : memref<4x128x256xbf16, #tpu.memory_space<vmem>>, vector<1x128x256xbf16>
    %143 = vector.shape_cast %142 : vector<1x128x256xbf16> to vector<128x256xbf16>
    %cst_60 = arith.constant dense<0.000000e+00> : vector<128x256xf32>
    %144 = tpu.matmul %141, %143, %cst_60 {dimension_numbers = #tpu.dot_dimension_numbers<[1], [0], [0], [1], [0, 0, 1, 1], [], []>} : vector<128x128xbf16>, vector<128x256xbf16>, vector<128x256xf32> -> vector<128x256xf32>
    %145 = arith.addf %119, %144 : vector<128x256xf32>
    %146 = vector.extract_strided_slice %51 {offsets = [0, 384], sizes = [128, 128], strides = [1, 1]} : vector<128x512xbf16> to vector<128x128xbf16>
    %cst_61 = arith.constant dense<0.000000e+00> : vector<128x128xf32>
    %147 = tpu.matmul %146, %18, %cst_61 {dimension_numbers = #tpu.dot_dimension_numbers<[1], [1], [0], [0], [0, 0, 1, 0], [], []>} : vector<128x128xbf16>, vector<128x128xbf16>, vector<128x128xf32> -> vector<128x128xf32>
    %148 = vector.extract_strided_slice %59 {offsets = [0, 48], sizes = [128, 16], strides = [1, 1]} : vector<128x64xbf16> to vector<128x16xbf16>
    %cst_62 = arith.constant dense<0.000000e+00> : vector<128x128xf32>
    %149 = tpu.matmul %148, %28, %cst_62 {dimension_numbers = #tpu.dot_dimension_numbers<[1], [1], [0], [0], [0, 0, 1, 0], [], []>} : vector<128x16xbf16>, vector<128x16xbf16>, vector<128x128xf32> -> vector<128x128xf32>
    %150 = arith.addf %147, %149 : vector<128x128xf32>
    %151 = vector.extract_strided_slice %63 {offsets = [0, 48], sizes = [128, 16], strides = [1, 1]} : vector<128x64xbf16> to vector<128x16xbf16>
    %cst_63 = arith.constant dense<0.000000e+00> : vector<128x128xf32>
    %152 = tpu.matmul %151, %32, %cst_63 {dimension_numbers = #tpu.dot_dimension_numbers<[1], [1], [0], [0], [0, 0, 1, 0], [], []>} : vector<128x16xbf16>, vector<128x16xbf16>, vector<128x128xf32> -> vector<128x128xf32>
    %153 = arith.addf %150, %152 : vector<128x128xf32>
    %cst_64 = arith.constant -1.000000e+30 : f32
    %154 = vector.broadcast %cst_64 : f32 to vector<128x128xf32>
    %155 = arith.select %66, %153, %154 : vector<128x128xi1>, vector<128x128xf32>
    %cst_65 = arith.constant dense<0xFF800000> : vector<128xf32>
    %156 = vector.multi_reduction <maximumf>, %155, %cst_65 [1] : vector<128x128xf32> to vector<128xf32>
    %157 = vector.shape_cast %156 : vector<128xf32> to vector<128x1xf32>
    %158 = vector.broadcast %157 : vector<128x1xf32> to vector<128x128xf32>
    %159 = arith.subf %155, %158 : vector<128x128xf32>
    %160 = math.exp %159 : vector<128x128xf32>
    %cst_66 = arith.constant dense<0.000000e+00> : vector<128xf32>
    %161 = vector.multi_reduction <add>, %160, %cst_66 [1] : vector<128x128xf32> to vector<128xf32>
    %162 = vector.shape_cast %161 : vector<128xf32> to vector<128x1xf32>
    %163 = vector.broadcast %162 : vector<128x1xf32> to vector<128x128xf32>
    %164 = arith.divf %160, %163 : vector<128x128xf32>
    %165 = arith.truncf %164 : vector<128x128xf32> to vector<128x128xbf16>
    %cst_67 = arith.constant dense<0.000000e+00> : vector<128x128xf32>
    %166 = tpu.matmul %165, %18, %cst_67 {dimension_numbers = #tpu.dot_dimension_numbers<[1], [0], [0], [1], [0, 0, 1, 1], [], []>} : vector<128x128xbf16>, vector<128x128xbf16>, vector<128x128xf32> -> vector<128x128xf32>
    %167 = arith.truncf %166 : vector<128x128xf32> to vector<128x128xbf16>
    %c3 = arith.constant 3 : index
    %c0_68 = arith.constant 0 : index
    %c0_69 = arith.constant 0 : index
    %168 = vector.load %arg9[%c3, %c0_68, %c0_69] : memref<4x128x256xbf16, #tpu.memory_space<vmem>>, vector<1x128x256xbf16>
    %169 = vector.shape_cast %168 : vector<1x128x256xbf16> to vector<128x256xbf16>
    %cst_70 = arith.constant dense<0.000000e+00> : vector<128x256xf32>
    %170 = tpu.matmul %167, %169, %cst_70 {dimension_numbers = #tpu.dot_dimension_numbers<[1], [0], [0], [1], [0, 0, 1, 1], [], []>} : vector<128x128xbf16>, vector<128x256xbf16>, vector<128x256xf32> -> vector<128x256xf32>
    %171 = arith.addf %145, %170 : vector<128x256xf32>
    %c0_71 = arith.constant 0 : index
    %c0_72 = arith.constant 0 : index
    %172 = vector.load %arg12[%c0_71, %c0_72] : memref<128x256xf32, #tpu.memory_space<vmem>>, vector<128x256xf32>
    tpu.vector_store %arg12[%c0_71, %c0_72], %171 {strides = array<i32>} : memref<128x256xf32, #tpu.memory_space<vmem>>, vector<128x256xf32>,
    return
  }
  func.func @transform_0(%arg0: i32) -> (i32, i32) {
    %c0_i32 = arith.constant 0 : i32
    %c0_i32_0 = arith.constant 0 : i32
    %c0_i32_1 = arith.constant 0 : i32
    return %c0_i32, %c0_i32_0 : i32, i32
  }
  func.func @transform_1(%arg0: i32) -> (i32, i32) {
    %c0_i32 = arith.constant 0 : i32
    %c0_i32_0 = arith.constant 0 : i32
    %c0_i32_1 = arith.constant 0 : i32
    return %c0_i32, %c0_i32_0 : i32, i32
  }
  func.func @transform_2(%arg0: i32) -> (i32, i32) {
    %c0_i32 = arith.constant 0 : i32
    %c0_i32_0 = arith.constant 0 : i32
    %c0_i32_1 = arith.constant 0 : i32
    return %c0_i32, %c0_i32_0 : i32, i32
  }
  func.func @transform_3(%arg0: i32) -> (i32, i32) {
    %c0_i32 = arith.constant 0 : i32
    %c0_i32_0 = arith.constant 0 : i32
    %c0_i32_1 = arith.constant 0 : i32
    return %c0_i32, %c0_i32_0 : i32, i32
  }
  func.func @transform_4(%arg0: i32) -> (i32, i32) {
    %c0_i32 = arith.constant 0 : i32
    %c0_i32_0 = arith.constant 0 : i32
    %c0_i32_1 = arith.constant 0 : i32
    return %c0_i32, %c0_i32_0 : i32, i32
  }
  func.func @transform_5(%arg0: i32) -> (i32, i32) {
    %c0_i32 = arith.constant 0 : i32
    %c0_i32_0 = arith.constant 0 : i32
    %c0_i32_1 = arith.constant 0 : i32
    return %c0_i32, %c0_i32_0 : i32, i32
  }
  func.func @transform_6(%arg0: i32) -> (i32, i32) {
    %c0_i32 = arith.constant 0 : i32
    %c0_i32_0 = arith.constant 0 : i32
    %c0_i32_1 = arith.constant 0 : i32
    return %c0_i32, %c0_i32_0 : i32, i32
  }
  func.func @transform_7(%arg0: i32) -> (i32, i32) {
    %c0_i32 = arith.constant 0 : i32
    %c0_i32_0 = arith.constant 0 : i32
    %c0_i32_1 = arith.constant 0 : i32
    return %c0_i32, %c0_i32_0 : i32, i32
  }
  func.func @transform_8(%arg0: i32) -> (i32, i32, i32) {
    %c0_i32 = arith.constant 0 : i32
    %c0_i32_0 = arith.constant 0 : i32
    %c0_i32_1 = arith.constant 0 : i32
    %c0_i32_2 = arith.constant 0 : i32
    return %c0_i32, %c0_i32_0, %c0_i32_1 : i32, i32, i32
  }
  func.func @transform_9(%arg0: i32) -> (i32, i32) {
    %c0_i32 = arith.constant 0 : i32
    %c0_i32_0 = arith.constant 0 : i32
    %c0_i32_1 = arith.constant 0 : i32
    return %c0_i32, %c0_i32_0 : i32, i32
  }
  func.func @transform_10(%arg0: i32) -> (i32, i32) {
    %c0_i32 = arith.constant 0 : i32
    %c0_i32_0 = arith.constant 0 : i32
    %c0_i32_1 = arith.constant 0 : i32
    return %c0_i32, %c0_i32_0 : i32, i32
  }
  func.func @transform_11(%arg0: i32) -> (i32, i32) {
    %c0_i32 = arith.constant 0 : i32
    %c0_i32_0 = arith.constant 0 : i32
    %c0_i32_1 = arith.constant 0 : i32
    return %c0_i32, %c0_i32_0 : i32, i32
  }
}

</mosaic_0001>

<llo_original>
// kernel: mla_forward.1
$region0: #{mla_forward.1}
  #allocation0 [shape = 'u32[]', space=smem, size = 0x4, offset = 0x4, fixed_abs, tag = 'smem constant byte address 0x4 - core index']
  #allocation1 [shape = 'u32[144,128]{1,0:T(1,128)}', space=vmem, size = 0x12000, scoped, tag = 'internal scratch']
  %s0 = inlined_call_operand.vmem [shape: f32[128,256], index: 0, kind: input, shape index: {}]
  %s1 = inlined_call_operand.vmem [shape: bf16[256,128], index: 1, kind: input, shape index: {}]
  %s2 = inlined_call_operand.vmem [shape: f32[1,128], index: 2, kind: input, shape index: {}]
  %s3 = inlined_call_operand.hbm [shape: bf16[128,512], index: 3, kind: input, shape index: {}]
  %s4 = inlined_call_operand.vmem [shape: bf16[128,64], index: 4, kind: input, shape index: {}]
  %s5 = inlined_call_operand.vmem [shape: bf16[128,64], index: 5, kind: input, shape index: {}]
  %s6 = inlined_call_operand.vmem [shape: bf16[256,160], index: 6, kind: input, shape index: {}]
  %s7 = inlined_call_operand.vmem [shape: f32[1,128], index: 7, kind: input, shape index: {}]
  %s8 = inlined_call_operand.vmem [shape: bf16[4,128,256], index: 8, kind: input, shape index: {}]
  %s9 = inlined_call_operand.vmem [shape: f32[128,64], index: 9, kind: input, shape index: {}]
  %s10 = inlined_call_operand.vmem [shape: f32[128,64], index: 10, kind: input, shape index: {}]
  %s11 = inlined_call_operand.hbm [shape: f32[128,256], index: 11, kind: output, shape index: {}]
  %s12 = sld [smem:[#allocation0]]
  $region58: #{mla_forward.1} parent=0
    _
  %s14 = ssub.s32 1, %s12
  %s15 = scalar_select 0, %s14, %s12
  $region1: #{mla_forward.1} parent=0
    #allocation2 [shape = 'u8[131072]{0}', space=vmem, size = 0x20000, scoped, tag = 'input window, operand 3, single buffered']
    #allocation3 [shape = 's32[1]{0}', space=sflag, size = 0x4, scoped, tag = 'scoped memory for mla_forward.1']
    #allocation4 [shape = 's32[1]{0}', space=sflag, size = 0x4, scoped, tag = 'scoped memory for mla_forward.1']
    #allocation5 [shape = 'u8[131072]{0}', space=vmem, size = 0x20000, scoped, tag = 'output window, operand 0, single buffered']
    %16 = vsyncpa [#allocation3], 0
    %17 = vsyncpa [#allocation4], 0
    // Predicated region
    $region2: #{mla_forward.1} parent=1 // pred_check
      _
    $region3: #{mla_forward.1} parent=1 // pred_check_branch
      %19 = sbr.rel (0) target = $region5
    $region4: #{mla_forward.1} parent=1 // pred_region
      _
    $region5: #{mla_forward.1} parent=1 // pred_fallthru
      _
    // Predicated region
    $region6: #{mla_forward.1} parent=1 // pred_check
      _
    $region7: #{mla_forward.1} parent=1 // pred_check_branch
      %21 = sbr.rel (0) target = $region9
    $region8: #{mla_forward.1} parent=1 // pred_region
      _
    $region9: #{mla_forward.1} parent=1 // pred_fallthru
      _
    // Predicated region
    $region10: #{mla_forward.1} parent=1 // pred_check
      _
    $region11: #{mla_forward.1} parent=1 // pred_check_branch
      %23 = sbr.rel (0) target = $region13
    $region12: #{mla_forward.1} parent=1 // pred_region
      _
    $region13: #{mla_forward.1} parent=1 // pred_fallthru
      _
    // Predicated region
    $region14: #{mla_forward.1} parent=1 // pred_check
      _
    $region15: #{mla_forward.1} parent=1 // pred_check_branch
      %25 = sbr.rel (0) target = $region17
    $region16: #{mla_forward.1} parent=1 // pred_region
      %s27 = ssub.s32 4096, 4096
      %28 = vsyncadd [#allocation3], %s27
      %s29 = sshll.u32 [#allocation2], 4
      %s30 = int_to_ptr.vmem [resolvable:$true] %s29
      %35 = dma.hbm_to_vmem [thread:$0]  %s3, 4096, %s30, [#allocation3], 256, 256, 16
    $region17: #{mla_forward.1} parent=1 // pred_fallthru
      _
    // Predicated region
    $region18: #{mla_forward.1} parent=1 // pred_check
      _
    $region19: #{mla_forward.1} parent=1 // pred_check_branch
      %37 = sbr.rel (0) target = $region21
    $region20: #{mla_forward.1} parent=1 // pred_region
      _
    $region21: #{mla_forward.1} parent=1 // pred_fallthru
      _
    // Predicated region
    $region22: #{mla_forward.1} parent=1 // pred_check
      _
    $region23: #{mla_forward.1} parent=1 // pred_check_branch
      %39 = sbr.rel (0) target = $region25
    $region24: #{mla_forward.1} parent=1 // pred_region
      _
    $region25: #{mla_forward.1} parent=1 // pred_fallthru
      _
    // Predicated region
    $region26: #{mla_forward.1} parent=1 // pred_check
      _
    $region27: #{mla_forward.1} parent=1 // pred_check_branch
      %41 = sbr.rel (0) target = $region29
    $region28: #{mla_forward.1} parent=1 // pred_region
      _
    $region29: #{mla_forward.1} parent=1 // pred_fallthru
      _
    // Predicated region
    $region30: #{mla_forward.1} parent=1 // pred_check
      _
    $region31: #{mla_forward.1} parent=1 // pred_check_branch
      %43 = sbr.rel (0) target = $region33
    $region32: #{mla_forward.1} parent=1 // pred_region
      _
    $region33: #{mla_forward.1} parent=1 // pred_fallthru
      _
    // Predicated region
    $region34: #{mla_forward.1} parent=1 // pred_check
      _
    $region35: #{mla_forward.1} parent=1 // pred_check_branch
      %45 = sbr.rel (0) target = $region37
    $region36: #{mla_forward.1} parent=1 // pred_region
      _
    $region37: #{mla_forward.1} parent=1 // pred_fallthru
      _
    // Predicated region
    $region38: #{mla_forward.1} parent=1 // pred_check
      _
    $region39: #{mla_forward.1} parent=1 // pred_check_branch
      %47 = sbr.rel (0) target = $region41
    $region40: #{mla_forward.1} parent=1 // pred_region
      _
    $region41: #{mla_forward.1} parent=1 // pred_fallthru
      _
    // Predicated region
    $region42: #{mla_forward.1} parent=1 // pred_check
      _
    $region43: #{mla_forward.1} parent=1 // pred_check_branch
      %49 = sbr.rel (0) target = $region45
    $region44: #{mla_forward.1} parent=1 // pred_region
      _
    $region45: #{mla_forward.1} parent=1 // pred_fallthru
      _
    // Predicated region
    $region46: #{mla_forward.1} parent=1 // pred_check
      _
    $region47: #{mla_forward.1} parent=1 // pred_check_branch
      %51 = sbr.rel (0) target = $region49
    $region48: #{mla_forward.1} parent=1 // pred_region
      %52 = dma.done [#allocation3], 4096
    $region49: #{mla_forward.1} parent=1 // pred_fallthru
      _
    %v54 = vld [vmem:[%s0] sm:$0xff]
    %v55 = vld [vmem:[%s0 + $0x8] sm:$0xff]
    %v56 = vld [vmem:[%s0 + $0x10] sm:$0xff]
    %v57 = vld [vmem:[%s0 + $0x18] sm:$0xff]
    %v58 = vld [vmem:[%s0 + $0x20] sm:$0xff]
    %v59 = vld [vmem:[%s0 + $0x28] sm:$0xff]
    %v60 = vld [vmem:[%s0 + $0x30] sm:$0xff]
    %v61 = vld [vmem:[%s0 + $0x38] sm:$0xff]
    %v62 = vld [vmem:[%s0 + $0x40] sm:$0xff]
    %v63 = vld [vmem:[%s0 + $0x48] sm:$0xff]
    %v64 = vld [vmem:[%s0 + $0x50] sm:$0xff]
    %v65 = vld [vmem:[%s0 + $0x58] sm:$0xff]
    %v66 = vld [vmem:[%s0 + $0x60] sm:$0xff]
    %v67 = vld [vmem:[%s0 + $0x68] sm:$0xff]
    %v68 = vld [vmem:[%s0 + $0x70] sm:$0xff]
    %v69 = vld [vmem:[%s0 + $0x78] sm:$0xff]
    %v70 = vld [vmem:[%s0 + $0x80] sm:$0xff]
    %v71 = vld [vmem:[%s0 + $0x88] sm:$0xff]
    %v72 = vld [vmem:[%s0 + $0x90] sm:$0xff]
    %v73 = vld [vmem:[%s0 + $0x98] sm:$0xff]
    %v74 = vld [vmem:[%s0 + $0xa0] sm:$0xff]
    %v75 = vld [vmem:[%s0 + $0xa8] sm:$0xff]
    %v76 = vld [vmem:[%s0 + $0xb0] sm:$0xff]
    %v77 = vld [vmem:[%s0 + $0xb8] sm:$0xff]
    %v78 = vld [vmem:[%s0 + $0xc0] sm:$0xff]
    %v79 = vld [vmem:[%s0 + $0xc8] sm:$0xff]
    %v80 = vld [vmem:[%s0 + $0xd0] sm:$0xff]
    %v81 = vld [vmem:[%s0 + $0xd8] sm:$0xff]
    %v82 = vld [vmem:[%s0 + $0xe0] sm:$0xff]
    %v83 = vld [vmem:[%s0 + $0xe8] sm:$0xff]
    %v84 = vld [vmem:[%s0 + $0xf0] sm:$0xff]
    %v85 = vld [vmem:[%s0 + $0xf8] sm:$0xff]
    %v86 = vpack.c.bf16 %v56, %v54
    %v87 = vpack.c.bf16 %v57, %v55
    %v88 = vpack.c.bf16 %v60, %v58
    %v89 = vpack.c.bf16 %v61, %v59
    %v90 = vpack.c.bf16 %v64, %v62
    %v91 = vpack.c.bf16 %v65, %v63
    %v92 = vpack.c.bf16 %v68, %v66
    %v93 = vpack.c.bf16 %v69, %v67
    %v94 = vpack.c.bf16 %v72, %v70
    %v95 = vpack.c.bf16 %v73, %v71
    %v96 = vpack.c.bf16 %v76, %v74
    %v97 = vpack.c.bf16 %v77, %v75
    %v98 = vpack.c.bf16 %v80, %v78
    %v99 = vpack.c.bf16 %v81, %v79
    %v100 = vpack.c.bf16 %v84, %v82
    %v101 = vpack.c.bf16 %v85, %v83
    %v102 = vld [vmem:[%s6] sm:$0xff]
    %v103 = vld [vmem:[%s6 + $0x8] sm:$0xff]
    %v104 = vld [vmem:[%s6 + $0x10] sm:$0xff]
    %v105 = vld [vmem:[%s6 + $0x18] sm:$0xff]
    %v106 = vld [vmem:[%s6 + $0x20] sm:$0xff]
    %v107 = vld [vmem:[%s6 + $0x28] sm:$0xff]
    %v108 = vld [vmem:[%s6 + $0x30] sm:$0xff]
    %v109 = vld [vmem:[%s6 + $0x38] sm:$0xff]
    %v110 = vld [vmem:[%s6 + $0x40] sm:$0xff]
    %v111 = vld [vmem:[%s6 + $0x48] sm:$0xff]
    %v112 = vld [vmem:[%s6 + $0x50] sm:$0xff]
    %v113 = vld [vmem:[%s6 + $0x58] sm:$0xff]
    %v114 = vld [vmem:[%s6 + $0x60] sm:$0xff]
    %v115 = vld [vmem:[%s6 + $0x68] sm:$0xff]
    %v116 = vld [vmem:[%s6 + $0x70] sm:$0xff]
    %v117 = vld [vmem:[%s6 + $0x78] sm:$0xff]
    %v118 = vld [vmem:[%s6 + $0x80] sm:$0xff]
    %v119 = vld [vmem:[%s6 + $0x88] sm:$0xff]
    %v120 = vld [vmem:[%s6 + $0x90] sm:$0xff]
    %v121 = vld [vmem:[%s6 + $0x98] sm:$0xff]
    %v122 = vld [vmem:[%s6 + $0xa0] sm:$0xff]
    %v123 = vld [vmem:[%s6 + $0xa8] sm:$0xff]
    %v124 = vld [vmem:[%s6 + $0xb0] sm:$0xff]
    %v125 = vld [vmem:[%s6 + $0xb8] sm:$0xff]
    %v126 = vld [vmem:[%s6 + $0xc0] sm:$0xff]
    %v127 = vld [vmem:[%s6 + $0xc8] sm:$0xff]
    %v128 = vld [vmem:[%s6 + $0xd0] sm:$0xff]
    %v129 = vld [vmem:[%s6 + $0xd8] sm:$0xff]
    %v130 = vld [vmem:[%s6 + $0xe0] sm:$0xff]
    %v131 = vld [vmem:[%s6 + $0xe8] sm:$0xff]
    %v132 = vld [vmem:[%s6 + $0xf0] sm:$0xff]
    %v133 = vld [vmem:[%s6 + $0xf8] sm:$0xff]
    %v166 = vunpack.c.l.b16 %v102
    %v167 = vunpack.c.h.b16 %v102
    %v168 = vunpack.c.l.b16 %v103
    %v169 = vunpack.c.h.b16 %v103
    %v170 = vunpack.c.l.b16 %v104
    %v171 = vunpack.c.h.b16 %v104
    %v172 = vunpack.c.l.b16 %v105
    %v173 = vunpack.c.h.b16 %v105
    %v174 = vunpack.c.l.b16 %v106
    %v175 = vunpack.c.h.b16 %v106
    %v176 = vunpack.c.l.b16 %v107
    %v177 = vunpack.c.h.b16 %v107
    %v178 = vunpack.c.l.b16 %v108
    %v179 = vunpack.c.h.b16 %v108
    %v180 = vunpack.c.l.b16 %v109
    %v181 = vunpack.c.h.b16 %v109
    %v182 = vunpack.c.l.b16 %v110
    %v183 = vunpack.c.h.b16 %v110
    %v184 = vunpack.c.l.b16 %v111
    %v185 = vunpack.c.h.b16 %v111
    %v186 = vunpack.c.l.b16 %v112
    %v187 = vunpack.c.h.b16 %v112
    %v188 = vunpack.c.l.b16 %v113
    %v189 = vunpack.c.h.b16 %v113
    %v190 = vunpack.c.l.b16 %v114
    %v191 = vunpack.c.h.b16 %v114
    %v192 = vunpack.c.l.b16 %v115
    %v193 = vunpack.c.h.b16 %v115
    %v194 = vunpack.c.l.b16 %v116
    %v195 = vunpack.c.h.b16 %v116
    %v196 = vunpack.c.l.b16 %v117
    %v197 = vunpack.c.h.b16 %v117
    %v198 = vunpack.c.l.b16 %v118
    %v199 = vunpack.c.h.b16 %v118
    %v200 = vunpack.c.l.b16 %v119
    %v201 = vunpack.c.h.b16 %v119
    %v202 = vunpack.c.l.b16 %v120
    %v203 = vunpack.c.h.b16 %v120
    %v204 = vunpack.c.l.b16 %v121
    %v205 = vunpack.c.h.b16 %v121
    %v206 = vunpack.c.l.b16 %v122
    %v207 = vunpack.c.h.b16 %v122
    %v208 = vunpack.c.l.b16 %v123
    %v209 = vunpack.c.h.b16 %v123
    %v210 = vunpack.c.l.b16 %v124
    %v211 = vunpack.c.h.b16 %v124
    %v212 = vunpack.c.l.b16 %v125
    %v213 = vunpack.c.h.b16 %v125
    %v214 = vunpack.c.l.b16 %v126
    %v215 = vunpack.c.h.b16 %v126
    %v216 = vunpack.c.l.b16 %v127
    %v217 = vunpack.c.h.b16 %v127
    %v218 = vunpack.c.l.b16 %v128
    %v219 = vunpack.c.h.b16 %v128
    %v220 = vunpack.c.l.b16 %v129
    %v221 = vunpack.c.h.b16 %v129
    %v222 = vunpack.c.l.b16 %v130
    %v223 = vunpack.c.h.b16 %v130
    %v224 = vunpack.c.l.b16 %v131
    %v225 = vunpack.c.h.b16 %v131
    %v226 = vunpack.c.l.b16 %v132
    %v227 = vunpack.c.h.b16 %v132
    %v228 = vunpack.c.l.b16 %v133
    %v229 = vunpack.c.h.b16 %v133
    %v230 = vpack.c.b16 %v168, %v166
    %v231 = vpack.c.b16 %v169, %v167
    %v232 = vpack.c.b16 %v172, %v170
    %v233 = vpack.c.b16 %v173, %v171
    %v234 = vpack.c.b16 %v176, %v174
    %v235 = vpack.c.b16 %v177, %v175
    %v236 = vpack.c.b16 %v180, %v178
    %v237 = vpack.c.b16 %v181, %v179
    %v238 = vpack.c.b16 %v184, %v182
    %v239 = vpack.c.b16 %v185, %v183
    %v240 = vpack.c.b16 %v188, %v186
    %v241 = vpack.c.b16 %v189, %v187
    %v242 = vpack.c.b16 %v192, %v190
    %v243 = vpack.c.b16 %v193, %v191
    %v244 = vpack.c.b16 %v196, %v194
    %v245 = vpack.c.b16 %v197, %v195
    %v246 = vpack.c.b16 %v200, %v198
    %v247 = vpack.c.b16 %v201, %v199
    %v248 = vpack.c.b16 %v204, %v202
    %v249 = vpack.c.b16 %v205, %v203
    %v250 = vpack.c.b16 %v208, %v206
    %v251 = vpack.c.b16 %v209, %v207
    %v252 = vpack.c.b16 %v212, %v210
    %v253 = vpack.c.b16 %v213, %v211
    %v254 = vpack.c.b16 %v216, %v214
    %v255 = vpack.c.b16 %v217, %v215
    %v256 = vpack.c.b16 %v220, %v218
    %v257 = vpack.c.b16 %v221, %v219
    %v258 = vpack.c.b16 %v224, %v222
    %v259 = vpack.c.b16 %v225, %v223
    %v260 = vpack.c.b16 %v228, %v226
    %v261 = vpack.c.b16 %v229, %v227
    %294 = vmatprep.subr.bf16.mxu0 %v231
    %295 = vmatpush1.bf16.msra.mxu0 %v230
    %296 = vmatprep.subr.bf16.mxu0 %v233
    %297 = vmatpush1.bf16.msra.mxu0 %v232
    %298 = vmatprep.subr.bf16.mxu0 %v235
    %299 = vmatpush1.bf16.msra.mxu0 %v234
    %300 = vmatprep.subr.bf16.mxu0 %v237
    %301 = vmatpush1.bf16.msra.mxu0 %v236
    %302 = vmatprep.subr.bf16.mxu0 %v239
    %303 = vmatpush1.bf16.msra.mxu0 %v238
    %304 = vmatprep.subr.bf16.mxu0 %v241
    %305 = vmatpush1.bf16.msra.mxu0 %v240
    %306 = vmatprep.subr.bf16.mxu0 %v243
    %307 = vmatpush1.bf16.msra.mxu0 %v242
    %308 = vmatprep.subr.bf16.mxu0 %v245
    %309 = vmatpush1.bf16.msra.mxu0 %v244
    %310 = vmatprep.subr.bf16.mxu0 %v247
    %311 = vmatpush1.bf16.msra.mxu0 %v246
    %312 = vmatprep.subr.bf16.mxu0 %v249
    %313 = vmatpush1.bf16.msra.mxu0 %v248
    %314 = vmatprep.subr.bf16.mxu0 %v251
    %315 = vmatpush1.bf16.msra.mxu0 %v250
    %316 = vmatprep.subr.bf16.mxu0 %v253
    %317 = vmatpush1.bf16.msra.mxu0 %v252
    %318 = vmatprep.subr.bf16.mxu0 %v255
    %319 = vmatpush1.bf16.msra.mxu0 %v254
    %320 = vmatprep.subr.bf16.mxu0 %v257
    %321 = vmatpush1.bf16.msra.mxu0 %v256
    %322 = vmatprep.subr.bf16.mxu0 %v259
    %323 = vmatpush1.bf16.msra.mxu0 %v258
    %324 = vmatprep.subr.bf16.mxu0 %v261
    %325 = vmatpush1.bf16.msra.mxu0 %v260
    %326 = vmatprep.mubr.bf16.mxu0 %v87
    %327 = vmatmul.mubr.bf16.gmra.mrb[0].mxu0 %v86
    %v328 = vpop.f32.mrb[0].mxu0
    %v329 = vadd.f32 0.0, %v328
    %v330 = vpop.f32.mrb[0].mxu0
    %v331 = vadd.f32 0.0, %v330
    %v332 = vpop.f32.mrb[0].mxu0
    %v333 = vadd.f32 0.0, %v332
    %v334 = vpop.f32.mrb[0].mxu0
    %v335 = vadd.f32 0.0, %v334
    %336 = vmatprep.mubr.bf16.mxu0 %v89
    %337 = vmatmul.mubr.bf16.gmra.mrb[0].mxu0 %v88
    %v338 = vpop.f32.mrb[0].mxu0
    %v339 = vadd.f32 0.0, %v338
    %v340 = vpop.f32.mrb[0].mxu0
    %v341 = vadd.f32 0.0, %v340
    %v342 = vpop.f32.mrb[0].mxu0
    %v343 = vadd.f32 0.0, %v342
    %v344 = vpop.f32.mrb[0].mxu0
    %v345 = vadd.f32 0.0, %v344
    %346 = vmatprep.mubr.bf16.mxu0 %v91
    %347 = vmatmul.mubr.bf16.gmra.mrb[0].mxu0 %v90
    %v348 = vpop.f32.mrb[0].mxu0
    %v349 = vadd.f32 0.0, %v348
    %v350 = vpop.f32.mrb[0].mxu0
    %v351 = vadd.f32 0.0, %v350
    %v352 = vpop.f32.mrb[0].mxu0
    %v353 = vadd.f32 0.0, %v352
    %v354 = vpop.f32.mrb[0].mxu0
    %v355 = vadd.f32 0.0, %v354
    %356 = vmatprep.mubr.bf16.mxu0 %v93
    %357 = vmatmul.mubr.bf16.gmra.mrb[0].mxu0 %v92
    %v358 = vpop.f32.mrb[0].mxu0
    %v359 = vadd.f32 0.0, %v358
    %v360 = vpop.f32.mrb[0].mxu0
    %v361 = vadd.f32 0.0, %v360
    %v362 = vpop.f32.mrb[0].mxu0
    %v363 = vadd.f32 0.0, %v362
    %v364 = vpop.f32.mrb[0].mxu0
    %v365 = vadd.f32 0.0, %v364
    %366 = vmatprep.mubr.bf16.mxu0 %v95
    %367 = vmatmul.mubr.bf16.gmra.mrb[0].mxu0 %v94
    %v368 = vpop.f32.mrb[0].mxu0
    %v369 = vadd.f32 0.0, %v368
    %v370 = vpop.f32.mrb[0].mxu0
    %v371 = vadd.f32 0.0, %v370
    %v372 = vpop.f32.mrb[0].mxu0
    %v373 = vadd.f32 0.0, %v372
    %v374 = vpop.f32.mrb[0].mxu0
    %v375 = vadd.f32 0.0, %v374
    %376 = vmatprep.mubr.bf16.mxu0 %v97
    %377 = vmatmul.mubr.bf16.gmra.mrb[0].mxu0 %v96
    %v378 = vpop.f32.mrb[0].mxu0
    %v379 = vadd.f32 0.0, %v378
    %v380 = vpop.f32.mrb[0].mxu0
    %v381 = vadd.f32 0.0, %v380
    %v382 = vpop.f32.mrb[0].mxu0
    %v383 = vadd.f32 0.0, %v382
    %v384 = vpop.f32.mrb[0].mxu0
    %v385 = vadd.f32 0.0, %v384
    %386 = vmatprep.mubr.bf16.mxu0 %v99
    %387 = vmatmul.mubr.bf16.gmra.mrb[0].mxu0 %v98
    %v388 = vpop.f32.mrb[0].mxu0
    %v389 = vadd.f32 0.0, %v388
    %v390 = vpop.f32.mrb[0].mxu0
    %v391 = vadd.f32 0.0, %v390
    %v392 = vpop.f32.mrb[0].mxu0
    %v393 = vadd.f32 0.0, %v392
    %v394 = vpop.f32.mrb[0].mxu0
    %v395 = vadd.f32 0.0, %v394
    %396 = vmatprep.mubr.bf16.mxu0 %v101
    %397 = vmatmul.mubr.bf16.gmra.mrb[0].mxu0 %v100
    %v398 = vpop.f32.mrb[0].mxu0
    %v399 = vadd.f32 0.0, %v398
    %v400 = vpop.f32.mrb[0].mxu0
    %v401 = vadd.f32 0.0, %v400
    %v402 = vpop.f32.mrb[0].mxu0
    %v403 = vadd.f32 0.0, %v402
    %v404 = vpop.f32.mrb[0].mxu0
    %v405 = vadd.f32 0.0, %v404
    %406 = vdwg.mxu0
    %v407 = vld [vmem:[%s7] sm:$0x1]
    %v408 = vmul.f32 %v329, %v329
    %v409 = vmul.f32 %v333, %v333
    %v410 = vmul.f32 %v339, %v339
    %v411 = vmul.f32 %v343, %v343
    %v412 = vmul.f32 %v349, %v349
    %v413 = vmul.f32 %v353, %v353
    %v414 = vmul.f32 %v359, %v359
    %v415 = vmul.f32 %v363, %v363
    %v416 = vmul.f32 %v369, %v369
    %v417 = vmul.f32 %v373, %v373
    %v418 = vmul.f32 %v379, %v379
    %v419 = vmul.f32 %v383, %v383
    %v420 = vmul.f32 %v389, %v389
    %v421 = vmul.f32 %v393, %v393
    %v422 = vmul.f32 %v399, %v399
    %v423 = vmul.f32 %v403, %v403
    %424 = vadd.xlane.f32.xlu0 %v408
    %v425 = vpop.xlane.xlu0 %424
    %426 = vadd.xlane.f32.xlu0 %v409
    %v427 = vpop.xlane.xlu0 %426
    %428 = vadd.xlane.f32.xlu0 %v410
    %v429 = vpop.xlane.xlu0 %428
    %430 = vadd.xlane.f32.xlu0 %v411
    %v431 = vpop.xlane.xlu0 %430
    %432 = vadd.xlane.f32.xlu0 %v412
    %v433 = vpop.xlane.xlu0 %432
    %434 = vadd.xlane.f32.xlu0 %v413
    %v435 = vpop.xlane.xlu0 %434
    %436 = vadd.xlane.f32.xlu0 %v414
    %v437 = vpop.xlane.xlu0 %436
    %438 = vadd.xlane.f32.xlu0 %v415
    %v439 = vpop.xlane.xlu0 %438
    %440 = vadd.xlane.f32.xlu0 %v416
    %v441 = vpop.xlane.xlu0 %440
    %442 = vadd.xlane.f32.xlu0 %v417
    %v443 = vpop.xlane.xlu0 %442
    %444 = vadd.xlane.f32.xlu0 %v418
    %v445 = vpop.xlane.xlu0 %444
    %446 = vadd.xlane.f32.xlu0 %v419
    %v447 = vpop.xlane.xlu0 %446
    %448 = vadd.xlane.f32.xlu0 %v420
    %v449 = vpop.xlane.xlu0 %448
    %450 = vadd.xlane.f32.xlu0 %v421
    %v451 = vpop.xlane.xlu0 %450
    %452 = vadd.xlane.f32.xlu0 %v422
    %v453 = vpop.xlane.xlu0 %452
    %454 = vadd.xlane.f32.xlu0 %v423
    %v455 = vpop.xlane.xlu0 %454
    %v456 = vrcp.pop 128.0
    %v457 = vmul.f32 %v425, %v456
    %v458 = vmul.f32 %v427, %v456
    %v459 = vmul.f32 %v429, %v456
    %v460 = vmul.f32 %v431, %v456
    %v461 = vmul.f32 %v433, %v456
    %v462 = vmul.f32 %v435, %v456
    %v463 = vmul.f32 %v437, %v456
    %v464 = vmul.f32 %v439, %v456
    %v465 = vmul.f32 %v441, %v456
    %v466 = vmul.f32 %v443, %v456
    %v467 = vmul.f32 %v445, %v456
    %v468 = vmul.f32 %v447, %v456
    %v469 = vmul.f32 %v449, %v456
    %v470 = vmul.f32 %v451, %v456
    %v471 = vmul.f32 %v453, %v456
    %v472 = vmul.f32 %v455, %v456
    %v473 = vadd.f32 %v457, 1e-06
    %v474 = vadd.f32 %v458, 1e-06
    %v475 = vadd.f32 %v459, 1e-06
    %v476 = vadd.f32 %v460, 1e-06
    %v477 = vadd.f32 %v461, 1e-06
    %v478 = vadd.f32 %v462, 1e-06
    %v479 = vadd.f32 %v463, 1e-06
    %v480 = vadd.f32 %v464, 1e-06
    %v481 = vadd.f32 %v465, 1e-06
    %v482 = vadd.f32 %v466, 1e-06
    %v483 = vadd.f32 %v467, 1e-06
    %v484 = vadd.f32 %v468, 1e-06
    %v485 = vadd.f32 %v469, 1e-06
    %v486 = vadd.f32 %v470, 1e-06
    %v487 = vadd.f32 %v471, 1e-06
    %v488 = vadd.f32 %v472, 1e-06
    %v489 = vrsqrt.pop %v473
    %v490 = vrsqrt.pop %v474
    %v491 = vrsqrt.pop %v475
    %v492 = vrsqrt.pop %v476
    %v493 = vrsqrt.pop %v477
    %v494 = vrsqrt.pop %v478
    %v495 = vrsqrt.pop %v479
    %v496 = vrsqrt.pop %v480
    %v497 = vrsqrt.pop %v481
    %v498 = vrsqrt.pop %v482
    %v499 = vrsqrt.pop %v483
    %v500 = vrsqrt.pop %v484
    %v501 = vrsqrt.pop %v485
    %v502 = vrsqrt.pop %v486
    %v503 = vrsqrt.pop %v487
    %v504 = vrsqrt.pop %v488
    %v505 = vmul.f32 %v329, %v489
    %v506 = vmul.f32 %v333, %v490
    %v507 = vmul.f32 %v339, %v491
    %v508 = vmul.f32 %v343, %v492
    %v509 = vmul.f32 %v349, %v493
    %v510 = vmul.f32 %v353, %v494
    %v511 = vmul.f32 %v359, %v495
    %v512 = vmul.f32 %v363, %v496
    %v513 = vmul.f32 %v369, %v497
    %v514 = vmul.f32 %v373, %v498
    %v515 = vmul.f32 %v379, %v499
    %v516 = vmul.f32 %v383, %v500
    %v517 = vmul.f32 %v389, %v501
    %v518 = vmul.f32 %v393, %v502
    %v519 = vmul.f32 %v399, %v503
    %v520 = vmul.f32 %v403, %v504
    %v522 = vlaneseq
    %v523 = vshrl.u32 %v522, 7
    %v524 = vsub.s32 0, %v523
    %v525 = vrot.slane %v407, %v524
    %v527 = vmul.f32 %v505, %v525
    %v528 = vmul.f32 %v506, %v525
    %v529 = vmul.f32 %v507, %v525
    %v530 = vmul.f32 %v508, %v525
    %v531 = vmul.f32 %v509, %v525
    %v532 = vmul.f32 %v510, %v525
    %v533 = vmul.f32 %v511, %v525
    %v534 = vmul.f32 %v512, %v525
    %v535 = vmul.f32 %v513, %v525
    %v536 = vmul.f32 %v514, %v525
    %v537 = vmul.f32 %v515, %v525
    %v538 = vmul.f32 %v516, %v525
    %v539 = vmul.f32 %v517, %v525
    %v540 = vmul.f32 %v518, %v525
    %v541 = vmul.f32 %v519, %v525
    %v542 = vmul.f32 %v520, %v525
    %v543 = vpack.c.bf16 %v528, %v527
    %v544 = vpack.c.bf16 %v530, %v529
    %v545 = vpack.c.bf16 %v532, %v531
    %v546 = vpack.c.bf16 %v534, %v533
    %v547 = vpack.c.bf16 %v536, %v535
    %v548 = vpack.c.bf16 %v538, %v537
    %v549 = vpack.c.bf16 %v540, %v539
    %v550 = vpack.c.bf16 %v542, %v541
    %v551 = vld [vmem:[%s9] sm:$0xff]
    %v552 = vld [vmem:[%s9 + $0x8] sm:$0xff]
    %v553 = vld [vmem:[%s9 + $0x10] sm:$0xff]
    %v554 = vld [vmem:[%s9 + $0x18] sm:$0xff]
    %v555 = vld [vmem:[%s9 + $0x20] sm:$0xff]
    %v556 = vld [vmem:[%s9 + $0x28] sm:$0xff]
    %v557 = vld [vmem:[%s9 + $0x30] sm:$0xff]
    %v558 = vld [vmem:[%s9 + $0x38] sm:$0xff]
    %v559 = vld [vmem:[%s9 + $0x40] sm:$0xff]
    %v560 = vld [vmem:[%s9 + $0x48] sm:$0xff]
    %v561 = vld [vmem:[%s9 + $0x50] sm:$0xff]
    %v562 = vld [vmem:[%s9 + $0x58] sm:$0xff]
    %v563 = vld [vmem:[%s9 + $0x60] sm:$0xff]
    %v564 = vld [vmem:[%s9 + $0x68] sm:$0xff]
    %v565 = vld [vmem:[%s9 + $0x70] sm:$0xff]
    %v566 = vld [vmem:[%s9 + $0x78] sm:$0xff]
    %v567 = vld [vmem:[%s10] sm:$0xff]
    %v568 = vld [vmem:[%s10 + $0x8] sm:$0xff]
    %v569 = vld [vmem:[%s10 + $0x10] sm:$0xff]
    %v570 = vld [vmem:[%s10 + $0x18] sm:$0xff]
    %v571 = vld [vmem:[%s10 + $0x20] sm:$0xff]
    %v572 = vld [vmem:[%s10 + $0x28] sm:$0xff]
    %v573 = vld [vmem:[%s10 + $0x30] sm:$0xff]
    %v574 = vld [vmem:[%s10 + $0x38] sm:$0xff]
    %v575 = vld [vmem:[%s10 + $0x40] sm:$0xff]
    %v576 = vld [vmem:[%s10 + $0x48] sm:$0xff]
    %v577 = vld [vmem:[%s10 + $0x50] sm:$0xff]
    %v578 = vld [vmem:[%s10 + $0x58] sm:$0xff]
    %v579 = vld [vmem:[%s10 + $0x60] sm:$0xff]
    %v580 = vld [vmem:[%s10 + $0x68] sm:$0xff]
    %v581 = vld [vmem:[%s10 + $0x70] sm:$0xff]
    %v582 = vld [vmem:[%s10 + $0x78] sm:$0xff]
    %v583 = vmul.f32 %v331, %v551
    %v584 = vmul.f32 %v335, %v552
    %v585 = vmul.f32 %v341, %v553
    %v586 = vmul.f32 %v345, %v554
    %v587 = vmul.f32 %v351, %v555
    %v588 = vmul.f32 %v355, %v556
    %v589 = vmul.f32 %v361, %v557
    %v590 = vmul.f32 %v365, %v558
    %v591 = vmul.f32 %v371, %v559
    %v592 = vmul.f32 %v375, %v560
    %v593 = vmul.f32 %v381, %v561
    %v594 = vmul.f32 %v385, %v562
    %v595 = vmul.f32 %v391, %v563
    %v596 = vmul.f32 %v395, %v564
    %v597 = vmul.f32 %v401, %v565
    %v598 = vmul.f32 %v405, %v566
    %615 = vrot.lane.b32.xlu0 %v567, 16
    %v616 = vpop.permute.xlu0 %615
    %617 = vrot.lane.b32.xlu0 %v568, 16
    %v618 = vpop.permute.xlu0 %617
    %619 = vrot.lane.b32.xlu0 %v569, 16
    %v620 = vpop.permute.xlu0 %619
    %621 = vrot.lane.b32.xlu0 %v570, 16
    %v622 = vpop.permute.xlu0 %621
    %623 = vrot.lane.b32.xlu0 %v571, 16
    %v624 = vpop.permute.xlu0 %623
    %625 = vrot.lane.b32.xlu0 %v572, 16
    %v626 = vpop.permute.xlu0 %625
    %627 = vrot.lane.b32.xlu0 %v573, 16
    %v628 = vpop.permute.xlu0 %627
    %629 = vrot.lane.b32.xlu0 %v574, 16
    %v630 = vpop.permute.xlu0 %629
    %631 = vrot.lane.b32.xlu0 %v575, 16
    %v632 = vpop.permute.xlu0 %631
    %633 = vrot.lane.b32.xlu0 %v576, 16
    %v634 = vpop.permute.xlu0 %633
    %635 = vrot.lane.b32.xlu0 %v577, 16
    %v636 = vpop.permute.xlu0 %635
    %637 = vrot.lane.b32.xlu0 %v578, 16
    %v638 = vpop.permute.xlu0 %637
    %639 = vrot.lane.b32.xlu0 %v579, 16
    %v640 = vpop.permute.xlu0 %639
    %641 = vrot.lane.b32.xlu0 %v580, 16
    %v642 = vpop.permute.xlu0 %641
    %643 = vrot.lane.b32.xlu0 %v581, 16
    %v644 = vpop.permute.xlu0 %643
    %645 = vrot.lane.b32.xlu0 %v582, 16
    %v646 = vpop.permute.xlu0 %645
    %v663 = vmul.f32 %v331, %v616
    %v664 = vmul.f32 %v335, %v618
    %v665 = vmul.f32 %v341, %v620
    %v666 = vmul.f32 %v345, %v622
    %v667 = vmul.f32 %v351, %v624
    %v668 = vmul.f32 %v355, %v626
    %v669 = vmul.f32 %v361, %v628
    %v670 = vmul.f32 %v365, %v630
    %v671 = vmul.f32 %v371, %v632
    %v672 = vmul.f32 %v375, %v634
    %v673 = vmul.f32 %v381, %v636
    %v674 = vmul.f32 %v385, %v638
    %v675 = vmul.f32 %v391, %v640
    %v676 = vmul.f32 %v395, %v642
    %v677 = vmul.f32 %v401, %v644
    %v678 = vmul.f32 %v405, %v646
    %695 = vrot.lane.b32.xlu0 %v663, 112
    %v696 = vpop.permute.xlu0 %695
    %697 = vrot.lane.b32.xlu0 %v664, 112
    %v698 = vpop.permute.xlu0 %697
    %699 = vrot.lane.b32.xlu0 %v665, 112
    %v700 = vpop.permute.xlu0 %699
    %701 = vrot.lane.b32.xlu0 %v666, 112
    %v702 = vpop.permute.xlu0 %701
    %703 = vrot.lane.b32.xlu0 %v667, 112
    %v704 = vpop.permute.xlu0 %703
    %705 = vrot.lane.b32.xlu0 %v668, 112
    %v706 = vpop.permute.xlu0 %705
    %707 = vrot.lane.b32.xlu0 %v669, 112
    %v708 = vpop.permute.xlu0 %707
    %709 = vrot.lane.b32.xlu0 %v670, 112
    %v710 = vpop.permute.xlu0 %709
    %711 = vrot.lane.b32.xlu0 %v671, 112
    %v712 = vpop.permute.xlu0 %711
    %713 = vrot.lane.b32.xlu0 %v672, 112
    %v714 = vpop.permute.xlu0 %713
    %715 = vrot.lane.b32.xlu0 %v673, 112
    %v716 = vpop.permute.xlu0 %715
    %717 = vrot.lane.b32.xlu0 %v674, 112
    %v718 = vpop.permute.xlu0 %717
    %719 = vrot.lane.b32.xlu0 %v675, 112
    %v720 = vpop.permute.xlu0 %719
    %721 = vrot.lane.b32.xlu0 %v676, 112
    %v722 = vpop.permute.xlu0 %721
    %723 = vrot.lane.b32.xlu0 %v677, 112
    %v724 = vpop.permute.xlu0 %723
    %725 = vrot.lane.b32.xlu0 %v678, 112
    %v726 = vpop.permute.xlu0 %725
    %v743 = vsub.f32 %v583, %v696
    %v744 = vsub.f32 %v584, %v698
    %v745 = vsub.f32 %v585, %v700
    %v746 = vsub.f32 %v586, %v702
    %v747 = vsub.f32 %v587, %v704
    %v748 = vsub.f32 %v588, %v706
    %v749 = vsub.f32 %v589, %v708
    %v750 = vsub.f32 %v590, %v710
    %v751 = vsub.f32 %v591, %v712
    %v752 = vsub.f32 %v592, %v714
    %v753 = vsub.f32 %v593, %v716
    %v754 = vsub.f32 %v594, %v718
    %v755 = vsub.f32 %v595, %v720
    %v756 = vsub.f32 %v596, %v722
    %v757 = vsub.f32 %v597, %v724
    %v758 = vsub.f32 %v598, %v726
    %v759 = vpack.c.bf16 %v744, %v743
    %v760 = vpack.c.bf16 %v746, %v745
    %v761 = vpack.c.bf16 %v748, %v747
    %v762 = vpack.c.bf16 %v750, %v749
    %v763 = vpack.c.bf16 %v752, %v751
    %v764 = vpack.c.bf16 %v754, %v753
    %v765 = vpack.c.bf16 %v756, %v755
    %v766 = vpack.c.bf16 %v758, %v757
    %783 = vrot.lane.b32.xlu0 %v551, 16
    %v784 = vpop.permute.xlu0 %783
    %785 = vrot.lane.b32.xlu0 %v552, 16
    %v786 = vpop.permute.xlu0 %785
    %787 = vrot.lane.b32.xlu0 %v553, 16
    %v788 = vpop.permute.xlu0 %787
    %789 = vrot.lane.b32.xlu0 %v554, 16
    %v790 = vpop.permute.xlu0 %789
    %791 = vrot.lane.b32.xlu0 %v555, 16
    %v792 = vpop.permute.xlu0 %791
    %793 = vrot.lane.b32.xlu0 %v556, 16
    %v794 = vpop.permute.xlu0 %793
    %795 = vrot.lane.b32.xlu0 %v557, 16
    %v796 = vpop.permute.xlu0 %795
    %797 = vrot.lane.b32.xlu0 %v558, 16
    %v798 = vpop.permute.xlu0 %797
    %799 = vrot.lane.b32.xlu0 %v559, 16
    %v800 = vpop.permute.xlu0 %799
    %801 = vrot.lane.b32.xlu0 %v560, 16
    %v802 = vpop.permute.xlu0 %801
    %803 = vrot.lane.b32.xlu0 %v561, 16
    %v804 = vpop.permute.xlu0 %803
    %805 = vrot.lane.b32.xlu0 %v562, 16
    %v806 = vpop.permute.xlu0 %805
    %807 = vrot.lane.b32.xlu0 %v563, 16
    %v808 = vpop.permute.xlu0 %807
    %809 = vrot.lane.b32.xlu0 %v564, 16
    %v810 = vpop.permute.xlu0 %809
    %811 = vrot.lane.b32.xlu0 %v565, 16
    %v812 = vpop.permute.xlu0 %811
    %813 = vrot.lane.b32.xlu0 %v566, 16
    %v814 = vpop.permute.xlu0 %813
    %v831 = vmul.f32 %v331, %v784
    %v832 = vmul.f32 %v335, %v786
    %v833 = vmul.f32 %v341, %v788
    %v834 = vmul.f32 %v345, %v790
    %v835 = vmul.f32 %v351, %v792
    %v836 = vmul.f32 %v355, %v794
    %v837 = vmul.f32 %v361, %v796
    %v838 = vmul.f32 %v365, %v798
    %v839 = vmul.f32 %v371, %v800
    %v840 = vmul.f32 %v375, %v802
    %v841 = vmul.f32 %v381, %v804
    %v842 = vmul.f32 %v385, %v806
    %v843 = vmul.f32 %v391, %v808
    %v844 = vmul.f32 %v395, %v810
    %v845 = vmul.f32 %v401, %v812
    %v846 = vmul.f32 %v405, %v814
    %v847 = vmul.f32 %v331, %v567
    %v848 = vmul.f32 %v335, %v568
    %v849 = vmul.f32 %v341, %v569
    %v850 = vmul.f32 %v345, %v570
    %v851 = vmul.f32 %v351, %v571
    %v852 = vmul.f32 %v355, %v572
    %v853 = vmul.f32 %v361, %v573
    %v854 = vmul.f32 %v365, %v574
    %v855 = vmul.f32 %v371, %v575
    %v856 = vmul.f32 %v375, %v576
    %v857 = vmul.f32 %v381, %v577
    %v858 = vmul.f32 %v385, %v578
    %v859 = vmul.f32 %v391, %v579
    %v860 = vmul.f32 %v395, %v580
    %v861 = vmul.f32 %v401, %v581
    %v862 = vmul.f32 %v405, %v582
    %879 = vrot.lane.b32.xlu0 %v847, 16
    %v880 = vpop.permute.xlu0 %879
    %881 = vrot.lane.b32.xlu0 %v848, 16
    %v882 = vpop.permute.xlu0 %881
    %883 = vrot.lane.b32.xlu0 %v849, 16
    %v884 = vpop.permute.xlu0 %883
    %885 = vrot.lane.b32.xlu0 %v850, 16
    %v886 = vpop.permute.xlu0 %885
    %887 = vrot.lane.b32.xlu0 %v851, 16
    %v888 = vpop.permute.xlu0 %887
    %889 = vrot.lane.b32.xlu0 %v852, 16
    %v890 = vpop.permute.xlu0 %889
    %891 = vrot.lane.b32.xlu0 %v853, 16
    %v892 = vpop.permute.xlu0 %891
    %893 = vrot.lane.b32.xlu0 %v854, 16
    %v894 = vpop.permute.xlu0 %893
    %895 = vrot.lane.b32.xlu0 %v855, 16
    %v896 = vpop.permute.xlu0 %895
    %897 = vrot.lane.b32.xlu0 %v856, 16
    %v898 = vpop.permute.xlu0 %897
    %899 = vrot.lane.b32.xlu0 %v857, 16
    %v900 = vpop.permute.xlu0 %899
    %901 = vrot.lane.b32.xlu0 %v858, 16
    %v902 = vpop.permute.xlu0 %901
    %903 = vrot.lane.b32.xlu0 %v859, 16
    %v904 = vpop.permute.xlu0 %903
    %905 = vrot.lane.b32.xlu0 %v860, 16
    %v906 = vpop.permute.xlu0 %905
    %907 = vrot.lane.b32.xlu0 %v861, 16
    %v908 = vpop.permute.xlu0 %907
    %909 = vrot.lane.b32.xlu0 %v862, 16
    %v910 = vpop.permute.xlu0 %909
    %v927 = vadd.f32 %v831, %v880
    %v928 = vadd.f32 %v832, %v882
    %v929 = vadd.f32 %v833, %v884
    %v930 = vadd.f32 %v834, %v886
    %v931 = vadd.f32 %v835, %v888
    %v932 = vadd.f32 %v836, %v890
    %v933 = vadd.f32 %v837, %v892
    %v934 = vadd.f32 %v838, %v894
    %v935 = vadd.f32 %v839, %v896
    %v936 = vadd.f32 %v840, %v898
    %v937 = vadd.f32 %v841, %v900
    %v938 = vadd.f32 %v842, %v902
    %v939 = vadd.f32 %v843, %v904
    %v940 = vadd.f32 %v844, %v906
    %v941 = vadd.f32 %v845, %v908
    %v942 = vadd.f32 %v846, %v910
    %v943 = vpack.c.bf16 %v928, %v927
    %v944 = vpack.c.bf16 %v930, %v929
    %v945 = vpack.c.bf16 %v932, %v931
    %v946 = vpack.c.bf16 %v934, %v933
    %v947 = vpack.c.bf16 %v936, %v935
    %v948 = vpack.c.bf16 %v938, %v937
    %v949 = vpack.c.bf16 %v940, %v939
    %v950 = vpack.c.bf16 %v942, %v941
    %v951 = vld [vmem:[%s1] sm:$0xf]
    %v952 = vld [vmem:[%s1 + $0x4] sm:$0xf]
    %v953 = vld [vmem:[%s1 + $0x8] sm:$0xf]
    %v954 = vld [vmem:[%s1 + $0xc] sm:$0xf]
    %v955 = vld [vmem:[%s1 + $0x10] sm:$0xf]
    %v956 = vld [vmem:[%s1 + $0x14] sm:$0xf]
    %v957 = vld [vmem:[%s1 + $0x18] sm:$0xf]
    %v958 = vld [vmem:[%s1 + $0x1c] sm:$0xf]
    %v959 = vld [vmem:[%s1 + $0x20] sm:$0xf]
    %v960 = vld [vmem:[%s1 + $0x24] sm:$0xf]
    %v961 = vld [vmem:[%s1 + $0x28] sm:$0xf]
    %v962 = vld [vmem:[%s1 + $0x2c] sm:$0xf]
    %v963 = vld [vmem:[%s1 + $0x30] sm:$0xf]
    %v964 = vld [vmem:[%s1 + $0x34] sm:$0xf]
    %v965 = vld [vmem:[%s1 + $0x38] sm:$0xf]
    %v966 = vld [vmem:[%s1 + $0x3c] sm:$0xf]
    %v967 = vld [vmem:[%s1 + $0x40] sm:$0xf]
    %v968 = vld [vmem:[%s1 + $0x44] sm:$0xf]
    %v969 = vld [vmem:[%s1 + $0x48] sm:$0xf]
    %v970 = vld [vmem:[%s1 + $0x4c] sm:$0xf]
    %v971 = vld [vmem:[%s1 + $0x50] sm:$0xf]
    %v972 = vld [vmem:[%s1 + $0x54] sm:$0xf]
    %v973 = vld [vmem:[%s1 + $0x58] sm:$0xf]
    %v974 = vld [vmem:[%s1 + $0x5c] sm:$0xf]
    %v975 = vld [vmem:[%s1 + $0x60] sm:$0xf]
    %v976 = vld [vmem:[%s1 + $0x64] sm:$0xf]
    %v977 = vld [vmem:[%s1 + $0x68] sm:$0xf]
    %v978 = vld [vmem:[%s1 + $0x6c] sm:$0xf]
    %v979 = vld [vmem:[%s1 + $0x70] sm:$0xf]
    %v980 = vld [vmem:[%s1 + $0x74] sm:$0xf]
    %v981 = vld [vmem:[%s1 + $0x78] sm:$0xf]
    %v982 = vld [vmem:[%s1 + $0x7c] sm:$0xf]
    %v1015 = vunpack.c.l.b16 %v951
    %v1016 = vunpack.c.l.b16 %v952
    %v1017 = vunpack.c.l.b16 %v953
    %v1018 = vunpack.c.l.b16 %v954
    %v1019 = vunpack.c.l.b16 %v955
    %v1020 = vunpack.c.l.b16 %v956
    %v1021 = vunpack.c.l.b16 %v957
    %v1022 = vunpack.c.l.b16 %v958
    %v1023 = vunpack.c.l.b16 %v959
    %v1024 = vunpack.c.l.b16 %v960
    %v1025 = vunpack.c.l.b16 %v961
    %v1026 = vunpack.c.l.b16 %v962
    %v1027 = vunpack.c.l.b16 %v963
    %v1028 = vunpack.c.l.b16 %v964
    %v1029 = vunpack.c.l.b16 %v965
    %v1030 = vunpack.c.l.b16 %v966
    %v1031 = vunpack.c.l.b16 %v967
    %v1032 = vunpack.c.l.b16 %v968
    %v1033 = vunpack.c.l.b16 %v969
    %v1034 = vunpack.c.l.b16 %v970
    %v1035 = vunpack.c.l.b16 %v971
    %v1036 = vunpack.c.l.b16 %v972
    %v1037 = vunpack.c.l.b16 %v973
    %v1038 = vunpack.c.l.b16 %v974
    %v1039 = vunpack.c.l.b16 %v975
    %v1040 = vunpack.c.l.b16 %v976
    %v1041 = vunpack.c.l.b16 %v977
    %v1042 = vunpack.c.l.b16 %v978
    %v1043 = vunpack.c.l.b16 %v979
    %v1044 = vunpack.c.l.b16 %v980
    %v1045 = vunpack.c.l.b16 %v981
    %v1046 = vunpack.c.l.b16 %v982
    %v1047 = vpack.c.b16 %v1016, %v1015
    %v1048 = vpack.c.b16 %v1018, %v1017
    %v1049 = vpack.c.b16 %v1020, %v1019
    %v1050 = vpack.c.b16 %v1022, %v1021
    %v1051 = vpack.c.b16 %v1024, %v1023
    %v1052 = vpack.c.b16 %v1026, %v1025
    %v1053 = vpack.c.b16 %v1028, %v1027
    %v1054 = vpack.c.b16 %v1030, %v1029
    %v1055 = vpack.c.b16 %v1032, %v1031
    %v1056 = vpack.c.b16 %v1034, %v1033
    %v1057 = vpack.c.b16 %v1036, %v1035
    %v1058 = vpack.c.b16 %v1038, %v1037
    %v1059 = vpack.c.b16 %v1040, %v1039
    %v1060 = vpack.c.b16 %v1042, %v1041
    %v1061 = vpack.c.b16 %v1044, %v1043
    %v1062 = vpack.c.b16 %v1046, %v1045
    %1079 = vmatprep.subr.bf16.mxu0 0
    %1080 = vmatpush1.bf16.msra.mxu0 %v1047
    %1081 = vmatprep.subr.bf16.mxu0 0
    %1082 = vmatpush1.bf16.msra.mxu0 %v1048
    %1083 = vmatprep.subr.bf16.mxu0 0
    %1084 = vmatpush1.bf16.msra.mxu0 %v1049
    %1085 = vmatprep.subr.bf16.mxu0 0
    %1086 = vmatpush1.bf16.msra.mxu0 %v1050
    %1087 = vmatprep.subr.bf16.mxu0 0
    %1088 = vmatpush1.bf16.msra.mxu0 %v1051
    %1089 = vmatprep.subr.bf16.mxu0 0
    %1090 = vmatpush1.bf16.msra.mxu0 %v1052
    %1091 = vmatprep.subr.bf16.mxu0 0
    %1092 = vmatpush1.bf16.msra.mxu0 %v1053
    %1093 = vmatprep.subr.bf16.mxu0 0
    %1094 = vmatpush1.bf16.msra.mxu0 %v1054
    %1095 = vmatprep.subr.bf16.mxu0 0
    %1096 = vmatpush1.bf16.msra.mxu0 %v1055
    %1097 = vmatprep.subr.bf16.mxu0 0
    %1098 = vmatpush1.bf16.msra.mxu0 %v1056
    %1099 = vmatprep.subr.bf16.mxu0 0
    %1100 = vmatpush1.bf16.msra.mxu0 %v1057
    %1101 = vmatprep.subr.bf16.mxu0 0
    %1102 = vmatpush1.bf16.msra.mxu0 %v1058
    %1103 = vmatprep.subr.bf16.mxu0 0
    %1104 = vmatpush1.bf16.msra.mxu0 %v1059
    %1105 = vmatprep.subr.bf16.mxu0 0
    %1106 = vmatpush1.bf16.msra.mxu0 %v1060
    %1107 = vmatprep.subr.bf16.mxu0 0
    %1108 = vmatpush1.bf16.msra.mxu0 %v1061
    %1109 = vmatprep.subr.bf16.mxu0 0
    %1110 = vmatpush1.bf16.msra.mxu0 %v1062
    %1111 = vmatprep.mubr.bf16.mxu0 %v87
    %1112 = vmatmul.mubr.bf16.gmra.mrb[0].mxu0 %v86
    %v1113 = vpop.f32.mrb[0].mxu0
    %v1114 = vadd.f32 0.0, %v1113
    %v1115 = vpop.f32.mrb[0].mxu0
    %v1116 = vpop.f32.mrb[0].mxu0
    %v1117 = vadd.f32 0.0, %v1116
    %v1118 = vpop.f32.mrb[0].mxu0
    %1119 = vmatprep.mubr.bf16.mxu0 %v89
    %1120 = vmatmul.mubr.bf16.gmra.mrb[0].mxu0 %v88
    %v1121 = vpop.f32.mrb[0].mxu0
    %v1122 = vadd.f32 0.0, %v1121
    %v1123 = vpop.f32.mrb[0].mxu0
    %v1124 = vpop.f32.mrb[0].mxu0
    %v1125 = vadd.f32 0.0, %v1124
    %v1126 = vpop.f32.mrb[0].mxu0
    %1127 = vmatprep.mubr.bf16.mxu0 %v91
    %1128 = vmatmul.mubr.bf16.gmra.mrb[0].mxu0 %v90
    %v1129 = vpop.f32.mrb[0].mxu0
    %v1130 = vadd.f32 0.0, %v1129
    %v1131 = vpop.f32.mrb[0].mxu0
    %v1132 = vpop.f32.mrb[0].mxu0
    %v1133 = vadd.f32 0.0, %v1132
    %v1134 = vpop.f32.mrb[0].mxu0
    %1135 = vmatprep.mubr.bf16.mxu0 %v93
    %1136 = vmatmul.mubr.bf16.gmra.mrb[0].mxu0 %v92
    %v1137 = vpop.f32.mrb[0].mxu0
    %v1138 = vadd.f32 0.0, %v1137
    %v1139 = vpop.f32.mrb[0].mxu0
    %v1140 = vpop.f32.mrb[0].mxu0
    %v1141 = vadd.f32 0.0, %v1140
    %v1142 = vpop.f32.mrb[0].mxu0
    %1143 = vmatprep.mubr.bf16.mxu0 %v95
    %1144 = vmatmul.mubr.bf16.gmra.mrb[0].mxu0 %v94
    %v1145 = vpop.f32.mrb[0].mxu0
    %v1146 = vadd.f32 0.0, %v1145
    %v1147 = vpop.f32.mrb[0].mxu0
    %v1148 = vpop.f32.mrb[0].mxu0
    %v1149 = vadd.f32 0.0, %v1148
    %v1150 = vpop.f32.mrb[0].mxu0
    %1151 = vmatprep.mubr.bf16.mxu0 %v97
    %1152 = vmatmul.mubr.bf16.gmra.mrb[0].mxu0 %v96
    %v1153 = vpop.f32.mrb[0].mxu0
    %v1154 = vadd.f32 0.0, %v1153
    %v1155 = vpop.f32.mrb[0].mxu0
    %v1156 = vpop.f32.mrb[0].mxu0
    %v1157 = vadd.f32 0.0, %v1156
    %v1158 = vpop.f32.mrb[0].mxu0
    %1159 = vmatprep.mubr.bf16.mxu0 %v99
    %1160 = vmatmul.mubr.bf16.gmra.mrb[0].mxu0 %v98
    %v1161 = vpop.f32.mrb[0].mxu0
    %v1162 = vadd.f32 0.0, %v1161
    %v1163 = vpop.f32.mrb[0].mxu0
    %v1164 = vpop.f32.mrb[0].mxu0
    %v1165 = vadd.f32 0.0, %v1164
    %v1166 = vpop.f32.mrb[0].mxu0
    %1167 = vmatprep.mubr.bf16.mxu0 %v101
    %1168 = vmatmul.mubr.bf16.gmra.mrb[0].mxu0 %v100
    %v1169 = vpop.f32.mrb[0].mxu0
    %v1170 = vadd.f32 0.0, %v1169
    %v1171 = vpop.f32.mrb[0].mxu0
    %v1172 = vpop.f32.mrb[0].mxu0
    %v1173 = vadd.f32 0.0, %v1172
    %v1174 = vpop.f32.mrb[0].mxu0
    %1175 = vdwg.mxu0
    %v1176 = vld [vmem:[%s2] sm:$0x1]
    %v1177 = vmul.f32 %v1114, %v1114
    %v1178 = vmul.f32 %v1117, %v1117
    %v1179 = vmul.f32 %v1122, %v1122
    %v1180 = vmul.f32 %v1125, %v1125
    %v1181 = vmul.f32 %v1130, %v1130
    %v1182 = vmul.f32 %v1133, %v1133
    %v1183 = vmul.f32 %v1138, %v1138
    %v1184 = vmul.f32 %v1141, %v1141
    %v1185 = vmul.f32 %v1146, %v1146
    %v1186 = vmul.f32 %v1149, %v1149
    %v1187 = vmul.f32 %v1154, %v1154
    %v1188 = vmul.f32 %v1157, %v1157
    %v1189 = vmul.f32 %v1162, %v1162
    %v1190 = vmul.f32 %v1165, %v1165
    %v1191 = vmul.f32 %v1170, %v1170
    %v1192 = vmul.f32 %v1173, %v1173
    %1193 = vadd.xlane.f32.xlu0 %v1177
    %v1194 = vpop.xlane.xlu0 %1193
    %1195 = vadd.xlane.f32.xlu0 %v1178
    %v1196 = vpop.xlane.xlu0 %1195
    %1197 = vadd.xlane.f32.xlu0 %v1179
    %v1198 = vpop.xlane.xlu0 %1197
    %1199 = vadd.xlane.f32.xlu0 %v1180
    %v1200 = vpop.xlane.xlu0 %1199
    %1201 = vadd.xlane.f32.xlu0 %v1181
    %v1202 = vpop.xlane.xlu0 %1201
    %1203 = vadd.xlane.f32.xlu0 %v1182
    %v1204 = vpop.xlane.xlu0 %1203
    %1205 = vadd.xlane.f32.xlu0 %v1183
    %v1206 = vpop.xlane.xlu0 %1205
    %1207 = vadd.xlane.f32.xlu0 %v1184
    %v1208 = vpop.xlane.xlu0 %1207
    %1209 = vadd.xlane.f32.xlu0 %v1185
    %v1210 = vpop.xlane.xlu0 %1209
    %1211 = vadd.xlane.f32.xlu0 %v1186
    %v1212 = vpop.xlane.xlu0 %1211
    %1213 = vadd.xlane.f32.xlu0 %v1187
    %v1214 = vpop.xlane.xlu0 %1213
    %1215 = vadd.xlane.f32.xlu0 %v1188
    %v1216 = vpop.xlane.xlu0 %1215
    %1217 = vadd.xlane.f32.xlu0 %v1189
    %v1218 = vpop.xlane.xlu0 %1217
    %1219 = vadd.xlane.f32.xlu0 %v1190
    %v1220 = vpop.xlane.xlu0 %1219
    %1221 = vadd.xlane.f32.xlu0 %v1191
    %v1222 = vpop.xlane.xlu0 %1221
    %1223 = vadd.xlane.f32.xlu0 %v1192
    %v1224 = vpop.xlane.xlu0 %1223
    %v1225 = vmul.f32 %v1194, %v456
    %v1226 = vmul.f32 %v1196, %v456
    %v1227 = vmul.f32 %v1198, %v456
    %v1228 = vmul.f32 %v1200, %v456
    %v1229 = vmul.f32 %v1202, %v456
    %v1230 = vmul.f32 %v1204, %v456
    %v1231 = vmul.f32 %v1206, %v456
    %v1232 = vmul.f32 %v1208, %v456
    %v1233 = vmul.f32 %v1210, %v456
    %v1234 = vmul.f32 %v1212, %v456
    %v1235 = vmul.f32 %v1214, %v456
    %v1236 = vmul.f32 %v1216, %v456
    %v1237 = vmul.f32 %v1218, %v456
    %v1238 = vmul.f32 %v1220, %v456
    %v1239 = vmul.f32 %v1222, %v456
    %v1240 = vmul.f32 %v1224, %v456
    %v1241 = vadd.f32 %v1225, 1e-06
    %v1242 = vadd.f32 %v1226, 1e-06
    %v1243 = vadd.f32 %v1227, 1e-06
    %v1244 = vadd.f32 %v1228, 1e-06
    %v1245 = vadd.f32 %v1229, 1e-06
    %v1246 = vadd.f32 %v1230, 1e-06
    %v1247 = vadd.f32 %v1231, 1e-06
    %v1248 = vadd.f32 %v1232, 1e-06
    %v1249 = vadd.f32 %v1233, 1e-06
    %v1250 = vadd.f32 %v1234, 1e-06
    %v1251 = vadd.f32 %v1235, 1e-06
    %v1252 = vadd.f32 %v1236, 1e-06
    %v1253 = vadd.f32 %v1237, 1e-06
    %v1254 = vadd.f32 %v1238, 1e-06
    %v1255 = vadd.f32 %v1239, 1e-06
    %v1256 = vadd.f32 %v1240, 1e-06
    %v1257 = vrsqrt.pop %v1241
    %v1258 = vrsqrt.pop %v1242
    %v1259 = vrsqrt.pop %v1243
    %v1260 = vrsqrt.pop %v1244
    %v1261 = vrsqrt.pop %v1245
    %v1262 = vrsqrt.pop %v1246
    %v1263 = vrsqrt.pop %v1247
    %v1264 = vrsqrt.pop %v1248
    %v1265 = vrsqrt.pop %v1249
    %v1266 = vrsqrt.pop %v1250
    %v1267 = vrsqrt.pop %v1251
    %v1268 = vrsqrt.pop %v1252
    %v1269 = vrsqrt.pop %v1253
    %v1270 = vrsqrt.pop %v1254
    %v1271 = vrsqrt.pop %v1255
    %v1272 = vrsqrt.pop %v1256
    %v1273 = vmul.f32 %v1114, %v1257
    %v1274 = vmul.f32 %v1117, %v1258
    %v1275 = vmul.f32 %v1122, %v1259
    %v1276 = vmul.f32 %v1125, %v1260
    %v1277 = vmul.f32 %v1130, %v1261
    %v1278 = vmul.f32 %v1133, %v1262
    %v1279 = vmul.f32 %v1138, %v1263
    %v1280 = vmul.f32 %v1141, %v1264
    %v1281 = vmul.f32 %v1146, %v1265
    %v1282 = vmul.f32 %v1149, %v1266
    %v1283 = vmul.f32 %v1154, %v1267
    %v1284 = vmul.f32 %v1157, %v1268
    %v1285 = vmul.f32 %v1162, %v1269
    %v1286 = vmul.f32 %v1165, %v1270
    %v1287 = vmul.f32 %v1170, %v1271
    %v1288 = vmul.f32 %v1173, %v1272
    %v1290 = vlaneseq
    %v1291 = vshrl.u32 %v1290, 7
    %v1292 = vsub.s32 0, %v1291
    %v1293 = vrot.slane %v1176, %v1292
    %v1295 = vmul.f32 %v1273, %v1293
    %v1296 = vmul.f32 %v1274, %v1293
    %v1297 = vmul.f32 %v1275, %v1293
    %v1298 = vmul.f32 %v1276, %v1293
    %v1299 = vmul.f32 %v1277, %v1293
    %v1300 = vmul.f32 %v1278, %v1293
    %v1301 = vmul.f32 %v1279, %v1293
    %v1302 = vmul.f32 %v1280, %v1293
    %v1303 = vmul.f32 %v1281, %v1293
    %v1304 = vmul.f32 %v1282, %v1293
    %v1305 = vmul.f32 %v1283, %v1293
    %v1306 = vmul.f32 %v1284, %v1293
    %v1307 = vmul.f32 %v1285, %v1293
    %v1308 = vmul.f32 %v1286, %v1293
    %v1309 = vmul.f32 %v1287, %v1293
    %v1310 = vmul.f32 %v1288, %v1293
    %v1311 = vpack.c.bf16 %v1296, %v1295
    %v1312 = vpack.c.bf16 %v1298, %v1297
    %v1313 = vpack.c.bf16 %v1300, %v1299
    %v1314 = vpack.c.bf16 %v1302, %v1301
    %v1315 = vpack.c.bf16 %v1304, %v1303
    %v1316 = vpack.c.bf16 %v1306, %v1305
    %v1317 = vpack.c.bf16 %v1308, %v1307
    %v1318 = vpack.c.bf16 %v1310, %v1309
    %v1319 = vld [vmem:[#allocation2] sm:$0xff]
    %v1320 = vld [vmem:[#allocation2 + $0x8] sm:$0xff]
    %v1321 = vld [vmem:[#allocation2 + $0x10] sm:$0xff]
    %v1322 = vld [vmem:[#allocation2 + $0x18] sm:$0xff]
    %v1323 = vld [vmem:[#allocation2 + $0x20] sm:$0xff]
    %v1324 = vld [vmem:[#allocation2 + $0x28] sm:$0xff]
    %v1325 = vld [vmem:[#allocation2 + $0x30] sm:$0xff]
    %v1326 = vld [vmem:[#allocation2 + $0x38] sm:$0xff]
    %v1327 = vld [vmem:[#allocation2 + $0x40] sm:$0xff]
    %v1328 = vld [vmem:[#allocation2 + $0x48] sm:$0xff]
    %v1329 = vld [vmem:[#allocation2 + $0x50] sm:$0xff]
    %v1330 = vld [vmem:[#allocation2 + $0x58] sm:$0xff]
    %v1331 = vld [vmem:[#allocation2 + $0x60] sm:$0xff]
    %v1332 = vld [vmem:[#allocation2 + $0x68] sm:$0xff]
    %v1333 = vld [vmem:[#allocation2 + $0x70] sm:$0xff]
    %v1334 = vld [vmem:[#allocation2 + $0x78] sm:$0xff]
    %v1335 = vld [vmem:[#allocation2 + $0x80] sm:$0xff]
    %v1336 = vld [vmem:[#allocation2 + $0x88] sm:$0xff]
    %v1337 = vld [vmem:[#allocation2 + $0x90] sm:$0xff]
    %v1338 = vld [vmem:[#allocation2 + $0x98] sm:$0xff]
    %v1339 = vld [vmem:[#allocation2 + $0xa0] sm:$0xff]
    %v1340 = vld [vmem:[#allocation2 + $0xa8] sm:$0xff]
    %v1341 = vld [vmem:[#allocation2 + $0xb0] sm:$0xff]
    %v1342 = vld [vmem:[#allocation2 + $0xb8] sm:$0xff]
    %v1343 = vld [vmem:[#allocation2 + $0xc0] sm:$0xff]
    %v1344 = vld [vmem:[#allocation2 + $0xc8] sm:$0xff]
    %v1345 = vld [vmem:[#allocation2 + $0xd0] sm:$0xff]
    %v1346 = vld [vmem:[#allocation2 + $0xd8] sm:$0xff]
    %v1347 = vld [vmem:[#allocation2 + $0xe0] sm:$0xff]
    %v1348 = vld [vmem:[#allocation2 + $0xe8] sm:$0xff]
    %v1349 = vld [vmem:[#allocation2 + $0xf0] sm:$0xff]
    %v1350 = vld [vmem:[#allocation2 + $0xf8] sm:$0xff]
    %v1383 = vunpack.c.l.b16 %v1319
    %v1384 = vunpack.c.h.b16 %v1319
    %v1385 = vunpack.c.l.b16 %v1320
    %v1386 = vunpack.c.h.b16 %v1320
    %v1387 = vunpack.c.l.b16 %v1321
    %v1388 = vunpack.c.h.b16 %v1321
    %v1389 = vunpack.c.l.b16 %v1322
    %v1390 = vunpack.c.h.b16 %v1322
    %v1391 = vunpack.c.l.b16 %v1323
    %v1392 = vunpack.c.h.b16 %v1323
    %v1393 = vunpack.c.l.b16 %v1324
    %v1394 = vunpack.c.h.b16 %v1324
    %v1395 = vunpack.c.l.b16 %v1325
    %v1396 = vunpack.c.h.b16 %v1325
    %v1397 = vunpack.c.l.b16 %v1326
    %v1398 = vunpack.c.h.b16 %v1326
    %v1399 = vunpack.c.l.b16 %v1327
    %v1400 = vunpack.c.h.b16 %v1327
    %v1401 = vunpack.c.l.b16 %v1328
    %v1402 = vunpack.c.h.b16 %v1328
    %v1403 = vunpack.c.l.b16 %v1329
    %v1404 = vunpack.c.h.b16 %v1329
    %v1405 = vunpack.c.l.b16 %v1330
    %v1406 = vunpack.c.h.b16 %v1330
    %v1407 = vunpack.c.l.b16 %v1331
    %v1408 = vunpack.c.h.b16 %v1331
    %v1409 = vunpack.c.l.b16 %v1332
    %v1410 = vunpack.c.h.b16 %v1332
    %v1411 = vunpack.c.l.b16 %v1333
    %v1412 = vunpack.c.h.b16 %v1333
    %v1413 = vunpack.c.l.b16 %v1334
    %v1414 = vunpack.c.h.b16 %v1334
    %v1415 = vunpack.c.l.b16 %v1335
    %v1416 = vunpack.c.h.b16 %v1335
    %v1417 = vunpack.c.l.b16 %v1336
    %v1418 = vunpack.c.h.b16 %v1336
    %v1419 = vunpack.c.l.b16 %v1337
    %v1420 = vunpack.c.h.b16 %v1337
    %v1421 = vunpack.c.l.b16 %v1338
    %v1422 = vunpack.c.h.b16 %v1338
    %v1423 = vunpack.c.l.b16 %v1339
    %v1424 = vunpack.c.h.b16 %v1339
    %v1425 = vunpack.c.l.b16 %v1340
    %v1426 = vunpack.c.h.b16 %v1340
    %v1427 = vunpack.c.l.b16 %v1341
    %v1428 = vunpack.c.h.b16 %v1341
    %v1429 = vunpack.c.l.b16 %v1342
    %v1430 = vunpack.c.h.b16 %v1342
    %v1431 = vunpack.c.l.b16 %v1343
    %v1432 = vunpack.c.h.b16 %v1343
    %v1433 = vunpack.c.l.b16 %v1344
    %v1434 = vunpack.c.h.b16 %v1344
    %v1435 = vunpack.c.l.b16 %v1345
    %v1436 = vunpack.c.h.b16 %v1345
    %v1437 = vunpack.c.l.b16 %v1346
    %v1438 = vunpack.c.h.b16 %v1346
    %v1439 = vunpack.c.l.b16 %v1347
    %v1440 = vunpack.c.h.b16 %v1347
    %v1441 = vunpack.c.l.b16 %v1348
    %v1442 = vunpack.c.h.b16 %v1348
    %v1443 = vunpack.c.l.b16 %v1349
    %v1444 = vunpack.c.h.b16 %v1349
    %v1445 = vunpack.c.l.b16 %v1350
    %v1446 = vunpack.c.h.b16 %v1350
    %v1447 = vpack.c.b16 %v1387, %v1383
    %v1448 = vpack.c.b16 %v1388, %v1384
    %v1449 = vpack.c.b16 %v1389, %v1385
    %v1450 = vpack.c.b16 %v1390, %v1386
    %v1451 = vpack.c.b16 %v1395, %v1391
    %v1452 = vpack.c.b16 %v1396, %v1392
    %v1453 = vpack.c.b16 %v1397, %v1393
    %v1454 = vpack.c.b16 %v1398, %v1394
    %v1455 = vpack.c.b16 %v1403, %v1399
    %v1456 = vpack.c.b16 %v1404, %v1400
    %v1457 = vpack.c.b16 %v1405, %v1401
    %v1458 = vpack.c.b16 %v1406, %v1402
    %v1459 = vpack.c.b16 %v1411, %v1407
    %v1460 = vpack.c.b16 %v1412, %v1408
    %v1461 = vpack.c.b16 %v1413, %v1409
    %v1462 = vpack.c.b16 %v1414, %v1410
    %v1463 = vpack.c.b16 %v1419, %v1415
    %v1464 = vpack.c.b16 %v1420, %v1416
    %v1465 = vpack.c.b16 %v1421, %v1417
    %v1466 = vpack.c.b16 %v1422, %v1418
    %v1467 = vpack.c.b16 %v1427, %v1423
    %v1468 = vpack.c.b16 %v1428, %v1424
    %v1469 = vpack.c.b16 %v1429, %v1425
    %v1470 = vpack.c.b16 %v1430, %v1426
    %v1471 = vpack.c.b16 %v1435, %v1431
    %v1472 = vpack.c.b16 %v1436, %v1432
    %v1473 = vpack.c.b16 %v1437, %v1433
    %v1474 = vpack.c.b16 %v1438, %v1434
    %v1475 = vpack.c.b16 %v1443, %v1439
    %v1476 = vpack.c.b16 %v1444, %v1440
    %v1477 = vpack.c.b16 %v1445, %v1441
    %v1478 = vpack.c.b16 %v1446, %v1442
    %1511 = vmatprep.subr.bf16.mxu0 %v1448
    %1512 = vmatpush1.bf16.msra.mxu0 %v1447
    %1513 = vmatprep.subr.bf16.mxu0 %v1452
    %1514 = vmatpush1.bf16.msra.mxu0 %v1451
    %1515 = vmatprep.subr.bf16.mxu0 %v1456
    %1516 = vmatpush1.bf16.msra.mxu0 %v1455
    %1517 = vmatprep.subr.bf16.mxu0 %v1460
    %1518 = vmatpush1.bf16.msra.mxu0 %v1459
    %1519 = vmatprep.subr.bf16.mxu0 %v1464
    %1520 = vmatpush1.bf16.msra.mxu0 %v1463
    %1521 = vmatprep.subr.bf16.mxu0 %v1468
    %1522 = vmatpush1.bf16.msra.mxu0 %v1467
    %1523 = vmatprep.subr.bf16.mxu0 %v1472
    %1524 = vmatpush1.bf16.msra.mxu0 %v1471
    %1525 = vmatprep.subr.bf16.mxu0 %v1476
    %1526 = vmatpush1.bf16.msra.mxu0 %v1475
    %1527 = vmatprep.subr.bf16.mxu0 0
    %1528 = vmatpush1.bf16.msra.mxu0 0
    %1529 = vmatprep.subr.bf16.mxu0 0
    %1530 = vmatpush1.bf16.msra.mxu0 0
    %1531 = vmatprep.subr.bf16.mxu0 0
    %1532 = vmatpush1.bf16.msra.mxu0 0
    %1533 = vmatprep.subr.bf16.mxu0 0
    %1534 = vmatpush1.bf16.msra.mxu0 0
    %1535 = vmatprep.subr.bf16.mxu0 0
    %1536 = vmatpush1.bf16.msra.mxu0 0
    %1537 = vmatprep.subr.bf16.mxu0 0
    %1538 = vmatpush1.bf16.msra.mxu0 0
    %1539 = vmatprep.subr.bf16.mxu0 0
    %1540 = vmatpush1.bf16.msra.mxu0 0
    %1541 = vmatprep.subr.bf16.mxu0 0
    %1542 = vmatpush1.bf16.msra.mxu0 0
    %1543 = vmatprep.mubr.bf16.mxu0 0
    %1544 = vmatmul.mubr.bf16.gmra.mrb[0].mxu0 %v1311
    %v1545 = vpop.f32.mrb[0].mxu0
    %v1546 = vadd.f32 0.0, %v1545
    %v1547 = vpop.f32.mrb[0].mxu0
    %v1548 = vadd.f32 0.0, %v1547
    %v1549 = vpop.f32.mrb[0].mxu0
    %v1550 = vadd.f32 0.0, %v1549
    %v1551 = vpop.f32.mrb[0].mxu0
    %v1552 = vadd.f32 0.0, %v1551
    %1553 = vmatprep.mubr.bf16.mxu0 0
    %1554 = vmatmul.mubr.bf16.gmra.mrb[0].mxu0 %v1312
    %v1555 = vpop.f32.mrb[0].mxu0
    %v1556 = vadd.f32 0.0, %v1555
    %v1557 = vpop.f32.mrb[0].mxu0
    %v1558 = vadd.f32 0.0, %v1557
    %v1559 = vpop.f32.mrb[0].mxu0
    %v1560 = vadd.f32 0.0, %v1559
    %v1561 = vpop.f32.mrb[0].mxu0
    %v1562 = vadd.f32 0.0, %v1561
    %1563 = vmatprep.mubr.bf16.mxu0 0
    %1564 = vmatmul.mubr.bf16.gmra.mrb[0].mxu0 %v1313
    %v1565 = vpop.f32.mrb[0].mxu0
    %v1566 = vadd.f32 0.0, %v1565
    %v1567 = vpop.f32.mrb[0].mxu0
    %v1568 = vadd.f32 0.0, %v1567
    %v1569 = vpop.f32.mrb[0].mxu0
    %v1570 = vadd.f32 0.0, %v1569
    %v1571 = vpop.f32.mrb[0].mxu0
    %v1572 = vadd.f32 0.0, %v1571
    %1573 = vmatprep.mubr.bf16.mxu0 0
    %1574 = vmatmul.mubr.bf16.gmra.mrb[0].mxu0 %v1314
    %v1575 = vpop.f32.mrb[0].mxu0
    %v1576 = vadd.f32 0.0, %v1575
    %v1577 = vpop.f32.mrb[0].mxu0
    %v1578 = vadd.f32 0.0, %v1577
    %v1579 = vpop.f32.mrb[0].mxu0
    %v1580 = vadd.f32 0.0, %v1579
    %v1581 = vpop.f32.mrb[0].mxu0
    %v1582 = vadd.f32 0.0, %v1581
    %1583 = vmatprep.mubr.bf16.mxu0 0
    %1584 = vmatmul.mubr.bf16.gmra.mrb[0].mxu0 %v1315
    %v1585 = vpop.f32.mrb[0].mxu0
    %v1586 = vadd.f32 0.0, %v1585
    %v1587 = vpop.f32.mrb[0].mxu0
    %v1588 = vadd.f32 0.0, %v1587
    %v1589 = vpop.f32.mrb[0].mxu0
    %v1590 = vadd.f32 0.0, %v1589
    %v1591 = vpop.f32.mrb[0].mxu0
    %v1592 = vadd.f32 0.0, %v1591
    %1593 = vmatprep.mubr.bf16.mxu0 0
    %1594 = vmatmul.mubr.bf16.gmra.mrb[0].mxu0 %v1316
    %v1595 = vpop.f32.mrb[0].mxu0
    %v1596 = vadd.f32 0.0, %v1595
    %v1597 = vpop.f32.mrb[0].mxu0
    %v1598 = vadd.f32 0.0, %v1597
    %v1599 = vpop.f32.mrb[0].mxu0
    %v1600 = vadd.f32 0.0, %v1599
    %v1601 = vpop.f32.mrb[0].mxu0
    %v1602 = vadd.f32 0.0, %v1601
    %1603 = vmatprep.mubr.bf16.mxu0 0
    %1604 = vmatmul.mubr.bf16.gmra.mrb[0].mxu0 %v1317
    %v1605 = vpop.f32.mrb[0].mxu0
    %v1606 = vadd.f32 0.0, %v1605
    %v1607 = vpop.f32.mrb[0].mxu0
    %v1608 = vadd.f32 0.0, %v1607
    %v1609 = vpop.f32.mrb[0].mxu0
    %v1610 = vadd.f32 0.0, %v1609
    %v1611 = vpop.f32.mrb[0].mxu0
    %v1612 = vadd.f32 0.0, %v1611
    %1613 = vmatprep.mubr.bf16.mxu0 0
    %1614 = vmatmul.mubr.bf16.gmra.mrb[0].mxu0 %v1318
    %v1615 = vpop.f32.mrb[0].mxu0
    %v1616 = vadd.f32 0.0, %v1615
    %v1617 = vpop.f32.mrb[0].mxu0
    %v1618 = vadd.f32 0.0, %v1617
    %v1619 = vpop.f32.mrb[0].mxu0
    %v1620 = vadd.f32 0.0, %v1619
    %v1621 = vpop.f32.mrb[0].mxu0
    %v1622 = vadd.f32 0.0, %v1621
    %1623 = vdwg.mxu0
    %1624 = vmatprep.subr.bf16.mxu0 %v1450
    %1625 = vmatpush1.bf16.msra.mxu0 %v1449
    %1626 = vmatprep.subr.bf16.mxu0 %v1454
    %1627 = vmatpush1.bf16.msra.mxu0 %v1453
    %1628 = vmatprep.subr.bf16.mxu0 %v1458
    %1629 = vmatpush1.bf16.msra.mxu0 %v1457
    %1630 = vmatprep.subr.bf16.mxu0 %v1462
    %1631 = vmatpush1.bf16.msra.mxu0 %v1461
    %1632 = vmatprep.subr.bf16.mxu0 %v1466
    %1633 = vmatpush1.bf16.msra.mxu0 %v1465
    %1634 = vmatprep.subr.bf16.mxu0 %v1470
    %1635 = vmatpush1.bf16.msra.mxu0 %v1469
    %1636 = vmatprep.subr.bf16.mxu0 %v1474
    %1637 = vmatpush1.bf16.msra.mxu0 %v1473
    %1638 = vmatprep.subr.bf16.mxu0 %v1478
    %1639 = vmatpush1.bf16.msra.mxu0 %v1477
    %1640 = vmatprep.subr.bf16.mxu0 0
    %1641 = vmatpush1.bf16.msra.mxu0 0
    %1642 = vmatprep.subr.bf16.mxu0 0
    %1643 = vmatpush1.bf16.msra.mxu0 0
    %1644 = vmatprep.subr.bf16.mxu0 0
    %1645 = vmatpush1.bf16.msra.mxu0 0
    %1646 = vmatprep.subr.bf16.mxu0 0
    %1647 = vmatpush1.bf16.msra.mxu0 0
    %1648 = vmatprep.subr.bf16.mxu0 0
    %1649 = vmatpush1.bf16.msra.mxu0 0
    %1650 = vmatprep.subr.bf16.mxu0 0
    %1651 = vmatpush1.bf16.msra.mxu0 0
    %1652 = vmatprep.subr.bf16.mxu0 0
    %1653 = vmatpush1.bf16.msra.mxu0 0
    %1654 = vmatprep.subr.bf16.mxu0 0
    %1655 = vmatpush1.bf16.msra.mxu0 0
    %1656 = vmatprep.mubr.bf16.mxu0 0
    %1657 = vmatmul.mubr.bf16.gmra.mrb[0].mxu0 %v1311
    %v1658 = vpop.f32.mrb[0].mxu0
    %v1659 = vadd.f32 0.0, %v1658
    %v1660 = vpop.f32.mrb[0].mxu0
    %v1661 = vadd.f32 0.0, %v1660
    %v1662 = vpop.f32.mrb[0].mxu0
    %v1663 = vadd.f32 0.0, %v1662
    %v1664 = vpop.f32.mrb[0].mxu0
    %v1665 = vadd.f32 0.0, %v1664
    %1666 = vmatprep.mubr.bf16.mxu0 0
    %1667 = vmatmul.mubr.bf16.gmra.mrb[0].mxu0 %v1312
    %v1668 = vpop.f32.mrb[0].mxu0
    %v1669 = vadd.f32 0.0, %v1668
    %v1670 = vpop.f32.mrb[0].mxu0
    %v1671 = vadd.f32 0.0, %v1670
    %v1672 = vpop.f32.mrb[0].mxu0
    %v1673 = vadd.f32 0.0, %v1672
    %v1674 = vpop.f32.mrb[0].mxu0
    %v1675 = vadd.f32 0.0, %v1674
    %1676 = vmatprep.mubr.bf16.mxu0 0
    %1677 = vmatmul.mubr.bf16.gmra.mrb[0].mxu0 %v1313
    %v1678 = vpop.f32.mrb[0].mxu0
    %v1679 = vadd.f32 0.0, %v1678
    %v1680 = vpop.f32.mrb[0].mxu0
    %v1681 = vadd.f32 0.0, %v1680
    %v1682 = vpop.f32.mrb[0].mxu0
    %v1683 = vadd.f32 0.0, %v1682
    %v1684 = vpop.f32.mrb[0].mxu0
    %v1685 = vadd.f32 0.0, %v1684
    %1686 = vmatprep.mubr.bf16.mxu0 0
    %1687 = vmatmul.mubr.bf16.gmra.mrb[0].mxu0 %v1314
    %v1688 = vpop.f32.mrb[0].mxu0
    %v1689 = vadd.f32 0.0, %v1688
    %v1690 = vpop.f32.mrb[0].mxu0
    %v1691 = vadd.f32 0.0, %v1690
    %v1692 = vpop.f32.mrb[0].mxu0
    %v1693 = vadd.f32 0.0, %v1692
    %v1694 = vpop.f32.mrb[0].mxu0
    %v1695 = vadd.f32 0.0, %v1694
    %1696 = vmatprep.mubr.bf16.mxu0 0
    %1697 = vmatmul.mubr.bf16.gmra.mrb[0].mxu0 %v1315
    %v1698 = vpop.f32.mrb[0].mxu0
    %v1699 = vadd.f32 0.0, %v1698
    %v1700 = vpop.f32.mrb[0].mxu0
    %v1701 = vadd.f32 0.0, %v1700
    %v1702 = vpop.f32.mrb[0].mxu0
    %v1703 = vadd.f32 0.0, %v1702
    %v1704 = vpop.f32.mrb[0].mxu0
    %v1705 = vadd.f32 0.0, %v1704
    %1706 = vmatprep.mubr.bf16.mxu0 0
    %1707 = vmatmul.mubr.bf16.gmra.mrb[0].mxu0 %v1316
    %v1708 = vpop.f32.mrb[0].mxu0
    %v1709 = vadd.f32 0.0, %v1708
    %v1710 = vpop.f32.mrb[0].mxu0
    %v1711 = vadd.f32 0.0, %v1710
    %v1712 = vpop.f32.mrb[0].mxu0
    %v1713 = vadd.f32 0.0, %v1712
    %v1714 = vpop.f32.mrb[0].mxu0
    %v1715 = vadd.f32 0.0, %v1714
    %1716 = vmatprep.mubr.bf16.mxu0 0
    %1717 = vmatmul.mubr.bf16.gmra.mrb[0].mxu0 %v1317
    %v1718 = vpop.f32.mrb[0].mxu0
    %v1719 = vadd.f32 0.0, %v1718
    %v1720 = vpop.f32.mrb[0].mxu0
    %v1721 = vadd.f32 0.0, %v1720
    %v1722 = vpop.f32.mrb[0].mxu0
    %v1723 = vadd.f32 0.0, %v1722
    %v1724 = vpop.f32.mrb[0].mxu0
    %v1725 = vadd.f32 0.0, %v1724
    %1726 = vmatprep.mubr.bf16.mxu0 0
    %1727 = vmatmul.mubr.bf16.gmra.mrb[0].mxu0 %v1318
    %v1728 = vpop.f32.mrb[0].mxu0
    %v1729 = vadd.f32 0.0, %v1728
    %v1730 = vpop.f32.mrb[0].mxu0
    %v1731 = vadd.f32 0.0, %v1730
    %v1732 = vpop.f32.mrb[0].mxu0
    %v1733 = vadd.f32 0.0, %v1732
    %v1734 = vpop.f32.mrb[0].mxu0
    %v1735 = vadd.f32 0.0, %v1734
    %1736 = vdwg.mxu0
    %v1737 = vpack.c.bf16 %v1550, %v1546
    %v1738 = vpack.c.bf16 %v1552, %v1548
    %v1739 = vpack.c.bf16 %v1663, %v1659
    %v1740 = vpack.c.bf16 %v1665, %v1661
    %v1741 = vpack.c.bf16 %v1560, %v1556
    %v1742 = vpack.c.bf16 %v1562, %v1558
    %v1743 = vpack.c.bf16 %v1673, %v1669
    %v1744 = vpack.c.bf16 %v1675, %v1671
    %v1745 = vpack.c.bf16 %v1570, %v1566
    %v1746 = vpack.c.bf16 %v1572, %v1568
    %v1747 = vpack.c.bf16 %v1683, %v1679
    %v1748 = vpack.c.bf16 %v1685, %v1681
    %v1749 = vpack.c.bf16 %v1580, %v1576
    %v1750 = vpack.c.bf16 %v1582, %v1578
    %v1751 = vpack.c.bf16 %v1693, %v1689
    %v1752 = vpack.c.bf16 %v1695, %v1691
    %v1753 = vpack.c.bf16 %v1590, %v1586
    %v1754 = vpack.c.bf16 %v1592, %v1588
    %v1755 = vpack.c.bf16 %v1703, %v1699
    %v1756 = vpack.c.bf16 %v1705, %v1701
    %v1757 = vpack.c.bf16 %v1600, %v1596
    %v1758 = vpack.c.bf16 %v1602, %v1598
    %v1759 = vpack.c.bf16 %v1713, %v1709
    %v1760 = vpack.c.bf16 %v1715, %v1711
    %v1761 = vpack.c.bf16 %v1610, %v1606
    %v1762 = vpack.c.bf16 %v1612, %v1608
    %v1763 = vpack.c.bf16 %v1723, %v1719
    %v1764 = vpack.c.bf16 %v1725, %v1721
    %v1765 = vpack.c.bf16 %v1620, %v1616
    %v1766 = vpack.c.bf16 %v1622, %v1618
    %v1767 = vpack.c.bf16 %v1733, %v1729
    %v1768 = vpack.c.bf16 %v1735, %v1731
    %v1769 = vld [vmem:[%s4] sm:$0xf]
    %v1770 = vld [vmem:[%s4 + $0x4] sm:$0xf]
    %v1771 = vld [vmem:[%s4 + $0x8] sm:$0xf]
    %v1772 = vld [vmem:[%s4 + $0xc] sm:$0xf]
    %v1773 = vld [vmem:[%s4 + $0x10] sm:$0xf]
    %v1774 = vld [vmem:[%s4 + $0x14] sm:$0xf]
    %v1775 = vld [vmem:[%s4 + $0x18] sm:$0xf]
    %v1776 = vld [vmem:[%s4 + $0x1c] sm:$0xf]
    %v1777 = vld [vmem:[%s4 + $0x20] sm:$0xf]
    %v1778 = vld [vmem:[%s4 + $0x24] sm:$0xf]
    %v1779 = vld [vmem:[%s4 + $0x28] sm:$0xf]
    %v1780 = vld [vmem:[%s4 + $0x2c] sm:$0xf]
    %v1781 = vld [vmem:[%s4 + $0x30] sm:$0xf]
    %v1782 = vld [vmem:[%s4 + $0x34] sm:$0xf]
    %v1783 = vld [vmem:[%s4 + $0x38] sm:$0xf]
    %v1784 = vld [vmem:[%s4 + $0x3c] sm:$0xf]
    %v1801 = vunpack.c.l.b16 %v1769
    %v1802 = vunpack.c.l.b16 %v1770
    %v1803 = vunpack.c.l.b16 %v1771
    %v1804 = vunpack.c.l.b16 %v1772
    %v1805 = vunpack.c.l.b16 %v1773
    %v1806 = vunpack.c.l.b16 %v1774
    %v1807 = vunpack.c.l.b16 %v1775
    %v1808 = vunpack.c.l.b16 %v1776
    %v1809 = vunpack.c.l.b16 %v1777
    %v1810 = vunpack.c.l.b16 %v1778
    %v1811 = vunpack.c.l.b16 %v1779
    %v1812 = vunpack.c.l.b16 %v1780
    %v1813 = vunpack.c.l.b16 %v1781
    %v1814 = vunpack.c.l.b16 %v1782
    %v1815 = vunpack.c.l.b16 %v1783
    %v1816 = vunpack.c.l.b16 %v1784
    %v1817 = vpack.c.b16 %v1802, %v1801
    %v1818 = vpack.c.b16 %v1804, %v1803
    %v1819 = vpack.c.b16 %v1806, %v1805
    %v1820 = vpack.c.b16 %v1808, %v1807
    %v1821 = vpack.c.b16 %v1810, %v1809
    %v1822 = vpack.c.b16 %v1812, %v1811
    %v1823 = vpack.c.b16 %v1814, %v1813
    %v1824 = vpack.c.b16 %v1816, %v1815
    %1833 = vmatprep.subr.bf16.mxu0 0
    %1834 = vmatpush1.bf16.msra.mxu0 %v1817
    %1835 = vmatprep.subr.bf16.mxu0 0
    %1836 = vmatpush1.bf16.msra.mxu0 %v1818
    %1837 = vmatprep.subr.bf16.mxu0 0
    %1838 = vmatpush1.bf16.msra.mxu0 %v1819
    %1839 = vmatprep.subr.bf16.mxu0 0
    %1840 = vmatpush1.bf16.msra.mxu0 %v1820
    %1841 = vmatprep.subr.bf16.mxu0 0
    %1842 = vmatpush1.bf16.msra.mxu0 %v1821
    %1843 = vmatprep.subr.bf16.mxu0 0
    %1844 = vmatpush1.bf16.msra.mxu0 %v1822
    %1845 = vmatprep.subr.bf16.mxu0 0
    %1846 = vmatpush1.bf16.msra.mxu0 %v1823
    %1847 = vmatprep.subr.bf16.mxu0 0
    %1848 = vmatpush1.bf16.msra.mxu0 %v1824
    %1849 = vmatprep.subr.bf16.mxu0 0
    %1850 = vmatpush1.bf16.msra.mxu0 0
    %1851 = vmatprep.subr.bf16.mxu0 0
    %1852 = vmatpush1.bf16.msra.mxu0 0
    %1853 = vmatprep.subr.bf16.mxu0 0
    %1854 = vmatpush1.bf16.msra.mxu0 0
    %1855 = vmatprep.subr.bf16.mxu0 0
    %1856 = vmatpush1.bf16.msra.mxu0 0
    %1857 = vmatprep.subr.bf16.mxu0 0
    %1858 = vmatpush1.bf16.msra.mxu0 0
    %1859 = vmatprep.subr.bf16.mxu0 0
    %1860 = vmatpush1.bf16.msra.mxu0 0
    %1861 = vmatprep.subr.bf16.mxu0 0
    %1862 = vmatpush1.bf16.msra.mxu0 0
    %1863 = vmatprep.subr.bf16.mxu0 0
    %1864 = vmatpush1.bf16.msra.mxu0 0
    %1865 = vmatprep.mubr.bf16.mxu0 0
    %1866 = vmatmul.mubr.bf16.gmra.mrb[0].mxu0 %v1311
    %v1867 = vpop.f32.mrb[0].mxu0
    %v1868 = vadd.f32 0.0, %v1867
    %v1869 = vpop.f32.mrb[0].mxu0
    %v1870 = vpop.f32.mrb[0].mxu0
    %v1871 = vadd.f32 0.0, %v1870
    %v1872 = vpop.f32.mrb[0].mxu0
    %1873 = vmatprep.mubr.bf16.mxu0 0
    %1874 = vmatmul.mubr.bf16.gmra.mrb[0].mxu0 %v1312
    %v1875 = vpop.f32.mrb[0].mxu0
    %v1876 = vadd.f32 0.0, %v1875
    %v1877 = vpop.f32.mrb[0].mxu0
    %v1878 = vpop.f32.mrb[0].mxu0
    %v1879 = vadd.f32 0.0, %v1878
    %v1880 = vpop.f32.mrb[0].mxu0
    %1881 = vmatprep.mubr.bf16.mxu0 0
    %1882 = vmatmul.mubr.bf16.gmra.mrb[0].mxu0 %v1313
    %v1883 = vpop.f32.mrb[0].mxu0
    %v1884 = vadd.f32 0.0, %v1883
    %v1885 = vpop.f32.mrb[0].mxu0
    %v1886 = vpop.f32.mrb[0].mxu0
    %v1887 = vadd.f32 0.0, %v1886
    %v1888 = vpop.f32.mrb[0].mxu0
    %1889 = vmatprep.mubr.bf16.mxu0 0
    %1890 = vmatmul.mubr.bf16.gmra.mrb[0].mxu0 %v1314
    %v1891 = vpop.f32.mrb[0].mxu0
    %v1892 = vadd.f32 0.0, %v1891
    %v1893 = vpop.f32.mrb[0].mxu0
    %v1894 = vpop.f32.mrb[0].mxu0
    %v1895 = vadd.f32 0.0, %v1894
    %v1896 = vpop.f32.mrb[0].mxu0
    %1897 = vmatprep.mubr.bf16.mxu0 0
    %1898 = vmatmul.mubr.bf16.gmra.mrb[0].mxu0 %v1315
    %v1899 = vpop.f32.mrb[0].mxu0
    %v1900 = vadd.f32 0.0, %v1899
    %v1901 = vpop.f32.mrb[0].mxu0
    %v1902 = vpop.f32.mrb[0].mxu0
    %v1903 = vadd.f32 0.0, %v1902
    %v1904 = vpop.f32.mrb[0].mxu0
    %1905 = vmatprep.mubr.bf16.mxu0 0
    %1906 = vmatmul.mubr.bf16.gmra.mrb[0].mxu0 %v1316
    %v1907 = vpop.f32.mrb[0].mxu0
    %v1908 = vadd.f32 0.0, %v1907
    %v1909 = vpop.f32.mrb[0].mxu0
    %v1910 = vpop.f32.mrb[0].mxu0
    %v1911 = vadd.f32 0.0, %v1910
    %v1912 = vpop.f32.mrb[0].mxu0
    %1913 = vmatprep.mubr.bf16.mxu0 0
    %1914 = vmatmul.mubr.bf16.gmra.mrb[0].mxu0 %v1317
    %v1915 = vpop.f32.mrb[0].mxu0
    %v1916 = vadd.f32 0.0, %v1915
    %v1917 = vpop.f32.mrb[0].mxu0
    %v1918 = vpop.f32.mrb[0].mxu0
    %v1919 = vadd.f32 0.0, %v1918
    %v1920 = vpop.f32.mrb[0].mxu0
    %1921 = vmatprep.mubr.bf16.mxu0 0
    %1922 = vmatmul.mubr.bf16.gmra.mrb[0].mxu0 %v1318
    %v1923 = vpop.f32.mrb[0].mxu0
    %v1924 = vadd.f32 0.0, %v1923
    %v1925 = vpop.f32.mrb[0].mxu0
    %v1926 = vpop.f32.mrb[0].mxu0
    %v1927 = vadd.f32 0.0, %v1926
    %v1928 = vpop.f32.mrb[0].mxu0
    %1929 = vdwg.mxu0
    %v1930 = vld [vmem:[%s5] sm:$0xf]
    %v1931 = vld [vmem:[%s5 + $0x4] sm:$0xf]
    %v1932 = vld [vmem:[%s5 + $0x8] sm:$0xf]
    %v1933 = vld [vmem:[%s5 + $0xc] sm:$0xf]
    %v1934 = vld [vmem:[%s5 + $0x10] sm:$0xf]
    %v1935 = vld [vmem:[%s5 + $0x14] sm:$0xf]
    %v1936 = vld [vmem:[%s5 + $0x18] sm:$0xf]
    %v1937 = vld [vmem:[%s5 + $0x1c] sm:$0xf]
    %v1938 = vld [vmem:[%s5 + $0x20] sm:$0xf]
    %v1939 = vld [vmem:[%s5 + $0x24] sm:$0xf]
    %v1940 = vld [vmem:[%s5 + $0x28] sm:$0xf]
    %v1941 = vld [vmem:[%s5 + $0x2c] sm:$0xf]
    %v1942 = vld [vmem:[%s5 + $0x30] sm:$0xf]
    %v1943 = vld [vmem:[%s5 + $0x34] sm:$0xf]
    %v1944 = vld [vmem:[%s5 + $0x38] sm:$0xf]
    %v1945 = vld [vmem:[%s5 + $0x3c] sm:$0xf]
    %v1962 = vunpack.c.l.b16 %v1930
    %v1963 = vunpack.c.l.b16 %v1931
    %v1964 = vunpack.c.l.b16 %v1932
    %v1965 = vunpack.c.l.b16 %v1933
    %v1966 = vunpack.c.l.b16 %v1934
    %v1967 = vunpack.c.l.b16 %v1935
    %v1968 = vunpack.c.l.b16 %v1936
    %v1969 = vunpack.c.l.b16 %v1937
    %v1970 = vunpack.c.l.b16 %v1938
    %v1971 = vunpack.c.l.b16 %v1939
    %v1972 = vunpack.c.l.b16 %v1940
    %v1973 = vunpack.c.l.b16 %v1941
    %v1974 = vunpack.c.l.b16 %v1942
    %v1975 = vunpack.c.l.b16 %v1943
    %v1976 = vunpack.c.l.b16 %v1944
    %v1977 = vunpack.c.l.b16 %v1945
    %v1978 = vpack.c.b16 %v1963, %v1962
    %v1979 = vpack.c.b16 %v1965, %v1964
    %v1980 = vpack.c.b16 %v1967, %v1966
    %v1981 = vpack.c.b16 %v1969, %v1968
    %v1982 = vpack.c.b16 %v1971, %v1970
    %v1983 = vpack.c.b16 %v1973, %v1972
    %v1984 = vpack.c.b16 %v1975, %v1974
    %v1985 = vpack.c.b16 %v1977, %v1976
    %1994 = vmatprep.subr.bf16.mxu0 0
    %1995 = vmatpush1.bf16.msra.mxu0 %v1978
    %1996 = vmatprep.subr.bf16.mxu0 0
    %1997 = vmatpush1.bf16.msra.mxu0 %v1979
    %1998 = vmatprep.subr.bf16.mxu0 0
    %1999 = vmatpush1.bf16.msra.mxu0 %v1980
    %2000 = vmatprep.subr.bf16.mxu0 0
    %2001 = vmatpush1.bf16.msra.mxu0 %v1981
    %2002 = vmatprep.subr.bf16.mxu0 0
    %2003 = vmatpush1.bf16.msra.mxu0 %v1982
    %2004 = vmatprep.subr.bf16.mxu0 0
    %2005 = vmatpush1.bf16.msra.mxu0 %v1983
    %2006 = vmatprep.subr.bf16.mxu0 0
    %2007 = vmatpush1.bf16.msra.mxu0 %v1984
    %2008 = vmatprep.subr.bf16.mxu0 0
    %2009 = vmatpush1.bf16.msra.mxu0 %v1985
    %2010 = vmatprep.subr.bf16.mxu0 0
    %2011 = vmatpush1.bf16.msra.mxu0 0
    %2012 = vmatprep.subr.bf16.mxu0 0
    %2013 = vmatpush1.bf16.msra.mxu0 0
    %2014 = vmatprep.subr.bf16.mxu0 0
    %2015 = vmatpush1.bf16.msra.mxu0 0
    %2016 = vmatprep.subr.bf16.mxu0 0
    %2017 = vmatpush1.bf16.msra.mxu0 0
    %2018 = vmatprep.subr.bf16.mxu0 0
    %2019 = vmatpush1.bf16.msra.mxu0 0
    %2020 = vmatprep.subr.bf16.mxu0 0
    %2021 = vmatpush1.bf16.msra.mxu0 0
    %2022 = vmatprep.subr.bf16.mxu0 0
    %2023 = vmatpush1.bf16.msra.mxu0 0
    %2024 = vmatprep.subr.bf16.mxu0 0
    %2025 = vmatpush1.bf16.msra.mxu0 0
    %2026 = vmatprep.mubr.bf16.mxu0 0
    %2027 = vmatmul.mubr.bf16.gmra.mrb[0].mxu0 %v1311
    %v2028 = vpop.f32.mrb[0].mxu0
    %v2029 = vadd.f32 0.0, %v2028
    %v2030 = vpop.f32.mrb[0].mxu0
    %v2031 = vpop.f32.mrb[0].mxu0
    %v2032 = vadd.f32 0.0, %v2031
    %v2033 = vpop.f32.mrb[0].mxu0
    %2034 = vmatprep.mubr.bf16.mxu0 0
    %2035 = vmatmul.mubr.bf16.gmra.mrb[0].mxu0 %v1312
    %v2036 = vpop.f32.mrb[0].mxu0
    %v2037 = vadd.f32 0.0, %v2036
    %v2038 = vpop.f32.mrb[0].mxu0
    %v2039 = vpop.f32.mrb[0].mxu0
    %v2040 = vadd.f32 0.0, %v2039
    %v2041 = vpop.f32.mrb[0].mxu0
    %2042 = vmatprep.mubr.bf16.mxu0 0
    %2043 = vmatmul.mubr.bf16.gmra.mrb[0].mxu0 %v1313
    %v2044 = vpop.f32.mrb[0].mxu0
    %v2045 = vadd.f32 0.0, %v2044
    %v2046 = vpop.f32.mrb[0].mxu0
    %v2047 = vpop.f32.mrb[0].mxu0
    %v2048 = vadd.f32 0.0, %v2047
    %v2049 = vpop.f32.mrb[0].mxu0
    %2050 = vmatprep.mubr.bf16.mxu0 0
    %2051 = vmatmul.mubr.bf16.gmra.mrb[0].mxu0 %v1314
    %v2052 = vpop.f32.mrb[0].mxu0
    %v2053 = vadd.f32 0.0, %v2052
    %v2054 = vpop.f32.mrb[0].mxu0
    %v2055 = vpop.f32.mrb[0].mxu0
    %v2056 = vadd.f32 0.0, %v2055
    %v2057 = vpop.f32.mrb[0].mxu0
    %2058 = vmatprep.mubr.bf16.mxu0 0
    %2059 = vmatmul.mubr.bf16.gmra.mrb[0].mxu0 %v1315
    %v2060 = vpop.f32.mrb[0].mxu0
    %v2061 = vadd.f32 0.0, %v2060
    %v2062 = vpop.f32.mrb[0].mxu0
    %v2063 = vpop.f32.mrb[0].mxu0
    %v2064 = vadd.f32 0.0, %v2063
    %v2065 = vpop.f32.mrb[0].mxu0
    %2066 = vmatprep.mubr.bf16.mxu0 0
    %2067 = vmatmul.mubr.bf16.gmra.mrb[0].mxu0 %v1316
    %v2068 = vpop.f32.mrb[0].mxu0
    %v2069 = vadd.f32 0.0, %v2068
    %v2070 = vpop.f32.mrb[0].mxu0
    %v2071 = vpop.f32.mrb[0].mxu0
    %v2072 = vadd.f32 0.0, %v2071
    %v2073 = vpop.f32.mrb[0].mxu0
    %2074 = vmatprep.mubr.bf16.mxu0 0
    %2075 = vmatmul.mubr.bf16.gmra.mrb[0].mxu0 %v1317
    %v2076 = vpop.f32.mrb[0].mxu0
    %v2077 = vadd.f32 0.0, %v2076
    %v2078 = vpop.f32.mrb[0].mxu0
    %v2079 = vpop.f32.mrb[0].mxu0
    %v2080 = vadd.f32 0.0, %v2079
    %v2081 = vpop.f32.mrb[0].mxu0
    %2082 = vmatprep.mubr.bf16.mxu0 0
    %2083 = vmatmul.mubr.bf16.gmra.mrb[0].mxu0 %v1318
    %v2084 = vpop.f32.mrb[0].mxu0
    %v2085 = vadd.f32 0.0, %v2084
    %v2086 = vpop.f32.mrb[0].mxu0
    %v2087 = vpop.f32.mrb[0].mxu0
    %v2088 = vadd.f32 0.0, %v2087
    %v2089 = vpop.f32.mrb[0].mxu0
    %2090 = vdwg.mxu0
    %v2091 = vmul.f32 %v1868, %v551
    %v2092 = vmul.f32 %v1871, %v552
    %v2093 = vmul.f32 %v1876, %v553
    %v2094 = vmul.f32 %v1879, %v554
    %v2095 = vmul.f32 %v1884, %v555
    %v2096 = vmul.f32 %v1887, %v556
    %v2097 = vmul.f32 %v1892, %v557
    %v2098 = vmul.f32 %v1895, %v558
    %v2099 = vmul.f32 %v1900, %v559
    %v2100 = vmul.f32 %v1903, %v560
    %v2101 = vmul.f32 %v1908, %v561
    %v2102 = vmul.f32 %v1911, %v562
    %v2103 = vmul.f32 %v1916, %v563
    %v2104 = vmul.f32 %v1919, %v564
    %v2105 = vmul.f32 %v1924, %v565
    %v2106 = vmul.f32 %v1927, %v566
    %v2107 = vmul.f32 %v2029, %v567
    %v2108 = vmul.f32 %v2032, %v568
    %v2109 = vmul.f32 %v2037, %v569
    %v2110 = vmul.f32 %v2040, %v570
    %v2111 = vmul.f32 %v2045, %v571
    %v2112 = vmul.f32 %v2048, %v572
    %v2113 = vmul.f32 %v2053, %v573
    %v2114 = vmul.f32 %v2056, %v574
    %v2115 = vmul.f32 %v2061, %v575
    %v2116 = vmul.f32 %v2064, %v576
    %v2117 = vmul.f32 %v2069, %v577
    %v2118 = vmul.f32 %v2072, %v578
    %v2119 = vmul.f32 %v2077, %v579
    %v2120 = vmul.f32 %v2080, %v580
    %v2121 = vmul.f32 %v2085, %v581
    %v2122 = vmul.f32 %v2088, %v582
    %v2123 = vsub.f32 %v2091, %v2107
    %v2124 = vsub.f32 %v2092, %v2108
    %v2125 = vsub.f32 %v2093, %v2109
    %v2126 = vsub.f32 %v2094, %v2110
    %v2127 = vsub.f32 %v2095, %v2111
    %v2128 = vsub.f32 %v2096, %v2112
    %v2129 = vsub.f32 %v2097, %v2113
    %v2130 = vsub.f32 %v2098, %v2114
    %v2131 = vsub.f32 %v2099, %v2115
    %v2132 = vsub.f32 %v2100, %v2116
    %v2133 = vsub.f32 %v2101, %v2117
    %v2134 = vsub.f32 %v2102, %v2118
    %v2135 = vsub.f32 %v2103, %v2119
    %v2136 = vsub.f32 %v2104, %v2120
    %v2137 = vsub.f32 %v2105, %v2121
    %v2138 = vsub.f32 %v2106, %v2122
    %v2139 = vpack.c.bf16 %v2124, %v2123
    %v2140 = vpack.c.bf16 %v2126, %v2125
    %v2141 = vpack.c.bf16 %v2128, %v2127
    %v2142 = vpack.c.bf16 %v2130, %v2129
    %v2143 = vpack.c.bf16 %v2132, %v2131
    %v2144 = vpack.c.bf16 %v2134, %v2133
    %v2145 = vpack.c.bf16 %v2136, %v2135
    %v2146 = vpack.c.bf16 %v2138, %v2137
    %v2147 = vmul.f32 %v2029, %v551
    %v2148 = vmul.f32 %v2032, %v552
    %v2149 = vmul.f32 %v2037, %v553
    %v2150 = vmul.f32 %v2040, %v554
    %v2151 = vmul.f32 %v2045, %v555
    %v2152 = vmul.f32 %v2048, %v556
    %v2153 = vmul.f32 %v2053, %v557
    %v2154 = vmul.f32 %v2056, %v558
    %v2155 = vmul.f32 %v2061, %v559
    %v2156 = vmul.f32 %v2064, %v560
    %v2157 = vmul.f32 %v2069, %v561
    %v2158 = vmul.f32 %v2072, %v562
    %v2159 = vmul.f32 %v2077, %v563
    %v2160 = vmul.f32 %v2080, %v564
    %v2161 = vmul.f32 %v2085, %v565
    %v2162 = vmul.f32 %v2088, %v566
    %v2163 = vmul.f32 %v1868, %v567
    %v2164 = vmul.f32 %v1871, %v568
    %v2165 = vmul.f32 %v1876, %v569
    %v2166 = vmul.f32 %v1879, %v570
    %v2167 = vmul.f32 %v1884, %v571
    %v2168 = vmul.f32 %v1887, %v572
    %v2169 = vmul.f32 %v1892, %v573
    %v2170 = vmul.f32 %v1895, %v574
    %v2171 = vmul.f32 %v1900, %v575
    %v2172 = vmul.f32 %v1903, %v576
    %v2173 = vmul.f32 %v1908, %v577
    %v2174 = vmul.f32 %v1911, %v578
    %v2175 = vmul.f32 %v1916, %v579
    %v2176 = vmul.f32 %v1919, %v580
    %v2177 = vmul.f32 %v1924, %v581
    %v2178 = vmul.f32 %v1927, %v582
    %v2179 = vadd.f32 %v2147, %v2163
    %v2180 = vadd.f32 %v2148, %v2164
    %v2181 = vadd.f32 %v2149, %v2165
    %v2182 = vadd.f32 %v2150, %v2166
    %v2183 = vadd.f32 %v2151, %v2167
    %v2184 = vadd.f32 %v2152, %v2168
    %v2185 = vadd.f32 %v2153, %v2169
    %v2186 = vadd.f32 %v2154, %v2170
    %v2187 = vadd.f32 %v2155, %v2171
    %v2188 = vadd.f32 %v2156, %v2172
    %v2189 = vadd.f32 %v2157, %v2173
    %v2190 = vadd.f32 %v2158, %v2174
    %v2191 = vadd.f32 %v2159, %v2175
    %v2192 = vadd.f32 %v2160, %v2176
    %v2193 = vadd.f32 %v2161, %v2177
    %v2194 = vadd.f32 %v2162, %v2178
    %v2195 = vpack.c.bf16 %v2180, %v2179
    %v2196 = vpack.c.bf16 %v2182, %v2181
    %v2197 = vpack.c.bf16 %v2184, %v2183
    %v2198 = vpack.c.bf16 %v2186, %v2185
    %v2199 = vpack.c.bf16 %v2188, %v2187
    %v2200 = vpack.c.bf16 %v2190, %v2189
    %v2201 = vpack.c.bf16 %v2192, %v2191
    %v2202 = vpack.c.bf16 %v2194, %v2193
    %v2203 = vlaneseq
    %v2204 = vshrl.u32 %v2203, 7
    %v2205 = vadd.s32 %v2204, 8
    %v2206 = vadd.s32 %v2204, 16
    %v2207 = vadd.s32 %v2204, 24
    %v2208 = vadd.s32 %v2204, 32
    %v2209 = vadd.s32 %v2204, 40
    %v2210 = vadd.s32 %v2204, 48
    %v2211 = vadd.s32 %v2204, 56
    %v2212 = vadd.s32 %v2204, 64
    %v2213 = vadd.s32 %v2204, 72
    %v2214 = vadd.s32 %v2204, 80
    %v2215 = vadd.s32 %v2204, 88
    %v2216 = vadd.s32 %v2204, 96
    %v2217 = vadd.s32 %v2204, 104
    %v2218 = vadd.s32 %v2204, 112
    %v2219 = vadd.s32 %v2204, 120
    %v2220 = vlaneseq
    %v2221 = vand.u32 %v2220, 127
    %vm2222 = vcmp.le.s32.totalorder %v2221, %v2204
    %vm2223 = vcmp.le.s32.totalorder %v2221, %v2205
    %vm2224 = vcmp.le.s32.totalorder %v2221, %v2206
    %vm2225 = vcmp.le.s32.totalorder %v2221, %v2207
    %vm2226 = vcmp.le.s32.totalorder %v2221, %v2208
    %vm2227 = vcmp.le.s32.totalorder %v2221, %v2209
    %vm2228 = vcmp.le.s32.totalorder %v2221, %v2210
    %vm2229 = vcmp.le.s32.totalorder %v2221, %v2211
    %vm2230 = vcmp.le.s32.totalorder %v2221, %v2212
    %vm2231 = vcmp.le.s32.totalorder %v2221, %v2213
    %vm2232 = vcmp.le.s32.totalorder %v2221, %v2214
    %vm2233 = vcmp.le.s32.totalorder %v2221, %v2215
    %vm2234 = vcmp.le.s32.totalorder %v2221, %v2216
    %vm2235 = vcmp.le.s32.totalorder %v2221, %v2217
    %vm2236 = vcmp.le.s32.totalorder %v2221, %v2218
    %vm2237 = vcmp.le.s32.totalorder %v2221, %v2219
    %vm2238 = vcmask 130048
    %v2240 = vsel %vm2238, %v2139, 0
    %v2243 = vsel %vm2238, %v2140, 0
    %v2246 = vsel %vm2238, %v2141, 0
    %v2249 = vsel %vm2238, %v2142, 0
    %v2252 = vsel %vm2238, %v2143, 0
    %v2255 = vsel %vm2238, %v2144, 0
    %v2258 = vsel %vm2238, %v2145, 0
    %v2261 = vsel %vm2238, %v2146, 0
    %v2264 = vsel %vm2238, %v759, 0
    %v2267 = vsel %vm2238, %v760, 0
    %v2270 = vsel %vm2238, %v761, 0
    %v2273 = vsel %vm2238, %v762, 0
    %v2276 = vsel %vm2238, %v763, 0
    %v2279 = vsel %vm2238, %v764, 0
    %v2282 = vsel %vm2238, %v765, 0
    %v2285 = vsel %vm2238, %v766, 0
    %2287 = vmatprep.subr.bf16.mxu0 0
    %2288 = vmatpush1.bf16.xpose.msra.mxu0 %v2264
    %2289 = vmatprep.subr.bf16.mxu0 0
    %2290 = vmatpush1.bf16.xpose.msra.mxu0 %v2267
    %2291 = vmatprep.subr.bf16.mxu0 0
    %2292 = vmatpush1.bf16.xpose.msra.mxu0 %v2270
    %2293 = vmatprep.subr.bf16.mxu0 0
    %2294 = vmatpush1.bf16.xpose.msra.mxu0 %v2273
    %2295 = vmatprep.subr.bf16.mxu0 0
    %2296 = vmatpush1.bf16.xpose.msra.mxu0 %v2276
    %2297 = vmatprep.subr.bf16.mxu0 0
    %2298 = vmatpush1.bf16.xpose.msra.mxu0 %v2279
    %2299 = vmatprep.subr.bf16.mxu0 0
    %2300 = vmatpush1.bf16.xpose.msra.mxu0 %v2282
    %2301 = vmatprep.subr.bf16.mxu0 0
    %2302 = vmatpush1.bf16.xpose.msra.mxu0 %v2285
    %2303 = vmatprep.subr.bf16.mxu0 0
    %2304 = vmatpush1.bf16.xpose.msra.mxu0 0
    %2305 = vmatprep.subr.bf16.mxu0 0
    %2306 = vmatpush1.bf16.xpose.msra.mxu0 0
    %2307 = vmatprep.subr.bf16.mxu0 0
    %2308 = vmatpush1.bf16.xpose.msra.mxu0 0
    %2309 = vmatprep.subr.bf16.mxu0 0
    %2310 = vmatpush1.bf16.xpose.msra.mxu0 0
    %2311 = vmatprep.subr.bf16.mxu0 0
    %2312 = vmatpush1.bf16.xpose.msra.mxu0 0
    %2313 = vmatprep.subr.bf16.mxu0 0
    %2314 = vmatpush1.bf16.xpose.msra.mxu0 0
    %2315 = vmatprep.subr.bf16.mxu0 0
    %2316 = vmatpush1.bf16.xpose.msra.mxu0 0
    %2317 = vmatprep.subr.bf16.mxu0 0
    %2318 = vmatpush1.bf16.xpose.msra.mxu0 0
    %2319 = vmatprep.mubr.bf16.mxu0 0
    %2320 = vmatmul.mubr.bf16.gmra.mrb[0].mxu0 %v2240
    %v2321 = vpop.f32.mrb[0].mxu0
    %v2322 = vadd.f32 0.0, %v2321
    %v2323 = vpop.f32.mrb[0].mxu0
    %v2324 = vpop.f32.mrb[0].mxu0
    %v2325 = vadd.f32 0.0, %v2324
    %v2326 = vpop.f32.mrb[0].mxu0
    %2327 = vmatprep.mubr.bf16.mxu0 0
    %2328 = vmatmul.mubr.bf16.gmra.mrb[0].mxu0 %v2243
    %v2329 = vpop.f32.mrb[0].mxu0
    %v2330 = vadd.f32 0.0, %v2329
    %v2331 = vpop.f32.mrb[0].mxu0
    %v2332 = vpop.f32.mrb[0].mxu0
    %v2333 = vadd.f32 0.0, %v2332
    %v2334 = vpop.f32.mrb[0].mxu0
    %2335 = vmatprep.mubr.bf16.mxu0 0
    %2336 = vmatmul.mubr.bf16.gmra.mrb[0].mxu0 %v2246
    %v2337 = vpop.f32.mrb[0].mxu0
    %v2338 = vadd.f32 0.0, %v2337
    %v2339 = vpop.f32.mrb[0].mxu0
    %v2340 = vpop.f32.mrb[0].mxu0
    %v2341 = vadd.f32 0.0, %v2340
    %v2342 = vpop.f32.mrb[0].mxu0
    %2343 = vmatprep.mubr.bf16.mxu0 0
    %2344 = vmatmul.mubr.bf16.gmra.mrb[0].mxu0 %v2249
    %v2345 = vpop.f32.mrb[0].mxu0
    %v2346 = vadd.f32 0.0, %v2345
    %v2347 = vpop.f32.mrb[0].mxu0
    %v2348 = vpop.f32.mrb[0].mxu0
    %v2349 = vadd.f32 0.0, %v2348
    %v2350 = vpop.f32.mrb[0].mxu0
    %2351 = vmatprep.mubr.bf16.mxu0 0
    %2352 = vmatmul.mubr.bf16.gmra.mrb[0].mxu0 %v2252
    %v2353 = vpop.f32.mrb[0].mxu0
    %v2354 = vadd.f32 0.0, %v2353
    %v2355 = vpop.f32.mrb[0].mxu0
    %v2356 = vpop.f32.mrb[0].mxu0
    %v2357 = vadd.f32 0.0, %v2356
    %v2358 = vpop.f32.mrb[0].mxu0
    %2359 = vmatprep.mubr.bf16.mxu0 0
    %2360 = vmatmul.mubr.bf16.gmra.mrb[0].mxu0 %v2255
    %v2361 = vpop.f32.mrb[0].mxu0
    %v2362 = vadd.f32 0.0, %v2361
    %v2363 = vpop.f32.mrb[0].mxu0
    %v2364 = vpop.f32.mrb[0].mxu0
    %v2365 = vadd.f32 0.0, %v2364
    %v2366 = vpop.f32.mrb[0].mxu0
    %2367 = vmatprep.mubr.bf16.mxu0 0
    %2368 = vmatmul.mubr.bf16.gmra.mrb[0].mxu0 %v2258
    %v2369 = vpop.f32.mrb[0].mxu0
    %v2370 = vadd.f32 0.0, %v2369
    %v2371 = vpop.f32.mrb[0].mxu0
    %v2372 = vpop.f32.mrb[0].mxu0
    %v2373 = vadd.f32 0.0, %v2372
    %v2374 = vpop.f32.mrb[0].mxu0
    %2375 = vmatprep.mubr.bf16.mxu0 0
    %2376 = vmatmul.mubr.bf16.gmra.mrb[0].mxu0 %v2261
    %v2377 = vpop.f32.mrb[0].mxu0
    %v2378 = vadd.f32 0.0, %v2377
    %v2379 = vpop.f32.mrb[0].mxu0
    %v2380 = vpop.f32.mrb[0].mxu0
    %v2381 = vadd.f32 0.0, %v2380
    %v2382 = vpop.f32.mrb[0].mxu0
    %2383 = vdwg.mxu0
    %2384 = vmatprep.subr.bf16.mxu0 0
    %2385 = vmatpush1.bf16.xpose.msra.mxu0 %v543
    %2386 = vmatprep.subr.bf16.mxu0 0
    %2387 = vmatpush1.bf16.xpose.msra.mxu0 %v544
    %2388 = vmatprep.subr.bf16.mxu0 0
    %2389 = vmatpush1.bf16.xpose.msra.mxu0 %v545
    %2390 = vmatprep.subr.bf16.mxu0 0
    %2391 = vmatpush1.bf16.xpose.msra.mxu0 %v546
    %2392 = vmatprep.subr.bf16.mxu0 0
    %2393 = vmatpush1.bf16.xpose.msra.mxu0 %v547
    %2394 = vmatprep.subr.bf16.mxu0 0
    %2395 = vmatpush1.bf16.xpose.msra.mxu0 %v548
    %2396 = vmatprep.subr.bf16.mxu0 0
    %2397 = vmatpush1.bf16.xpose.msra.mxu0 %v549
    %2398 = vmatprep.subr.bf16.mxu0 0
    %2399 = vmatpush1.bf16.xpose.msra.mxu0 %v550
    %2400 = vmatprep.subr.bf16.mxu0 0
    %2401 = vmatpush1.bf16.xpose.msra.mxu0 0
    %2402 = vmatprep.subr.bf16.mxu0 0
    %2403 = vmatpush1.bf16.xpose.msra.mxu0 0
    %2404 = vmatprep.subr.bf16.mxu0 0
    %2405 = vmatpush1.bf16.xpose.msra.mxu0 0
    %2406 = vmatprep.subr.bf16.mxu0 0
    %2407 = vmatpush1.bf16.xpose.msra.mxu0 0
    %2408 = vmatprep.subr.bf16.mxu0 0
    %2409 = vmatpush1.bf16.xpose.msra.mxu0 0
    %2410 = vmatprep.subr.bf16.mxu0 0
    %2411 = vmatpush1.bf16.xpose.msra.mxu0 0
    %2412 = vmatprep.subr.bf16.mxu0 0
    %2413 = vmatpush1.bf16.xpose.msra.mxu0 0
    %2414 = vmatprep.subr.bf16.mxu0 0
    %2415 = vmatpush1.bf16.xpose.msra.mxu0 0
    %2416 = vmatprep.mubr.bf16.mxu0 0
    %2417 = vmatmul.mubr.bf16.gmra.mrb[0].mxu0 %v1737
    %v2418 = vpop.f32.mrb[0].mxu0
    %v2419 = vadd.f32 %v2322, %v2418
    %v2420 = vpop.f32.mrb[0].mxu0
    %v2421 = vpop.f32.mrb[0].mxu0
    %v2422 = vadd.f32 %v2325, %v2421
    %v2423 = vpop.f32.mrb[0].mxu0
    %2424 = vmatprep.mubr.bf16.mxu0 0
    %2425 = vmatmul.mubr.bf16.gmra.mrb[0].mxu0 %v1741
    %v2426 = vpop.f32.mrb[0].mxu0
    %v2427 = vadd.f32 %v2330, %v2426
    %v2428 = vpop.f32.mrb[0].mxu0
    %v2429 = vpop.f32.mrb[0].mxu0
    %v2430 = vadd.f32 %v2333, %v2429
    %v2431 = vpop.f32.mrb[0].mxu0
    %2432 = vmatprep.mubr.bf16.mxu0 0
    %2433 = vmatmul.mubr.bf16.gmra.mrb[0].mxu0 %v1745
    %v2434 = vpop.f32.mrb[0].mxu0
    %v2435 = vadd.f32 %v2338, %v2434
    %v2436 = vpop.f32.mrb[0].mxu0
    %v2437 = vpop.f32.mrb[0].mxu0
    %v2438 = vadd.f32 %v2341, %v2437
    %v2439 = vpop.f32.mrb[0].mxu0
    %2440 = vmatprep.mubr.bf16.mxu0 0
    %2441 = vmatmul.mubr.bf16.gmra.mrb[0].mxu0 %v1749
    %v2442 = vpop.f32.mrb[0].mxu0
    %v2443 = vadd.f32 %v2346, %v2442
    %v2444 = vpop.f32.mrb[0].mxu0
    %v2445 = vpop.f32.mrb[0].mxu0
    %v2446 = vadd.f32 %v2349, %v2445
    %v2447 = vpop.f32.mrb[0].mxu0
    %2448 = vmatprep.mubr.bf16.mxu0 0
    %2449 = vmatmul.mubr.bf16.gmra.mrb[0].mxu0 %v1753
    %v2450 = vpop.f32.mrb[0].mxu0
    %v2451 = vadd.f32 %v2354, %v2450
    %v2452 = vpop.f32.mrb[0].mxu0
    %v2453 = vpop.f32.mrb[0].mxu0
    %v2454 = vadd.f32 %v2357, %v2453
    %v2455 = vpop.f32.mrb[0].mxu0
    %2456 = vmatprep.mubr.bf16.mxu0 0
    %2457 = vmatmul.mubr.bf16.gmra.mrb[0].mxu0 %v1757
    %v2458 = vpop.f32.mrb[0].mxu0
    %v2459 = vadd.f32 %v2362, %v2458
    %v2460 = vpop.f32.mrb[0].mxu0
    %v2461 = vpop.f32.mrb[0].mxu0
    %v2462 = vadd.f32 %v2365, %v2461
    %v2463 = vpop.f32.mrb[0].mxu0
    %2464 = vmatprep.mubr.bf16.mxu0 0
    %2465 = vmatmul.mubr.bf16.gmra.mrb[0].mxu0 %v1761
    %v2466 = vpop.f32.mrb[0].mxu0
    %v2467 = vadd.f32 %v2370, %v2466
    %v2468 = vpop.f32.mrb[0].mxu0
    %v2469 = vpop.f32.mrb[0].mxu0
    %v2470 = vadd.f32 %v2373, %v2469
    %v2471 = vpop.f32.mrb[0].mxu0
    %2472 = vmatprep.mubr.bf16.mxu0 0
    %2473 = vmatmul.mubr.bf16.gmra.mrb[0].mxu0 %v1765
    %v2474 = vpop.f32.mrb[0].mxu0
    %v2475 = vadd.f32 %v2378, %v2474
    %v2476 = vpop.f32.mrb[0].mxu0
    %v2477 = vpop.f32.mrb[0].mxu0
    %v2478 = vadd.f32 %v2381, %v2477
    %v2479 = vpop.f32.mrb[0].mxu0
    %2480 = vdwg.mxu0
    %2489 = vrot.lane.b32.xlu0 %v943, 112
    %v2490 = vpop.permute.xlu0 %2489
    %2491 = vrot.lane.b32.xlu0 %v944, 112
    %v2492 = vpop.permute.xlu0 %2491
    %2493 = vrot.lane.b32.xlu0 %v945, 112
    %v2494 = vpop.permute.xlu0 %2493
    %2495 = vrot.lane.b32.xlu0 %v946, 112
    %v2496 = vpop.permute.xlu0 %2495
    %2497 = vrot.lane.b32.xlu0 %v947, 112
    %v2498 = vpop.permute.xlu0 %2497
    %2499 = vrot.lane.b32.xlu0 %v948, 112
    %v2500 = vpop.permute.xlu0 %2499
    %2501 = vrot.lane.b32.xlu0 %v949, 112
    %v2502 = vpop.permute.xlu0 %2501
    %2503 = vrot.lane.b32.xlu0 %v950, 112
    %v2504 = vpop.permute.xlu0 %2503
    %v2506 = vsel %vm2238, %v2195, 0
    %v2509 = vsel %vm2238, %v2196, 0
    %v2512 = vsel %vm2238, %v2197, 0
    %v2515 = vsel %vm2238, %v2198, 0
    %v2518 = vsel %vm2238, %v2199, 0
    %v2521 = vsel %vm2238, %v2200, 0
    %v2524 = vsel %vm2238, %v2201, 0
    %v2527 = vsel %vm2238, %v2202, 0
    %v2530 = vsel %vm2238, %v2490, 0
    %v2533 = vsel %vm2238, %v2492, 0
    %v2536 = vsel %vm2238, %v2494, 0
    %v2539 = vsel %vm2238, %v2496, 0
    %v2542 = vsel %vm2238, %v2498, 0
    %v2545 = vsel %vm2238, %v2500, 0
    %v2548 = vsel %vm2238, %v2502, 0
    %v2551 = vsel %vm2238, %v2504, 0
    %2553 = vmatprep.subr.bf16.mxu0 0
    %2554 = vmatpush1.bf16.xpose.msra.mxu0 %v2530
    %2555 = vmatprep.subr.bf16.mxu0 0
    %2556 = vmatpush1.bf16.xpose.msra.mxu0 %v2533
    %2557 = vmatprep.subr.bf16.mxu0 0
    %2558 = vmatpush1.bf16.xpose.msra.mxu0 %v2536
    %2559 = vmatprep.subr.bf16.mxu0 0
    %2560 = vmatpush1.bf16.xpose.msra.mxu0 %v2539
    %2561 = vmatprep.subr.bf16.mxu0 0
    %2562 = vmatpush1.bf16.xpose.msra.mxu0 %v2542
    %2563 = vmatprep.subr.bf16.mxu0 0
    %2564 = vmatpush1.bf16.xpose.msra.mxu0 %v2545
    %2565 = vmatprep.subr.bf16.mxu0 0
    %2566 = vmatpush1.bf16.xpose.msra.mxu0 %v2548
    %2567 = vmatprep.subr.bf16.mxu0 0
    %2568 = vmatpush1.bf16.xpose.msra.mxu0 %v2551
    %2569 = vmatprep.subr.bf16.mxu0 0
    %2570 = vmatpush1.bf16.xpose.msra.mxu0 0
    %2571 = vmatprep.subr.bf16.mxu0 0
    %2572 = vmatpush1.bf16.xpose.msra.mxu0 0
    %2573 = vmatprep.subr.bf16.mxu0 0
    %2574 = vmatpush1.bf16.xpose.msra.mxu0 0
    %2575 = vmatprep.subr.bf16.mxu0 0
    %2576 = vmatpush1.bf16.xpose.msra.mxu0 0
    %2577 = vmatprep.subr.bf16.mxu0 0
    %2578 = vmatpush1.bf16.xpose.msra.mxu0 0
    %2579 = vmatprep.subr.bf16.mxu0 0
    %2580 = vmatpush1.bf16.xpose.msra.mxu0 0
    %2581 = vmatprep.subr.bf16.mxu0 0
    %2582 = vmatpush1.bf16.xpose.msra.mxu0 0
    %2583 = vmatprep.subr.bf16.mxu0 0
    %2584 = vmatpush1.bf16.xpose.msra.mxu0 0
    %2585 = vmatprep.mubr.bf16.mxu0 0
    %2586 = vmatmul.mubr.bf16.gmra.mrb[0].mxu0 %v2506
    %v2587 = vpop.f32.mrb[0].mxu0
    %v2588 = vadd.f32 0.0, %v2587
    %v2589 = vpop.f32.mrb[0].mxu0
    %v2590 = vpop.f32.mrb[0].mxu0
    %v2591 = vadd.f32 0.0, %v2590
    %v2592 = vpop.f32.mrb[0].mxu0
    %2593 = vmatprep.mubr.bf16.mxu0 0
    %2594 = vmatmul.mubr.bf16.gmra.mrb[0].mxu0 %v2509
    %v2595 = vpop.f32.mrb[0].mxu0
    %v2596 = vadd.f32 0.0, %v2595
    %v2597 = vpop.f32.mrb[0].mxu0
    %v2598 = vpop.f32.mrb[0].mxu0
    %v2599 = vadd.f32 0.0, %v2598
    %v2600 = vpop.f32.mrb[0].mxu0
    %2601 = vmatprep.mubr.bf16.mxu0 0
    %2602 = vmatmul.mubr.bf16.gmra.mrb[0].mxu0 %v2512
    %v2603 = vpop.f32.mrb[0].mxu0
    %v2604 = vadd.f32 0.0, %v2603
    %v2605 = vpop.f32.mrb[0].mxu0
    %v2606 = vpop.f32.mrb[0].mxu0
    %v2607 = vadd.f32 0.0, %v2606
    %v2608 = vpop.f32.mrb[0].mxu0
    %2609 = vmatprep.mubr.bf16.mxu0 0
    %2610 = vmatmul.mubr.bf16.gmra.mrb[0].mxu0 %v2515
    %v2611 = vpop.f32.mrb[0].mxu0
    %v2612 = vadd.f32 0.0, %v2611
    %v2613 = vpop.f32.mrb[0].mxu0
    %v2614 = vpop.f32.mrb[0].mxu0
    %v2615 = vadd.f32 0.0, %v2614
    %v2616 = vpop.f32.mrb[0].mxu0
    %2617 = vmatprep.mubr.bf16.mxu0 0
    %2618 = vmatmul.mubr.bf16.gmra.mrb[0].mxu0 %v2518
    %v2619 = vpop.f32.mrb[0].mxu0
    %v2620 = vadd.f32 0.0, %v2619
    %v2621 = vpop.f32.mrb[0].mxu0
    %v2622 = vpop.f32.mrb[0].mxu0
    %v2623 = vadd.f32 0.0, %v2622
    %v2624 = vpop.f32.mrb[0].mxu0
    %2625 = vmatprep.mubr.bf16.mxu0 0
    %2626 = vmatmul.mubr.bf16.gmra.mrb[0].mxu0 %v2521
    %v2627 = vpop.f32.mrb[0].mxu0
    %v2628 = vadd.f32 0.0, %v2627
    %v2629 = vpop.f32.mrb[0].mxu0
    %v2630 = vpop.f32.mrb[0].mxu0
    %v2631 = vadd.f32 0.0, %v2630
    %v2632 = vpop.f32.mrb[0].mxu0
    %2633 = vmatprep.mubr.bf16.mxu0 0
    %2634 = vmatmul.mubr.bf16.gmra.mrb[0].mxu0 %v2524
    %v2635 = vpop.f32.mrb[0].mxu0
    %v2636 = vadd.f32 0.0, %v2635
    %v2637 = vpop.f32.mrb[0].mxu0
    %v2638 = vpop.f32.mrb[0].mxu0
    %v2639 = vadd.f32 0.0, %v2638
    %v2640 = vpop.f32.mrb[0].mxu0
    %2641 = vmatprep.mubr.bf16.mxu0 0
    %2642 = vmatmul.mubr.bf16.gmra.mrb[0].mxu0 %v2527
    %v2643 = vpop.f32.mrb[0].mxu0
    %v2644 = vadd.f32 0.0, %v2643
    %v2645 = vpop.f32.mrb[0].mxu0
    %v2646 = vpop.f32.mrb[0].mxu0
    %v2647 = vadd.f32 0.0, %v2646
    %v2648 = vpop.f32.mrb[0].mxu0
    %2649 = vdwg.mxu0
    %v2650 = vadd.f32 %v2419, %v2588
    %v2651 = vadd.f32 %v2422, %v2591
    %v2652 = vadd.f32 %v2427, %v2596
    %v2653 = vadd.f32 %v2430, %v2599
    %v2654 = vadd.f32 %v2435, %v2604
    %v2655 = vadd.f32 %v2438, %v2607
    %v2656 = vadd.f32 %v2443, %v2612
    %v2657 = vadd.f32 %v2446, %v2615
    %v2658 = vadd.f32 %v2451, %v2620
    %v2659 = vadd.f32 %v2454, %v2623
    %v2660 = vadd.f32 %v2459, %v2628
    %v2661 = vadd.f32 %v2462, %v2631
    %v2662 = vadd.f32 %v2467, %v2636
    %v2663 = vadd.f32 %v2470, %v2639
    %v2664 = vadd.f32 %v2475, %v2644
    %v2665 = vadd.f32 %v2478, %v2647
    %v2666 = vsel %vm2222, %v2650, -1e+30
    %v2667 = vsel %vm2223, %v2651, -1e+30
    %v2668 = vsel %vm2224, %v2652, -1e+30
    %v2669 = vsel %vm2225, %v2653, -1e+30
    %v2670 = vsel %vm2226, %v2654, -1e+30
    %v2671 = vsel %vm2227, %v2655, -1e+30
    %v2672 = vsel %vm2228, %v2656, -1e+30
    %v2673 = vsel %vm2229, %v2657, -1e+30
    %v2674 = vsel %vm2230, %v2658, -1e+30
    %v2675 = vsel %vm2231, %v2659, -1e+30
    %v2676 = vsel %vm2232, %v2660, -1e+30
    %v2677 = vsel %vm2233, %v2661, -1e+30
    %v2678 = vsel %vm2234, %v2662, -1e+30
    %v2679 = vsel %vm2235, %v2663, -1e+30
    %v2680 = vsel %vm2236, %v2664, -1e+30
    %v2681 = vsel %vm2237, %v2665, -1e+30
    %2682 = vmax.xlane.f32.xlu0 %v2666
    %v2683 = vpop.xlane.xlu0 %2682
    %2684 = vmax.xlane.f32.xlu0 %v2667
    %v2685 = vpop.xlane.xlu0 %2684
    %2686 = vmax.xlane.f32.xlu0 %v2668
    %v2687 = vpop.xlane.xlu0 %2686
    %2688 = vmax.xlane.f32.xlu0 %v2669
    %v2689 = vpop.xlane.xlu0 %2688
    %2690 = vmax.xlane.f32.xlu0 %v2670
    %v2691 = vpop.xlane.xlu0 %2690
    %2692 = vmax.xlane.f32.xlu0 %v2671
    %v2693 = vpop.xlane.xlu0 %2692
    %2694 = vmax.xlane.f32.xlu0 %v2672
    %v2695 = vpop.xlane.xlu0 %2694
    %2696 = vmax.xlane.f32.xlu0 %v2673
    %v2697 = vpop.xlane.xlu0 %2696
    %2698 = vmax.xlane.f32.xlu0 %v2674
    %v2699 = vpop.xlane.xlu0 %2698
    %2700 = vmax.xlane.f32.xlu0 %v2675
    %v2701 = vpop.xlane.xlu0 %2700
    %2702 = vmax.xlane.f32.xlu0 %v2676
    %v2703 = vpop.xlane.xlu0 %2702
    %2704 = vmax.xlane.f32.xlu0 %v2677
    %v2705 = vpop.xlane.xlu0 %2704
    %2706 = vmax.xlane.f32.xlu0 %v2678
    %v2707 = vpop.xlane.xlu0 %2706
    %2708 = vmax.xlane.f32.xlu0 %v2679
    %v2709 = vpop.xlane.xlu0 %2708
    %2710 = vmax.xlane.f32.xlu0 %v2680
    %v2711 = vpop.xlane.xlu0 %2710
    %2712 = vmax.xlane.f32.xlu0 %v2681
    %v2713 = vpop.xlane.xlu0 %2712
    %v2714 = vsub.f32 %v2666, %v2683
    %v2715 = vsub.f32 %v2667, %v2685
    %v2716 = vsub.f32 %v2668, %v2687
    %v2717 = vsub.f32 %v2669, %v2689
    %v2718 = vsub.f32 %v2670, %v2691
    %v2719 = vsub.f32 %v2671, %v2693
    %v2720 = vsub.f32 %v2672, %v2695
    %v2721 = vsub.f32 %v2673, %v2697
    %v2722 = vsub.f32 %v2674, %v2699
    %v2723 = vsub.f32 %v2675, %v2701
    %v2724 = vsub.f32 %v2676, %v2703
    %v2725 = vsub.f32 %v2677, %v2705
    %v2726 = vsub.f32 %v2678, %v2707
    %v2727 = vsub.f32 %v2679, %v2709
    %v2728 = vsub.f32 %v2680, %v2711
    %v2729 = vsub.f32 %v2681, %v2713
    %v2730 = vmul.f32 %v2714, 1.442695
    %v2731 = vpow.pop %v2730
    %v2732 = vmul.f32 %v2715, 1.442695
    %v2733 = vpow.pop %v2732
    %v2734 = vmul.f32 %v2716, 1.442695
    %v2735 = vpow.pop %v2734
    %v2736 = vmul.f32 %v2717, 1.442695
    %v2737 = vpow.pop %v2736
    %v2738 = vmul.f32 %v2718, 1.442695
    %v2739 = vpow.pop %v2738
    %v2740 = vmul.f32 %v2719, 1.442695
    %v2741 = vpow.pop %v2740
    %v2742 = vmul.f32 %v2720, 1.442695
    %v2743 = vpow.pop %v2742
    %v2744 = vmul.f32 %v2721, 1.442695
    %v2745 = vpow.pop %v2744
    %v2746 = vmul.f32 %v2722, 1.442695
    %v2747 = vpow.pop %v2746
    %v2748 = vmul.f32 %v2723, 1.442695
    %v2749 = vpow.pop %v2748
    %v2750 = vmul.f32 %v2724, 1.442695
    %v2751 = vpow.pop %v2750
    %v2752 = vmul.f32 %v2725, 1.442695
    %v2753 = vpow.pop %v2752
    %v2754 = vmul.f32 %v2726, 1.442695
    %v2755 = vpow.pop %v2754
    %v2756 = vmul.f32 %v2727, 1.442695
    %v2757 = vpow.pop %v2756
    %v2758 = vmul.f32 %v2728, 1.442695
    %v2759 = vpow.pop %v2758
    %v2760 = vmul.f32 %v2729, 1.442695
    %v2761 = vpow.pop %v2760
    %2762 = vadd.xlane.f32.xlu0 %v2731
    %v2763 = vpop.xlane.xlu0 %2762
    %2764 = vadd.xlane.f32.xlu0 %v2733
    %v2765 = vpop.xlane.xlu0 %2764
    %2766 = vadd.xlane.f32.xlu0 %v2735
    %v2767 = vpop.xlane.xlu0 %2766
    %2768 = vadd.xlane.f32.xlu0 %v2737
    %v2769 = vpop.xlane.xlu0 %2768
    %2770 = vadd.xlane.f32.xlu0 %v2739
    %v2771 = vpop.xlane.xlu0 %2770
    %2772 = vadd.xlane.f32.xlu0 %v2741
    %v2773 = vpop.xlane.xlu0 %2772
    %2774 = vadd.xlane.f32.xlu0 %v2743
    %v2775 = vpop.xlane.xlu0 %2774
    %2776 = vadd.xlane.f32.xlu0 %v2745
    %v2777 = vpop.xlane.xlu0 %2776
    %2778 = vadd.xlane.f32.xlu0 %v2747
    %v2779 = vpop.xlane.xlu0 %2778
    %2780 = vadd.xlane.f32.xlu0 %v2749
    %v2781 = vpop.xlane.xlu0 %2780
    %2782 = vadd.xlane.f32.xlu0 %v2751
    %v2783 = vpop.xlane.xlu0 %2782
    %2784 = vadd.xlane.f32.xlu0 %v2753
    %v2785 = vpop.xlane.xlu0 %2784
    %2786 = vadd.xlane.f32.xlu0 %v2755
    %v2787 = vpop.xlane.xlu0 %2786
    %2788 = vadd.xlane.f32.xlu0 %v2757
    %v2789 = vpop.xlane.xlu0 %2788
    %2790 = vadd.xlane.f32.xlu0 %v2759
    %v2791 = vpop.xlane.xlu0 %2790
    %2792 = vadd.xlane.f32.xlu0 %v2761
    %v2793 = vpop.xlane.xlu0 %2792
    %v2794 = vrcp.pop %v2763
    %v2795 = vmul.f32 %v2731, %v2794
    %v2796 = vrcp.pop %v2765
    %v2797 = vmul.f32 %v2733, %v2796
    %v2798 = vrcp.pop %v2767
    %v2799 = vmul.f32 %v2735, %v2798
    %v2800 = vrcp.pop %v2769
    %v2801 = vmul.f32 %v2737, %v2800
    %v2802 = vrcp.pop %v2771
    %v2803 = vmul.f32 %v2739, %v2802
    %v2804 = vrcp.pop %v2773
    %v2805 = vmul.f32 %v2741, %v2804
    %v2806 = vrcp.pop %v2775
    %v2807 = vmul.f32 %v2743, %v2806
    %v2808 = vrcp.pop %v2777
    %v2809 = vmul.f32 %v2745, %v2808
    %v2810 = vrcp.pop %v2779
    %v2811 = vmul.f32 %v2747, %v2810
    %v2812 = vrcp.pop %v2781
    %v2813 = vmul.f32 %v2749, %v2812
    %v2814 = vrcp.pop %v2783
    %v2815 = vmul.f32 %v2751, %v2814
    %v2816 = vrcp.pop %v2785
    %v2817 = vmul.f32 %v2753, %v2816
    %v2818 = vrcp.pop %v2787
    %v2819 = vmul.f32 %v2755, %v2818
    %v2820 = vrcp.pop %v2789
    %v2821 = vmul.f32 %v2757, %v2820
    %v2822 = vrcp.pop %v2791
    %v2823 = vmul.f32 %v2759, %v2822
    %v2824 = vrcp.pop %v2793
    %v2825 = vmul.f32 %v2761, %v2824
    %v2826 = vpack.c.bf16 %v2797, %v2795
    %v2827 = vpack.c.bf16 %v2801, %v2799
    %v2828 = vpack.c.bf16 %v2805, %v2803
    %v2829 = vpack.c.bf16 %v2809, %v2807
    %v2830 = vpack.c.bf16 %v2813, %v2811
    %v2831 = vpack.c.bf16 %v2817, %v2815
    %v2832 = vpack.c.bf16 %v2821, %v2819
    %v2833 = vpack.c.bf16 %v2825, %v2823
    %2834 = vmatprep.subr.bf16.mxu0 0
    %2835 = vmatpush1.bf16.msra.mxu0 %v543
    %2836 = vmatprep.subr.bf16.mxu0 0
    %2837 = vmatpush1.bf16.msra.mxu0 %v544
    %2838 = vmatprep.subr.bf16.mxu0 0
    %2839 = vmatpush1.bf16.msra.mxu0 %v545
    %2840 = vmatprep.subr.bf16.mxu0 0
    %2841 = vmatpush1.bf16.msra.mxu0 %v546
    %2842 = vmatprep.subr.bf16.mxu0 0
    %2843 = vmatpush1.bf16.msra.mxu0 %v547
    %2844 = vmatprep.subr.bf16.mxu0 0
    %2845 = vmatpush1.bf16.msra.mxu0 %v548
    %2846 = vmatprep.subr.bf16.mxu0 0
    %2847 = vmatpush1.bf16.msra.mxu0 %v549
    %2848 = vmatprep.subr.bf16.mxu0 0
    %2849 = vmatpush1.bf16.msra.mxu0 %v550
    %2850 = vmatprep.subr.bf16.mxu0 0
    %2851 = vmatpush1.bf16.msra.mxu0 0
    %2852 = vmatprep.subr.bf16.mxu0 0
    %2853 = vmatpush1.bf16.msra.mxu0 0
    %2854 = vmatprep.subr.bf16.mxu0 0
    %2855 = vmatpush1.bf16.msra.mxu0 0
    %2856 = vmatprep.subr.bf16.mxu0 0
    %2857 = vmatpush1.bf16.msra.mxu0 0
    %2858 = vmatprep.subr.bf16.mxu0 0
    %2859 = vmatpush1.bf16.msra.mxu0 0
    %2860 = vmatprep.subr.bf16.mxu0 0
    %2861 = vmatpush1.bf16.msra.mxu0 0
    %2862 = vmatprep.subr.bf16.mxu0 0
    %2863 = vmatpush1.bf16.msra.mxu0 0
    %2864 = vmatprep.subr.bf16.mxu0 0
    %2865 = vmatpush1.bf16.msra.mxu0 0
    %2866 = vmatprep.mubr.bf16.mxu0 0
    %2867 = vmatmul.mubr.bf16.gmra.mrb[0].mxu0 %v2826
    %v2868 = vpop.f32.mrb[0].mxu0
    %v2869 = vadd.f32 0.0, %v2868
    %v2870 = vpop.f32.mrb[0].mxu0
    %v2871 = vpop.f32.mrb[0].mxu0
    %v2872 = vadd.f32 0.0, %v2871
    %v2873 = vpop.f32.mrb[0].mxu0
    %2874 = vmatprep.mubr.bf16.mxu0 0
    %2875 = vmatmul.mubr.bf16.gmra.mrb[0].mxu0 %v2827
    %v2876 = vpop.f32.mrb[0].mxu0
    %v2877 = vadd.f32 0.0, %v2876
    %v2878 = vpop.f32.mrb[0].mxu0
    %v2879 = vpop.f32.mrb[0].mxu0
    %v2880 = vadd.f32 0.0, %v2879
    %v2881 = vpop.f32.mrb[0].mxu0
    %2882 = vmatprep.mubr.bf16.mxu0 0
    %2883 = vmatmul.mubr.bf16.gmra.mrb[0].mxu0 %v2828
    %v2884 = vpop.f32.mrb[0].mxu0
    %v2885 = vadd.f32 0.0, %v2884
    %v2886 = vpop.f32.mrb[0].mxu0
    %v2887 = vpop.f32.mrb[0].mxu0
    %v2888 = vadd.f32 0.0, %v2887
    %v2889 = vpop.f32.mrb[0].mxu0
    %2890 = vmatprep.mubr.bf16.mxu0 0
    %2891 = vmatmul.mubr.bf16.gmra.mrb[0].mxu0 %v2829
    %v2892 = vpop.f32.mrb[0].mxu0
    %v2893 = vadd.f32 0.0, %v2892
    %v2894 = vpop.f32.mrb[0].mxu0
    %v2895 = vpop.f32.mrb[0].mxu0
    %v2896 = vadd.f32 0.0, %v2895
    %v2897 = vpop.f32.mrb[0].mxu0
    %2898 = vmatprep.mubr.bf16.mxu0 0
    %2899 = vmatmul.mubr.bf16.gmra.mrb[0].mxu0 %v2830
    %v2900 = vpop.f32.mrb[0].mxu0
    %v2901 = vadd.f32 0.0, %v2900
    %v2902 = vpop.f32.mrb[0].mxu0
    %v2903 = vpop.f32.mrb[0].mxu0
    %v2904 = vadd.f32 0.0, %v2903
    %v2905 = vpop.f32.mrb[0].mxu0
    %2906 = vmatprep.mubr.bf16.mxu0 0
    %2907 = vmatmul.mubr.bf16.gmra.mrb[0].mxu0 %v2831
    %v2908 = vpop.f32.mrb[0].mxu0
    %v2909 = vadd.f32 0.0, %v2908
    %v2910 = vpop.f32.mrb[0].mxu0
    %v2911 = vpop.f32.mrb[0].mxu0
    %v2912 = vadd.f32 0.0, %v2911
    %v2913 = vpop.f32.mrb[0].mxu0
    %2914 = vmatprep.mubr.bf16.mxu0 0
    %2915 = vmatmul.mubr.bf16.gmra.mrb[0].mxu0 %v2832
    %v2916 = vpop.f32.mrb[0].mxu0
    %v2917 = vadd.f32 0.0, %v2916
    %v2918 = vpop.f32.mrb[0].mxu0
    %v2919 = vpop.f32.mrb[0].mxu0
    %v2920 = vadd.f32 0.0, %v2919
    %v2921 = vpop.f32.mrb[0].mxu0
    %2922 = vmatprep.mubr.bf16.mxu0 0
    %2923 = vmatmul.mubr.bf16.gmra.mrb[0].mxu0 %v2833
    %v2924 = vpop.f32.mrb[0].mxu0
    %v2925 = vadd.f32 0.0, %v2924
    %v2926 = vpop.f32.mrb[0].mxu0
    %v2927 = vpop.f32.mrb[0].mxu0
    %v2928 = vadd.f32 0.0, %v2927
    %v2929 = vpop.f32.mrb[0].mxu0
    %2930 = vdwg.mxu0
    %v2931 = vpack.c.bf16 %v2872, %v2869
    %v2932 = vpack.c.bf16 %v2880, %v2877
    %v2933 = vpack.c.bf16 %v2888, %v2885
    %v2934 = vpack.c.bf16 %v2896, %v2893
    %v2935 = vpack.c.bf16 %v2904, %v2901
    %v2936 = vpack.c.bf16 %v2912, %v2909
    %v2937 = vpack.c.bf16 %v2920, %v2917
    %v2938 = vpack.c.bf16 %v2928, %v2925
    %v2939 = vld [vmem:[%s8] sm:$0xff]
    %v2940 = vld [vmem:[%s8 + $0x8] sm:$0xff]
    %v2941 = vld [vmem:[%s8 + $0x10] sm:$0xff]
    %v2942 = vld [vmem:[%s8 + $0x18] sm:$0xff]
    %v2943 = vld [vmem:[%s8 + $0x20] sm:$0xff]
    %v2944 = vld [vmem:[%s8 + $0x28] sm:$0xff]
    %v2945 = vld [vmem:[%s8 + $0x30] sm:$0xff]
    %v2946 = vld [vmem:[%s8 + $0x38] sm:$0xff]
    %v2947 = vld [vmem:[%s8 + $0x40] sm:$0xff]
    %v2948 = vld [vmem:[%s8 + $0x48] sm:$0xff]
    %v2949 = vld [vmem:[%s8 + $0x50] sm:$0xff]
    %v2950 = vld [vmem:[%s8 + $0x58] sm:$0xff]
    %v2951 = vld [vmem:[%s8 + $0x60] sm:$0xff]
    %v2952 = vld [vmem:[%s8 + $0x68] sm:$0xff]
    %v2953 = vld [vmem:[%s8 + $0x70] sm:$0xff]
    %v2954 = vld [vmem:[%s8 + $0x78] sm:$0xff]
    %2963 = vrot.lane.b32.xlu0 %v2139, 112
    %v2964 = vpop.permute.xlu0 %2963
    %2965 = vrot.lane.b32.xlu0 %v2140, 112
    %v2966 = vpop.permute.xlu0 %2965
    %2967 = vrot.lane.b32.xlu0 %v2141, 112
    %v2968 = vpop.permute.xlu0 %2967
    %2969 = vrot.lane.b32.xlu0 %v2142, 112
    %v2970 = vpop.permute.xlu0 %2969
    %2971 = vrot.lane.b32.xlu0 %v2143, 112
    %v2972 = vpop.permute.xlu0 %2971
    %2973 = vrot.lane.b32.xlu0 %v2144, 112
    %v2974 = vpop.permute.xlu0 %2973
    %2975 = vrot.lane.b32.xlu0 %v2145, 112
    %v2976 = vpop.permute.xlu0 %2975
    %2977 = vrot.lane.b32.xlu0 %v2146, 112
    %v2978 = vpop.permute.xlu0 %2977
    %v2980 = vsel %vm2238, %v2964, 0
    %v2983 = vsel %vm2238, %v2966, 0
    %v2986 = vsel %vm2238, %v2968, 0
    %v2989 = vsel %vm2238, %v2970, 0
    %v2992 = vsel %vm2238, %v2972, 0
    %v2995 = vsel %vm2238, %v2974, 0
    %v2998 = vsel %vm2238, %v2976, 0
    %v3001 = vsel %vm2238, %v2978, 0
    %3003 = vmatprep.subr.bf16.mxu0 0
    %3004 = vmatpush1.bf16.xpose.msra.mxu0 %v2264
    %3005 = vmatprep.subr.bf16.mxu0 0
    %3006 = vmatpush1.bf16.xpose.msra.mxu0 %v2267
    %3007 = vmatprep.subr.bf16.mxu0 0
    %3008 = vmatpush1.bf16.xpose.msra.mxu0 %v2270
    %3009 = vmatprep.subr.bf16.mxu0 0
    %3010 = vmatpush1.bf16.xpose.msra.mxu0 %v2273
    %3011 = vmatprep.subr.bf16.mxu0 0
    %3012 = vmatpush1.bf16.xpose.msra.mxu0 %v2276
    %3013 = vmatprep.subr.bf16.mxu0 0
    %3014 = vmatpush1.bf16.xpose.msra.mxu0 %v2279
    %3015 = vmatprep.subr.bf16.mxu0 0
    %3016 = vmatpush1.bf16.xpose.msra.mxu0 %v2282
    %3017 = vmatprep.subr.bf16.mxu0 0
    %3018 = vmatpush1.bf16.xpose.msra.mxu0 %v2285
    %3019 = vmatprep.subr.bf16.mxu0 0
    %3020 = vmatpush1.bf16.xpose.msra.mxu0 0
    %3021 = vmatprep.subr.bf16.mxu0 0
    %3022 = vmatpush1.bf16.xpose.msra.mxu0 0
    %3023 = vmatprep.subr.bf16.mxu0 0
    %3024 = vmatpush1.bf16.xpose.msra.mxu0 0
    %3025 = vmatprep.subr.bf16.mxu0 0
    %3026 = vmatpush1.bf16.xpose.msra.mxu0 0
    %3027 = vmatprep.subr.bf16.mxu0 0
    %3028 = vmatpush1.bf16.xpose.msra.mxu0 0
    %3029 = vmatprep.subr.bf16.mxu0 0
    %3030 = vmatpush1.bf16.xpose.msra.mxu0 0
    %3031 = vmatprep.subr.bf16.mxu0 0
    %3032 = vmatpush1.bf16.xpose.msra.mxu0 0
    %3033 = vmatprep.subr.bf16.mxu0 0
    %3034 = vmatpush1.bf16.xpose.msra.mxu0 0
    %3035 = vmatprep.mubr.bf16.mxu0 0
    %3036 = vmatmul.mubr.bf16.gmra.mrb[0].mxu0 %v2980
    %v3037 = vpop.f32.mrb[0].mxu0
    %v3038 = vadd.f32 0.0, %v3037
    %v3039 = vpop.f32.mrb[0].mxu0
    %v3040 = vpop.f32.mrb[0].mxu0
    %v3041 = vadd.f32 0.0, %v3040
    %v3042 = vpop.f32.mrb[0].mxu0
    %3043 = vmatprep.mubr.bf16.mxu0 0
    %3044 = vmatmul.mubr.bf16.gmra.mrb[0].mxu0 %v2983
    %v3045 = vpop.f32.mrb[0].mxu0
    %v3046 = vadd.f32 0.0, %v3045
    %v3047 = vpop.f32.mrb[0].mxu0
    %v3048 = vpop.f32.mrb[0].mxu0
    %v3049 = vadd.f32 0.0, %v3048
    %v3050 = vpop.f32.mrb[0].mxu0
    %3051 = vmatprep.mubr.bf16.mxu0 0
    %3052 = vmatmul.mubr.bf16.gmra.mrb[0].mxu0 %v2986
    %v3053 = vpop.f32.mrb[0].mxu0
    %v3054 = vadd.f32 0.0, %v3053
    %v3055 = vpop.f32.mrb[0].mxu0
    %v3056 = vpop.f32.mrb[0].mxu0
    %v3057 = vadd.f32 0.0, %v3056
    %v3058 = vpop.f32.mrb[0].mxu0
    %3059 = vmatprep.mubr.bf16.mxu0 0
    %3060 = vmatmul.mubr.bf16.gmra.mrb[0].mxu0 %v2989
    %v3061 = vpop.f32.mrb[0].mxu0
    %v3062 = vadd.f32 0.0, %v3061
    %v3063 = vpop.f32.mrb[0].mxu0
    %v3064 = vpop.f32.mrb[0].mxu0
    %v3065 = vadd.f32 0.0, %v3064
    %v3066 = vpop.f32.mrb[0].mxu0
    %3067 = vmatprep.mubr.bf16.mxu0 0
    %3068 = vmatmul.mubr.bf16.gmra.mrb[0].mxu0 %v2992
    %v3069 = vpop.f32.mrb[0].mxu0
    %v3070 = vadd.f32 0.0, %v3069
    %v3071 = vpop.f32.mrb[0].mxu0
    %v3072 = vpop.f32.mrb[0].mxu0
    %v3073 = vadd.f32 0.0, %v3072
    %v3074 = vpop.f32.mrb[0].mxu0
    %3075 = vmatprep.mubr.bf16.mxu0 0
    %3076 = vmatmul.mubr.bf16.gmra.mrb[0].mxu0 %v2995
    %v3077 = vpop.f32.mrb[0].mxu0
    %v3078 = vadd.f32 0.0, %v3077
    %v3079 = vpop.f32.mrb[0].mxu0
    %v3080 = vpop.f32.mrb[0].mxu0
    %v3081 = vadd.f32 0.0, %v3080
    %v3082 = vpop.f32.mrb[0].mxu0
    %3083 = vmatprep.mubr.bf16.mxu0 0
    %3084 = vmatmul.mubr.bf16.gmra.mrb[0].mxu0 %v2998
    %v3085 = vpop.f32.mrb[0].mxu0
    %v3086 = vadd.f32 0.0, %v3085
    %v3087 = vpop.f32.mrb[0].mxu0
    %v3088 = vpop.f32.mrb[0].mxu0
    %v3089 = vadd.f32 0.0, %v3088
    %v3090 = vpop.f32.mrb[0].mxu0
    %3091 = vmatprep.mubr.bf16.mxu0 0
    %3092 = vmatmul.mubr.bf16.gmra.mrb[0].mxu0 %v3001
    %v3093 = vpop.f32.mrb[0].mxu0
    %v3094 = vadd.f32 0.0, %v3093
    %v3095 = vpop.f32.mrb[0].mxu0
    %v3096 = vpop.f32.mrb[0].mxu0
    %v3097 = vadd.f32 0.0, %v3096
    %v3098 = vpop.f32.mrb[0].mxu0
    %3099 = vdwg.mxu0
    %3100 = vmatprep.subr.bf16.mxu0 0
    %3101 = vmatpush1.bf16.xpose.msra.mxu0 %v543
    %3102 = vmatprep.subr.bf16.mxu0 0
    %3103 = vmatpush1.bf16.xpose.msra.mxu0 %v544
    %3104 = vmatprep.subr.bf16.mxu0 0
    %3105 = vmatpush1.bf16.xpose.msra.mxu0 %v545
    %3106 = vmatprep.subr.bf16.mxu0 0
    %3107 = vmatpush1.bf16.xpose.msra.mxu0 %v546
    %3108 = vmatprep.subr.bf16.mxu0 0
    %3109 = vmatpush1.bf16.xpose.msra.mxu0 %v547
    %3110 = vmatprep.subr.bf16.mxu0 0
    %3111 = vmatpush1.bf16.xpose.msra.mxu0 %v548
    %3112 = vmatprep.subr.bf16.mxu0 0
    %3113 = vmatpush1.bf16.xpose.msra.mxu0 %v549
    %3114 = vmatprep.subr.bf16.mxu0 0
    %3115 = vmatpush1.bf16.xpose.msra.mxu0 %v550
    %3116 = vmatprep.subr.bf16.mxu0 0
    %3117 = vmatpush1.bf16.xpose.msra.mxu0 0
    %3118 = vmatprep.subr.bf16.mxu0 0
    %3119 = vmatpush1.bf16.xpose.msra.mxu0 0
    %3120 = vmatprep.subr.bf16.mxu0 0
    %3121 = vmatpush1.bf16.xpose.msra.mxu0 0
    %3122 = vmatprep.subr.bf16.mxu0 0
    %3123 = vmatpush1.bf16.xpose.msra.mxu0 0
    %3124 = vmatprep.subr.bf16.mxu0 0
    %3125 = vmatpush1.bf16.xpose.msra.mxu0 0
    %3126 = vmatprep.subr.bf16.mxu0 0
    %3127 = vmatpush1.bf16.xpose.msra.mxu0 0
    %3128 = vmatprep.subr.bf16.mxu0 0
    %3129 = vmatpush1.bf16.xpose.msra.mxu0 0
    %3130 = vmatprep.subr.bf16.mxu0 0
    %3131 = vmatpush1.bf16.xpose.msra.mxu0 0
    %3132 = vmatprep.mubr.bf16.mxu0 0
    %3133 = vmatmul.mubr.bf16.gmra.mrb[0].mxu0 %v1738
    %v3134 = vpop.f32.mrb[0].mxu0
    %v3135 = vadd.f32 %v3038, %v3134
    %v3136 = vpop.f32.mrb[0].mxu0
    %v3137 = vpop.f32.mrb[0].mxu0
    %v3138 = vadd.f32 %v3041, %v3137
    %v3139 = vpop.f32.mrb[0].mxu0
    %3140 = vmatprep.mubr.bf16.mxu0 0
    %3141 = vmatmul.mubr.bf16.gmra.mrb[0].mxu0 %v1742
    %v3142 = vpop.f32.mrb[0].mxu0
    %v3143 = vadd.f32 %v3046, %v3142
    %v3144 = vpop.f32.mrb[0].mxu0
    %v3145 = vpop.f32.mrb[0].mxu0
    %v3146 = vadd.f32 %v3049, %v3145
    %v3147 = vpop.f32.mrb[0].mxu0
    %3148 = vmatprep.mubr.bf16.mxu0 0
    %3149 = vmatmul.mubr.bf16.gmra.mrb[0].mxu0 %v1746
    %v3150 = vpop.f32.mrb[0].mxu0
    %v3151 = vadd.f32 %v3054, %v3150
    %v3152 = vpop.f32.mrb[0].mxu0
    %v3153 = vpop.f32.mrb[0].mxu0
    %v3154 = vadd.f32 %v3057, %v3153
    %v3155 = vpop.f32.mrb[0].mxu0
    %3156 = vmatprep.mubr.bf16.mxu0 0
    %3157 = vmatmul.mubr.bf16.gmra.mrb[0].mxu0 %v1750
    %v3158 = vpop.f32.mrb[0].mxu0
    %v3159 = vadd.f32 %v3062, %v3158
    %v3160 = vpop.f32.mrb[0].mxu0
    %v3161 = vpop.f32.mrb[0].mxu0
    %v3162 = vadd.f32 %v3065, %v3161
    %v3163 = vpop.f32.mrb[0].mxu0
    %3164 = vmatprep.mubr.bf16.mxu0 0
    %3165 = vmatmul.mubr.bf16.gmra.mrb[0].mxu0 %v1754
    %v3166 = vpop.f32.mrb[0].mxu0
    %v3167 = vadd.f32 %v3070, %v3166
    %v3168 = vpop.f32.mrb[0].mxu0
    %v3169 = vpop.f32.mrb[0].mxu0
    %v3170 = vadd.f32 %v3073, %v3169
    %v3171 = vpop.f32.mrb[0].mxu0
    %3172 = vmatprep.mubr.bf16.mxu0 0
    %3173 = vmatmul.mubr.bf16.gmra.mrb[0].mxu0 %v1758
    %v3174 = vpop.f32.mrb[0].mxu0
    %v3175 = vadd.f32 %v3078, %v3174
    %v3176 = vpop.f32.mrb[0].mxu0
    %v3177 = vpop.f32.mrb[0].mxu0
    %v3178 = vadd.f32 %v3081, %v3177
    %v3179 = vpop.f32.mrb[0].mxu0
    %3180 = vmatprep.mubr.bf16.mxu0 0
    %3181 = vmatmul.mubr.bf16.gmra.mrb[0].mxu0 %v1762
    %v3182 = vpop.f32.mrb[0].mxu0
    %v3183 = vadd.f32 %v3086, %v3182
    %v3184 = vpop.f32.mrb[0].mxu0
    %v3185 = vpop.f32.mrb[0].mxu0
    %v3186 = vadd.f32 %v3089, %v3185
    %v3187 = vpop.f32.mrb[0].mxu0
    %3188 = vmatprep.mubr.bf16.mxu0 0
    %3189 = vmatmul.mubr.bf16.gmra.mrb[0].mxu0 %v1766
    %v3190 = vpop.f32.mrb[0].mxu0
    %v3191 = vadd.f32 %v3094, %v3190
    %v3192 = vpop.f32.mrb[0].mxu0
    %v3193 = vpop.f32.mrb[0].mxu0
    %v3194 = vadd.f32 %v3097, %v3193
    %v3195 = vpop.f32.mrb[0].mxu0
    %3196 = vdwg.mxu0
    %3205 = vrot.lane.b32.xlu0 %v2195, 112
    %v3206 = vpop.permute.xlu0 %3205
    %3207 = vrot.lane.b32.xlu0 %v2196, 112
    %v3208 = vpop.permute.xlu0 %3207
    %3209 = vrot.lane.b32.xlu0 %v2197, 112
    %v3210 = vpop.permute.xlu0 %3209
    %3211 = vrot.lane.b32.xlu0 %v2198, 112
    %v3212 = vpop.permute.xlu0 %3211
    %3213 = vrot.lane.b32.xlu0 %v2199, 112
    %v3214 = vpop.permute.xlu0 %3213
    %3215 = vrot.lane.b32.xlu0 %v2200, 112
    %v3216 = vpop.permute.xlu0 %3215
    %3217 = vrot.lane.b32.xlu0 %v2201, 112
    %v3218 = vpop.permute.xlu0 %3217
    %3219 = vrot.lane.b32.xlu0 %v2202, 112
    %v3220 = vpop.permute.xlu0 %3219
    %v3222 = vsel %vm2238, %v3206, 0
    %v3225 = vsel %vm2238, %v3208, 0
    %v3228 = vsel %vm2238, %v3210, 0
    %v3231 = vsel %vm2238, %v3212, 0
    %v3234 = vsel %vm2238, %v3214, 0
    %v3237 = vsel %vm2238, %v3216, 0
    %v3240 = vsel %vm2238, %v3218, 0
    %v3243 = vsel %vm2238, %v3220, 0
    %3245 = vmatprep.subr.bf16.mxu0 0
    %3246 = vmatpush1.bf16.xpose.msra.mxu0 %v2530
    %3247 = vmatprep.subr.bf16.mxu0 0
    %3248 = vmatpush1.bf16.xpose.msra.mxu0 %v2533
    %3249 = vmatprep.subr.bf16.mxu0 0
    %3250 = vmatpush1.bf16.xpose.msra.mxu0 %v2536
    %3251 = vmatprep.subr.bf16.mxu0 0
    %3252 = vmatpush1.bf16.xpose.msra.mxu0 %v2539
    %3253 = vmatprep.subr.bf16.mxu0 0
    %3254 = vmatpush1.bf16.xpose.msra.mxu0 %v2542
    %3255 = vmatprep.subr.bf16.mxu0 0
    %3256 = vmatpush1.bf16.xpose.msra.mxu0 %v2545
    %3257 = vmatprep.subr.bf16.mxu0 0
    %3258 = vmatpush1.bf16.xpose.msra.mxu0 %v2548
    %3259 = vmatprep.subr.bf16.mxu0 0
    %3260 = vmatpush1.bf16.xpose.msra.mxu0 %v2551
    %3261 = vmatprep.subr.bf16.mxu0 0
    %3262 = vmatpush1.bf16.xpose.msra.mxu0 0
    %3263 = vmatprep.subr.bf16.mxu0 0
    %3264 = vmatpush1.bf16.xpose.msra.mxu0 0
    %3265 = vmatprep.subr.bf16.mxu0 0
    %3266 = vmatpush1.bf16.xpose.msra.mxu0 0
    %3267 = vmatprep.subr.bf16.mxu0 0
    %3268 = vmatpush1.bf16.xpose.msra.mxu0 0
    %3269 = vmatprep.subr.bf16.mxu0 0
    %3270 = vmatpush1.bf16.xpose.msra.mxu0 0
    %3271 = vmatprep.subr.bf16.mxu0 0
    %3272 = vmatpush1.bf16.xpose.msra.mxu0 0
    %3273 = vmatprep.subr.bf16.mxu0 0
    %3274 = vmatpush1.bf16.xpose.msra.mxu0 0
    %3275 = vmatprep.subr.bf16.mxu0 0
    %3276 = vmatpush1.bf16.xpose.msra.mxu0 0
    %3277 = vmatprep.mubr.bf16.mxu0 0
    %3278 = vmatmul.mubr.bf16.gmra.mrb[0].mxu0 %v3222
    %v3279 = vpop.f32.mrb[0].mxu0
    %v3280 = vadd.f32 0.0, %v3279
    %v3281 = vpop.f32.mrb[0].mxu0
    %v3282 = vpop.f32.mrb[0].mxu0
    %v3283 = vadd.f32 0.0, %v3282
    %v3284 = vpop.f32.mrb[0].mxu0
    %3285 = vmatprep.mubr.bf16.mxu0 0
    %3286 = vmatmul.mubr.bf16.gmra.mrb[0].mxu0 %v3225
    %v3287 = vpop.f32.mrb[0].mxu0
    %v3288 = vadd.f32 0.0, %v3287
    %v3289 = vpop.f32.mrb[0].mxu0
    %v3290 = vpop.f32.mrb[0].mxu0
    %v3291 = vadd.f32 0.0, %v3290
    %v3292 = vpop.f32.mrb[0].mxu0
    %3293 = vmatprep.mubr.bf16.mxu0 0
    %3294 = vmatmul.mubr.bf16.gmra.mrb[0].mxu0 %v3228
    %v3295 = vpop.f32.mrb[0].mxu0
    %v3296 = vadd.f32 0.0, %v3295
    %v3297 = vpop.f32.mrb[0].mxu0
    %v3298 = vpop.f32.mrb[0].mxu0
    %v3299 = vadd.f32 0.0, %v3298
    %v3300 = vpop.f32.mrb[0].mxu0
    %3301 = vmatprep.mubr.bf16.mxu0 0
    %3302 = vmatmul.mubr.bf16.gmra.mrb[0].mxu0 %v3231
    %v3303 = vpop.f32.mrb[0].mxu0
    %v3304 = vadd.f32 0.0, %v3303
    %v3305 = vpop.f32.mrb[0].mxu0
    %v3306 = vpop.f32.mrb[0].mxu0
    %v3307 = vadd.f32 0.0, %v3306
    %v3308 = vpop.f32.mrb[0].mxu0
    %3309 = vmatprep.mubr.bf16.mxu0 0
    %3310 = vmatmul.mubr.bf16.gmra.mrb[0].mxu0 %v3234
    %v3311 = vpop.f32.mrb[0].mxu0
    %v3312 = vadd.f32 0.0, %v3311
    %v3313 = vpop.f32.mrb[0].mxu0
    %v3314 = vpop.f32.mrb[0].mxu0
    %v3315 = vadd.f32 0.0, %v3314
    %v3316 = vpop.f32.mrb[0].mxu0
    %3317 = vmatprep.mubr.bf16.mxu0 0
    %3318 = vmatmul.mubr.bf16.gmra.mrb[0].mxu0 %v3237
    %v3319 = vpop.f32.mrb[0].mxu0
    %v3320 = vadd.f32 0.0, %v3319
    %v3321 = vpop.f32.mrb[0].mxu0
    %v3322 = vpop.f32.mrb[0].mxu0
    %v3323 = vadd.f32 0.0, %v3322
    %v3324 = vpop.f32.mrb[0].mxu0
    %3325 = vmatprep.mubr.bf16.mxu0 0
    %3326 = vmatmul.mubr.bf16.gmra.mrb[0].mxu0 %v3240
    %v3327 = vpop.f32.mrb[0].mxu0
    %v3328 = vadd.f32 0.0, %v3327
    %v3329 = vpop.f32.mrb[0].mxu0
    %v3330 = vpop.f32.mrb[0].mxu0
    %v3331 = vadd.f32 0.0, %v3330
    %v3332 = vpop.f32.mrb[0].mxu0
    %3333 = vmatprep.mubr.bf16.mxu0 0
    %3334 = vmatmul.mubr.bf16.gmra.mrb[0].mxu0 %v3243
    %v3335 = vpop.f32.mrb[0].mxu0
    %v3336 = vadd.f32 0.0, %v3335
    %v3337 = vpop.f32.mrb[0].mxu0
    %v3338 = vpop.f32.mrb[0].mxu0
    %v3339 = vadd.f32 0.0, %v3338
    %v3340 = vpop.f32.mrb[0].mxu0
    %3341 = vdwg.mxu0
    %v3342 = vadd.f32 %v3135, %v3280
    %v3343 = vadd.f32 %v3138, %v3283
    %v3344 = vadd.f32 %v3143, %v3288
    %v3345 = vadd.f32 %v3146, %v3291
    %v3346 = vadd.f32 %v3151, %v3296
    %v3347 = vadd.f32 %v3154, %v3299
    %v3348 = vadd.f32 %v3159, %v3304
    %v3349 = vadd.f32 %v3162, %v3307
    %v3350 = vadd.f32 %v3167, %v3312
    %v3351 = vadd.f32 %v3170, %v3315
    %v3352 = vadd.f32 %v3175, %v3320
    %v3353 = vadd.f32 %v3178, %v3323
    %v3354 = vadd.f32 %v3183, %v3328
    %v3355 = vadd.f32 %v3186, %v3331
    %v3356 = vadd.f32 %v3191, %v3336
    %v3357 = vadd.f32 %v3194, %v3339
    %v3358 = vsel %vm2222, %v3342, -1e+30
    %v3359 = vsel %vm2223, %v3343, -1e+30
    %v3360 = vsel %vm2224, %v3344, -1e+30
    %v3361 = vsel %vm2225, %v3345, -1e+30
    %v3362 = vsel %vm2226, %v3346, -1e+30
    %v3363 = vsel %vm2227, %v3347, -1e+30
    %v3364 = vsel %vm2228, %v3348, -1e+30
    %v3365 = vsel %vm2229, %v3349, -1e+30
    %v3366 = vsel %vm2230, %v3350, -1e+30
    %v3367 = vsel %vm2231, %v3351, -1e+30
    %v3368 = vsel %vm2232, %v3352, -1e+30
    %v3369 = vsel %vm2233, %v3353, -1e+30
    %v3370 = vsel %vm2234, %v3354, -1e+30
    %v3371 = vsel %vm2235, %v3355, -1e+30
    %v3372 = vsel %vm2236, %v3356, -1e+30
    %v3373 = vsel %vm2237, %v3357, -1e+30
    %3374 = vmax.xlane.f32.xlu0 %v3358
    %v3375 = vpop.xlane.xlu0 %3374
    %3376 = vmax.xlane.f32.xlu0 %v3359
    %v3377 = vpop.xlane.xlu0 %3376
    %3378 = vmax.xlane.f32.xlu0 %v3360
    %v3379 = vpop.xlane.xlu0 %3378
    %3380 = vmax.xlane.f32.xlu0 %v3361
    %v3381 = vpop.xlane.xlu0 %3380
    %3382 = vmax.xlane.f32.xlu0 %v3362
    %v3383 = vpop.xlane.xlu0 %3382
    %3384 = vmax.xlane.f32.xlu0 %v3363
    %v3385 = vpop.xlane.xlu0 %3384
    %3386 = vmax.xlane.f32.xlu0 %v3364
    %v3387 = vpop.xlane.xlu0 %3386
    %3388 = vmax.xlane.f32.xlu0 %v3365
    %v3389 = vpop.xlane.xlu0 %3388
    %3390 = vmax.xlane.f32.xlu0 %v3366
    %v3391 = vpop.xlane.xlu0 %3390
    %3392 = vmax.xlane.f32.xlu0 %v3367
    %v3393 = vpop.xlane.xlu0 %3392
    %3394 = vmax.xlane.f32.xlu0 %v3368
    %v3395 = vpop.xlane.xlu0 %3394
    %3396 = vmax.xlane.f32.xlu0 %v3369
    %v3397 = vpop.xlane.xlu0 %3396
    %3398 = vmax.xlane.f32.xlu0 %v3370
    %v3399 = vpop.xlane.xlu0 %3398
    %3400 = vmax.xlane.f32.xlu0 %v3371
    %v3401 = vpop.xlane.xlu0 %3400
    %3402 = vmax.xlane.f32.xlu0 %v3372
    %v3403 = vpop.xlane.xlu0 %3402
    %3404 = vmax.xlane.f32.xlu0 %v3373
    %v3405 = vpop.xlane.xlu0 %3404
    %v3406 = vsub.f32 %v3358, %v3375
    %v3407 = vsub.f32 %v3359, %v3377
    %v3408 = vsub.f32 %v3360, %v3379
    %v3409 = vsub.f32 %v3361, %v3381
    %v3410 = vsub.f32 %v3362, %v3383
    %v3411 = vsub.f32 %v3363, %v3385
    %v3412 = vsub.f32 %v3364, %v3387
    %v3413 = vsub.f32 %v3365, %v3389
    %v3414 = vsub.f32 %v3366, %v3391
    %v3415 = vsub.f32 %v3367, %v3393
    %v3416 = vsub.f32 %v3368, %v3395
    %v3417 = vsub.f32 %v3369, %v3397
    %v3418 = vsub.f32 %v3370, %v3399
    %v3419 = vsub.f32 %v3371, %v3401
    %v3420 = vsub.f32 %v3372, %v3403
    %v3421 = vsub.f32 %v3373, %v3405
    %v3422 = vmul.f32 %v3406, 1.442695
    %v3423 = vpow.pop %v3422
    %v3424 = vmul.f32 %v3407, 1.442695
    %v3425 = vpow.pop %v3424
    %v3426 = vmul.f32 %v3408, 1.442695
    %v3427 = vpow.pop %v3426
    %v3428 = vmul.f32 %v3409, 1.442695
    %v3429 = vpow.pop %v3428
    %v3430 = vmul.f32 %v3410, 1.442695
    %v3431 = vpow.pop %v3430
    %v3432 = vmul.f32 %v3411, 1.442695
    %v3433 = vpow.pop %v3432
    %v3434 = vmul.f32 %v3412, 1.442695
    %v3435 = vpow.pop %v3434
    %v3436 = vmul.f32 %v3413, 1.442695
    %v3437 = vpow.pop %v3436
    %v3438 = vmul.f32 %v3414, 1.442695
    %v3439 = vpow.pop %v3438
    %v3440 = vmul.f32 %v3415, 1.442695
    %v3441 = vpow.pop %v3440
    %v3442 = vmul.f32 %v3416, 1.442695
    %v3443 = vpow.pop %v3442
    %v3444 = vmul.f32 %v3417, 1.442695
    %v3445 = vpow.pop %v3444
    %v3446 = vmul.f32 %v3418, 1.442695
    %v3447 = vpow.pop %v3446
    %v3448 = vmul.f32 %v3419, 1.442695
    %v3449 = vpow.pop %v3448
    %v3450 = vmul.f32 %v3420, 1.442695
    %v3451 = vpow.pop %v3450
    %v3452 = vmul.f32 %v3421, 1.442695
    %v3453 = vpow.pop %v3452
    %3454 = vadd.xlane.f32.xlu0 %v3423
    %v3455 = vpop.xlane.xlu0 %3454
    %3456 = vadd.xlane.f32.xlu0 %v3425
    %v3457 = vpop.xlane.xlu0 %3456
    %3458 = vadd.xlane.f32.xlu0 %v3427
    %v3459 = vpop.xlane.xlu0 %3458
    %3460 = vadd.xlane.f32.xlu0 %v3429
    %v3461 = vpop.xlane.xlu0 %3460
    %3462 = vadd.xlane.f32.xlu0 %v3431
    %v3463 = vpop.xlane.xlu0 %3462
    %3464 = vadd.xlane.f32.xlu0 %v3433
    %v3465 = vpop.xlane.xlu0 %3464
    %3466 = vadd.xlane.f32.xlu0 %v3435
    %v3467 = vpop.xlane.xlu0 %3466
    %3468 = vadd.xlane.f32.xlu0 %v3437
    %v3469 = vpop.xlane.xlu0 %3468
    %3470 = vadd.xlane.f32.xlu0 %v3439
    %v3471 = vpop.xlane.xlu0 %3470
    %3472 = vadd.xlane.f32.xlu0 %v3441
    %v3473 = vpop.xlane.xlu0 %3472
    %3474 = vadd.xlane.f32.xlu0 %v3443
    %v3475 = vpop.xlane.xlu0 %3474
    %3476 = vadd.xlane.f32.xlu0 %v3445
    %v3477 = vpop.xlane.xlu0 %3476
    %3478 = vadd.xlane.f32.xlu0 %v3447
    %v3479 = vpop.xlane.xlu0 %3478
    %3480 = vadd.xlane.f32.xlu0 %v3449
    %v3481 = vpop.xlane.xlu0 %3480
    %3482 = vadd.xlane.f32.xlu0 %v3451
    %v3483 = vpop.xlane.xlu0 %3482
    %3484 = vadd.xlane.f32.xlu0 %v3453
    %v3485 = vpop.xlane.xlu0 %3484
    %v3486 = vrcp.pop %v3455
    %v3487 = vmul.f32 %v3423, %v3486
    %v3488 = vrcp.pop %v3457
    %v3489 = vmul.f32 %v3425, %v3488
    %v3490 = vrcp.pop %v3459
    %v3491 = vmul.f32 %v3427, %v3490
    %v3492 = vrcp.pop %v3461
    %v3493 = vmul.f32 %v3429, %v3492
    %v3494 = vrcp.pop %v3463
    %v3495 = vmul.f32 %v3431, %v3494
    %v3496 = vrcp.pop %v3465
    %v3497 = vmul.f32 %v3433, %v3496
    %v3498 = vrcp.pop %v3467
    %v3499 = vmul.f32 %v3435, %v3498
    %v3500 = vrcp.pop %v3469
    %v3501 = vmul.f32 %v3437, %v3500
    %v3502 = vrcp.pop %v3471
    %v3503 = vmul.f32 %v3439, %v3502
    %v3504 = vrcp.pop %v3473
    %v3505 = vmul.f32 %v3441, %v3504
    %v3506 = vrcp.pop %v3475
    %v3507 = vmul.f32 %v3443, %v3506
    %v3508 = vrcp.pop %v3477
    %v3509 = vmul.f32 %v3445, %v3508
    %v3510 = vrcp.pop %v3479
    %v3511 = vmul.f32 %v3447, %v3510
    %v3512 = vrcp.pop %v3481
    %v3513 = vmul.f32 %v3449, %v3512
    %v3514 = vrcp.pop %v3483
    %v3515 = vmul.f32 %v3451, %v3514
    %v3516 = vrcp.pop %v3485
    %v3517 = vmul.f32 %v3453, %v3516
    %v3518 = vpack.c.bf16 %v3489, %v3487
    %v3519 = vpack.c.bf16 %v3493, %v3491
    %v3520 = vpack.c.bf16 %v3497, %v3495
    %v3521 = vpack.c.bf16 %v3501, %v3499
    %v3522 = vpack.c.bf16 %v3505, %v3503
    %v3523 = vpack.c.bf16 %v3509, %v3507
    %v3524 = vpack.c.bf16 %v3513, %v3511
    %v3525 = vpack.c.bf16 %v3517, %v3515
    %3526 = vmatprep.subr.bf16.mxu0 0
    %3527 = vmatpush1.bf16.msra.mxu0 %v543
    %3528 = vmatprep.subr.bf16.mxu0 0
    %3529 = vmatpush1.bf16.msra.mxu0 %v544
    %3530 = vmatprep.subr.bf16.mxu0 0
    %3531 = vmatpush1.bf16.msra.mxu0 %v545
    %3532 = vmatprep.subr.bf16.mxu0 0
    %3533 = vmatpush1.bf16.msra.mxu0 %v546
    %3534 = vmatprep.subr.bf16.mxu0 0
    %3535 = vmatpush1.bf16.msra.mxu0 %v547
    %3536 = vmatprep.subr.bf16.mxu0 0
    %3537 = vmatpush1.bf16.msra.mxu0 %v548
    %3538 = vmatprep.subr.bf16.mxu0 0
    %3539 = vmatpush1.bf16.msra.mxu0 %v549
    %3540 = vmatprep.subr.bf16.mxu0 0
    %3541 = vmatpush1.bf16.msra.mxu0 %v550
    %3542 = vmatprep.subr.bf16.mxu0 0
    %3543 = vmatpush1.bf16.msra.mxu0 0
    %3544 = vmatprep.subr.bf16.mxu0 0
    %3545 = vmatpush1.bf16.msra.mxu0 0
    %3546 = vmatprep.subr.bf16.mxu0 0
    %3547 = vmatpush1.bf16.msra.mxu0 0
    %3548 = vmatprep.subr.bf16.mxu0 0
    %3549 = vmatpush1.bf16.msra.mxu0 0
    %3550 = vmatprep.subr.bf16.mxu0 0
    %3551 = vmatpush1.bf16.msra.mxu0 0
    %3552 = vmatprep.subr.bf16.mxu0 0
    %3553 = vmatpush1.bf16.msra.mxu0 0
    %3554 = vmatprep.subr.bf16.mxu0 0
    %3555 = vmatpush1.bf16.msra.mxu0 0
    %3556 = vmatprep.subr.bf16.mxu0 0
    %3557 = vmatpush1.bf16.msra.mxu0 0
    %3558 = vmatprep.mubr.bf16.mxu0 0
    %3559 = vmatmul.mubr.bf16.gmra.mrb[0].mxu0 %v3518
    %v3560 = vpop.f32.mrb[0].mxu0
    %v3561 = vadd.f32 0.0, %v3560
    %v3562 = vpop.f32.mrb[0].mxu0
    %v3563 = vpop.f32.mrb[0].mxu0
    %v3564 = vadd.f32 0.0, %v3563
    %v3565 = vpop.f32.mrb[0].mxu0
    %3566 = vmatprep.mubr.bf16.mxu0 0
    %3567 = vmatmul.mubr.bf16.gmra.mrb[0].mxu0 %v3519
    %v3568 = vpop.f32.mrb[0].mxu0
    %v3569 = vadd.f32 0.0, %v3568
    %v3570 = vpop.f32.mrb[0].mxu0
    %v3571 = vpop.f32.mrb[0].mxu0
    %v3572 = vadd.f32 0.0, %v3571
    %v3573 = vpop.f32.mrb[0].mxu0
    %3574 = vmatprep.mubr.bf16.mxu0 0
    %3575 = vmatmul.mubr.bf16.gmra.mrb[0].mxu0 %v3520
    %v3576 = vpop.f32.mrb[0].mxu0
    %v3577 = vadd.f32 0.0, %v3576
    %v3578 = vpop.f32.mrb[0].mxu0
    %v3579 = vpop.f32.mrb[0].mxu0
    %v3580 = vadd.f32 0.0, %v3579
    %v3581 = vpop.f32.mrb[0].mxu0
    %3582 = vmatprep.mubr.bf16.mxu0 0
    %3583 = vmatmul.mubr.bf16.gmra.mrb[0].mxu0 %v3521
    %v3584 = vpop.f32.mrb[0].mxu0
    %v3585 = vadd.f32 0.0, %v3584
    %v3586 = vpop.f32.mrb[0].mxu0
    %v3587 = vpop.f32.mrb[0].mxu0
    %v3588 = vadd.f32 0.0, %v3587
    %v3589 = vpop.f32.mrb[0].mxu0
    %3590 = vmatprep.mubr.bf16.mxu0 0
    %3591 = vmatmul.mubr.bf16.gmra.mrb[0].mxu0 %v3522
    %v3592 = vpop.f32.mrb[0].mxu0
    %v3593 = vadd.f32 0.0, %v3592
    %v3594 = vpop.f32.mrb[0].mxu0
    %v3595 = vpop.f32.mrb[0].mxu0
    %v3596 = vadd.f32 0.0, %v3595
    %v3597 = vpop.f32.mrb[0].mxu0
    %3598 = vmatprep.mubr.bf16.mxu0 0
    %3599 = vmatmul.mubr.bf16.gmra.mrb[0].mxu0 %v3523
    %v3600 = vpop.f32.mrb[0].mxu0
    %v3601 = vadd.f32 0.0, %v3600
    %v3602 = vpop.f32.mrb[0].mxu0
    %v3603 = vpop.f32.mrb[0].mxu0
    %v3604 = vadd.f32 0.0, %v3603
    %v3605 = vpop.f32.mrb[0].mxu0
    %3606 = vmatprep.mubr.bf16.mxu0 0
    %3607 = vmatmul.mubr.bf16.gmra.mrb[0].mxu0 %v3524
    %v3608 = vpop.f32.mrb[0].mxu0
    %v3609 = vadd.f32 0.0, %v3608
    %v3610 = vpop.f32.mrb[0].mxu0
    %v3611 = vpop.f32.mrb[0].mxu0
    %v3612 = vadd.f32 0.0, %v3611
    %v3613 = vpop.f32.mrb[0].mxu0
    %3614 = vmatprep.mubr.bf16.mxu0 0
    %3615 = vmatmul.mubr.bf16.gmra.mrb[0].mxu0 %v3525
    %v3616 = vpop.f32.mrb[0].mxu0
    %v3617 = vadd.f32 0.0, %v3616
    %v3618 = vpop.f32.mrb[0].mxu0
    %v3619 = vpop.f32.mrb[0].mxu0
    %v3620 = vadd.f32 0.0, %v3619
    %v3621 = vpop.f32.mrb[0].mxu0
    %3622 = vdwg.mxu0
    %v3623 = vpack.c.bf16 %v3564, %v3561
    %v3624 = vpack.c.bf16 %v3572, %v3569
    %v3625 = vpack.c.bf16 %v3580, %v3577
    %v3626 = vpack.c.bf16 %v3588, %v3585
    %v3627 = vpack.c.bf16 %v3596, %v3593
    %v3628 = vpack.c.bf16 %v3604, %v3601
    %v3629 = vpack.c.bf16 %v3612, %v3609
    %v3630 = vpack.c.bf16 %v3620, %v3617
    %s3631 = scalar_lea.vmem %s8, 128
    %v3632 = vld [vmem:[%s3631] sm:$0xff]
    %v3633 = vld [vmem:[%s3631 + $0x8] sm:$0xff]
    %v3634 = vld [vmem:[%s3631 + $0x10] sm:$0xff]
    %v3635 = vld [vmem:[%s3631 + $0x18] sm:$0xff]
    %v3636 = vld [vmem:[%s3631 + $0x20] sm:$0xff]
    %v3637 = vld [vmem:[%s3631 + $0x28] sm:$0xff]
    %v3638 = vld [vmem:[%s3631 + $0x30] sm:$0xff]
    %v3639 = vld [vmem:[%s3631 + $0x38] sm:$0xff]
    %v3640 = vld [vmem:[%s3631 + $0x40] sm:$0xff]
    %v3641 = vld [vmem:[%s3631 + $0x48] sm:$0xff]
    %v3642 = vld [vmem:[%s3631 + $0x50] sm:$0xff]
    %v3643 = vld [vmem:[%s3631 + $0x58] sm:$0xff]
    %v3644 = vld [vmem:[%s3631 + $0x60] sm:$0xff]
    %v3645 = vld [vmem:[%s3631 + $0x68] sm:$0xff]
    %v3646 = vld [vmem:[%s3631 + $0x70] sm:$0xff]
    %v3647 = vld [vmem:[%s3631 + $0x78] sm:$0xff]
    %v3664 = vunpack.c.l.b16 %v3632
    %v3665 = vunpack.c.h.b16 %v3632
    %v3666 = vunpack.c.l.b16 %v3633
    %v3667 = vunpack.c.h.b16 %v3633
    %v3668 = vunpack.c.l.b16 %v3634
    %v3669 = vunpack.c.h.b16 %v3634
    %v3670 = vunpack.c.l.b16 %v3635
    %v3671 = vunpack.c.h.b16 %v3635
    %v3672 = vunpack.c.l.b16 %v3636
    %v3673 = vunpack.c.h.b16 %v3636
    %v3674 = vunpack.c.l.b16 %v3637
    %v3675 = vunpack.c.h.b16 %v3637
    %v3676 = vunpack.c.l.b16 %v3638
    %v3677 = vunpack.c.h.b16 %v3638
    %v3678 = vunpack.c.l.b16 %v3639
    %v3679 = vunpack.c.h.b16 %v3639
    %v3680 = vunpack.c.l.b16 %v3640
    %v3681 = vunpack.c.h.b16 %v3640
    %v3682 = vunpack.c.l.b16 %v3641
    %v3683 = vunpack.c.h.b16 %v3641
    %v3684 = vunpack.c.l.b16 %v3642
    %v3685 = vunpack.c.h.b16 %v3642
    %v3686 = vunpack.c.l.b16 %v3643
    %v3687 = vunpack.c.h.b16 %v3643
    %v3688 = vunpack.c.l.b16 %v3644
    %v3689 = vunpack.c.h.b16 %v3644
    %v3690 = vunpack.c.l.b16 %v3645
    %v3691 = vunpack.c.h.b16 %v3645
    %v3692 = vunpack.c.l.b16 %v3646
    %v3693 = vunpack.c.h.b16 %v3646
    %v3694 = vunpack.c.l.b16 %v3647
    %v3695 = vunpack.c.h.b16 %v3647
    %v3696 = vpack.c.b16 %v3666, %v3664
    %v3697 = vpack.c.b16 %v3667, %v3665
    %v3698 = vpack.c.b16 %v3670, %v3668
    %v3699 = vpack.c.b16 %v3671, %v3669
    %v3700 = vpack.c.b16 %v3674, %v3672
    %v3701 = vpack.c.b16 %v3675, %v3673
    %v3702 = vpack.c.b16 %v3678, %v3676
    %v3703 = vpack.c.b16 %v3679, %v3677
    %v3704 = vpack.c.b16 %v3682, %v3680
    %v3705 = vpack.c.b16 %v3683, %v3681
    %v3706 = vpack.c.b16 %v3686, %v3684
    %v3707 = vpack.c.b16 %v3687, %v3685
    %v3708 = vpack.c.b16 %v3690, %v3688
    %v3709 = vpack.c.b16 %v3691, %v3689
    %v3710 = vpack.c.b16 %v3694, %v3692
    %v3711 = vpack.c.b16 %v3695, %v3693
    %3728 = vmatprep.subr.bf16.mxu0 %v3697
    %3729 = vmatpush1.bf16.msra.mxu0 %v3696
    %3730 = vmatprep.subr.bf16.mxu0 %v3699
    %3731 = vmatpush1.bf16.msra.mxu0 %v3698
    %3732 = vmatprep.subr.bf16.mxu0 %v3701
    %3733 = vmatpush1.bf16.msra.mxu0 %v3700
    %3734 = vmatprep.subr.bf16.mxu0 %v3703
    %3735 = vmatpush1.bf16.msra.mxu0 %v3702
    %3736 = vmatprep.subr.bf16.mxu0 %v3705
    %3737 = vmatpush1.bf16.msra.mxu0 %v3704
    %3738 = vmatprep.subr.bf16.mxu0 %v3707
    %3739 = vmatpush1.bf16.msra.mxu0 %v3706
    %3740 = vmatprep.subr.bf16.mxu0 %v3709
    %3741 = vmatpush1.bf16.msra.mxu0 %v3708
    %3742 = vmatprep.subr.bf16.mxu0 %v3711
    %3743 = vmatpush1.bf16.msra.mxu0 %v3710
    %3744 = vmatprep.subr.bf16.mxu0 0
    %3745 = vmatpush1.bf16.msra.mxu0 0
    %3746 = vmatprep.subr.bf16.mxu0 0
    %3747 = vmatpush1.bf16.msra.mxu0 0
    %3748 = vmatprep.subr.bf16.mxu0 0
    %3749 = vmatpush1.bf16.msra.mxu0 0
    %3750 = vmatprep.subr.bf16.mxu0 0
    %3751 = vmatpush1.bf16.msra.mxu0 0
    %3752 = vmatprep.subr.bf16.mxu0 0
    %3753 = vmatpush1.bf16.msra.mxu0 0
    %3754 = vmatprep.subr.bf16.mxu0 0
    %3755 = vmatpush1.bf16.msra.mxu0 0
    %3756 = vmatprep.subr.bf16.mxu0 0
    %3757 = vmatpush1.bf16.msra.mxu0 0
    %3758 = vmatprep.subr.bf16.mxu0 0
    %3759 = vmatpush1.bf16.msra.mxu0 0
    %3760 = vmatprep.mubr.bf16.mxu0 0
    %3761 = vmatmul.mubr.bf16.gmra.mrb[0].mxu0 %v3623
    %v3762 = vpop.f32.mrb[0].mxu0
    %v3763 = vadd.f32 0.0, %v3762
    %v3764 = vpop.f32.mrb[0].mxu0
    %v3765 = vadd.f32 0.0, %v3764
    %v3766 = vpop.f32.mrb[0].mxu0
    %v3767 = vadd.f32 0.0, %v3766
    %v3768 = vpop.f32.mrb[0].mxu0
    %v3769 = vadd.f32 0.0, %v3768
    %3770 = vmatprep.mubr.bf16.mxu0 0
    %3771 = vmatmul.mubr.bf16.gmra.mrb[0].mxu0 %v3624
    %v3772 = vpop.f32.mrb[0].mxu0
    %v3773 = vadd.f32 0.0, %v3772
    %v3774 = vpop.f32.mrb[0].mxu0
    %v3775 = vadd.f32 0.0, %v3774
    %v3776 = vpop.f32.mrb[0].mxu0
    %v3777 = vadd.f32 0.0, %v3776
    %v3778 = vpop.f32.mrb[0].mxu0
    %v3779 = vadd.f32 0.0, %v3778
    %3780 = vmatprep.mubr.bf16.mxu0 0
    %3781 = vmatmul.mubr.bf16.gmra.mrb[0].mxu0 %v3625
    %v3782 = vpop.f32.mrb[0].mxu0
    %v3783 = vadd.f32 0.0, %v3782
    %v3784 = vpop.f32.mrb[0].mxu0
    %v3785 = vadd.f32 0.0, %v3784
    %v3786 = vpop.f32.mrb[0].mxu0
    %v3787 = vadd.f32 0.0, %v3786
    %v3788 = vpop.f32.mrb[0].mxu0
    %v3789 = vadd.f32 0.0, %v3788
    %3790 = vmatprep.mubr.bf16.mxu0 0
    %3791 = vmatmul.mubr.bf16.gmra.mrb[0].mxu0 %v3626
    %v3792 = vpop.f32.mrb[0].mxu0
    %v3793 = vadd.f32 0.0, %v3792
    %v3794 = vpop.f32.mrb[0].mxu0
    %v3795 = vadd.f32 0.0, %v3794
    %v3796 = vpop.f32.mrb[0].mxu0
    %v3797 = vadd.f32 0.0, %v3796
    %v3798 = vpop.f32.mrb[0].mxu0
    %v3799 = vadd.f32 0.0, %v3798
    %3800 = vmatprep.mubr.bf16.mxu0 0
    %3801 = vmatmul.mubr.bf16.gmra.mrb[0].mxu0 %v3627
    %v3802 = vpop.f32.mrb[0].mxu0
    %v3803 = vadd.f32 0.0, %v3802
    %v3804 = vpop.f32.mrb[0].mxu0
    %v3805 = vadd.f32 0.0, %v3804
    %v3806 = vpop.f32.mrb[0].mxu0
    %v3807 = vadd.f32 0.0, %v3806
    %v3808 = vpop.f32.mrb[0].mxu0
    %v3809 = vadd.f32 0.0, %v3808
    %3810 = vmatprep.mubr.bf16.mxu0 0
    %3811 = vmatmul.mubr.bf16.gmra.mrb[0].mxu0 %v3628
    %v3812 = vpop.f32.mrb[0].mxu0
    %v3813 = vadd.f32 0.0, %v3812
    %v3814 = vpop.f32.mrb[0].mxu0
    %v3815 = vadd.f32 0.0, %v3814
    %v3816 = vpop.f32.mrb[0].mxu0
    %v3817 = vadd.f32 0.0, %v3816
    %v3818 = vpop.f32.mrb[0].mxu0
    %v3819 = vadd.f32 0.0, %v3818
    %3820 = vmatprep.mubr.bf16.mxu0 0
    %3821 = vmatmul.mubr.bf16.gmra.mrb[0].mxu0 %v3629
    %v3822 = vpop.f32.mrb[0].mxu0
    %v3823 = vadd.f32 0.0, %v3822
    %v3824 = vpop.f32.mrb[0].mxu0
    %v3825 = vadd.f32 0.0, %v3824
    %v3826 = vpop.f32.mrb[0].mxu0
    %v3827 = vadd.f32 0.0, %v3826
    %v3828 = vpop.f32.mrb[0].mxu0
    %v3829 = vadd.f32 0.0, %v3828
    %3830 = vmatprep.mubr.bf16.mxu0 0
    %3831 = vmatmul.mubr.bf16.gmra.mrb[0].mxu0 %v3630
    %v3832 = vpop.f32.mrb[0].mxu0
    %v3833 = vadd.f32 0.0, %v3832
    %v3834 = vpop.f32.mrb[0].mxu0
    %v3835 = vadd.f32 0.0, %v3834
    %v3836 = vpop.f32.mrb[0].mxu0
    %v3837 = vadd.f32 0.0, %v3836
    %v3838 = vpop.f32.mrb[0].mxu0
    %v3839 = vadd.f32 0.0, %v3838
    %3840 = vdwg.mxu0
    %v3857 = vunpack.c.l.b16 %v2939
    %v3858 = vunpack.c.h.b16 %v2939
    %v3859 = vunpack.c.l.b16 %v2940
    %v3860 = vunpack.c.h.b16 %v2940
    %v3861 = vunpack.c.l.b16 %v2941
    %v3862 = vunpack.c.h.b16 %v2941
    %v3863 = vunpack.c.l.b16 %v2942
    %v3864 = vunpack.c.h.b16 %v2942
    %v3865 = vunpack.c.l.b16 %v2943
    %v3866 = vunpack.c.h.b16 %v2943
    %v3867 = vunpack.c.l.b16 %v2944
    %v3868 = vunpack.c.h.b16 %v2944
    %v3869 = vunpack.c.l.b16 %v2945
    %v3870 = vunpack.c.h.b16 %v2945
    %v3871 = vunpack.c.l.b16 %v2946
    %v3872 = vunpack.c.h.b16 %v2946
    %v3873 = vunpack.c.l.b16 %v2947
    %v3874 = vunpack.c.h.b16 %v2947
    %v3875 = vunpack.c.l.b16 %v2948
    %v3876 = vunpack.c.h.b16 %v2948
    %v3877 = vunpack.c.l.b16 %v2949
    %v3878 = vunpack.c.h.b16 %v2949
    %v3879 = vunpack.c.l.b16 %v2950
    %v3880 = vunpack.c.h.b16 %v2950
    %v3881 = vunpack.c.l.b16 %v2951
    %v3882 = vunpack.c.h.b16 %v2951
    %v3883 = vunpack.c.l.b16 %v2952
    %v3884 = vunpack.c.h.b16 %v2952
    %v3885 = vunpack.c.l.b16 %v2953
    %v3886 = vunpack.c.h.b16 %v2953
    %v3887 = vunpack.c.l.b16 %v2954
    %v3888 = vunpack.c.h.b16 %v2954
    %v3889 = vpack.c.b16 %v3859, %v3857
    %v3890 = vpack.c.b16 %v3860, %v3858
    %v3891 = vpack.c.b16 %v3863, %v3861
    %v3892 = vpack.c.b16 %v3864, %v3862
    %v3893 = vpack.c.b16 %v3867, %v3865
    %v3894 = vpack.c.b16 %v3868, %v3866
    %v3895 = vpack.c.b16 %v3871, %v3869
    %v3896 = vpack.c.b16 %v3872, %v3870
    %v3897 = vpack.c.b16 %v3875, %v3873
    %v3898 = vpack.c.b16 %v3876, %v3874
    %v3899 = vpack.c.b16 %v3879, %v3877
    %v3900 = vpack.c.b16 %v3880, %v3878
    %v3901 = vpack.c.b16 %v3883, %v3881
    %v3902 = vpack.c.b16 %v3884, %v3882
    %v3903 = vpack.c.b16 %v3887, %v3885
    %v3904 = vpack.c.b16 %v3888, %v3886
    %3921 = vmatprep.subr.bf16.mxu0 %v3890
    %3922 = vmatpush1.bf16.msra.mxu0 %v3889
    %3923 = vmatprep.subr.bf16.mxu0 %v3892
    %3924 = vmatpush1.bf16.msra.mxu0 %v3891
    %3925 = vmatprep.subr.bf16.mxu0 %v3894
    %3926 = vmatpush1.bf16.msra.mxu0 %v3893
    %3927 = vmatprep.subr.bf16.mxu0 %v3896
    %3928 = vmatpush1.bf16.msra.mxu0 %v3895
    %3929 = vmatprep.subr.bf16.mxu0 %v3898
    %3930 = vmatpush1.bf16.msra.mxu0 %v3897
    %3931 = vmatprep.subr.bf16.mxu0 %v3900
    %3932 = vmatpush1.bf16.msra.mxu0 %v3899
    %3933 = vmatprep.subr.bf16.mxu0 %v3902
    %3934 = vmatpush1.bf16.msra.mxu0 %v3901
    %3935 = vmatprep.subr.bf16.mxu0 %v3904
    %3936 = vmatpush1.bf16.msra.mxu0 %v3903
    %3937 = vmatprep.subr.bf16.mxu0 0
    %3938 = vmatpush1.bf16.msra.mxu0 0
    %3939 = vmatprep.subr.bf16.mxu0 0
    %3940 = vmatpush1.bf16.msra.mxu0 0
    %3941 = vmatprep.subr.bf16.mxu0 0
    %3942 = vmatpush1.bf16.msra.mxu0 0
    %3943 = vmatprep.subr.bf16.mxu0 0
    %3944 = vmatpush1.bf16.msra.mxu0 0
    %3945 = vmatprep.subr.bf16.mxu0 0
    %3946 = vmatpush1.bf16.msra.mxu0 0
    %3947 = vmatprep.subr.bf16.mxu0 0
    %3948 = vmatpush1.bf16.msra.mxu0 0
    %3949 = vmatprep.subr.bf16.mxu0 0
    %3950 = vmatpush1.bf16.msra.mxu0 0
    %3951 = vmatprep.subr.bf16.mxu0 0
    %3952 = vmatpush1.bf16.msra.mxu0 0
    %3953 = vmatprep.mubr.bf16.mxu0 0
    %3954 = vmatmul.mubr.bf16.gmra.mrb[0].mxu0 %v2931
    %v3955 = vpop.f32.mrb[0].mxu0
    %v3956 = vadd.f32 %v3763, %v3955
    %v3957 = vpop.f32.mrb[0].mxu0
    %v3958 = vadd.f32 %v3765, %v3957
    %v3959 = vpop.f32.mrb[0].mxu0
    %v3960 = vadd.f32 %v3767, %v3959
    %v3961 = vpop.f32.mrb[0].mxu0
    %v3962 = vadd.f32 %v3769, %v3961
    %3963 = vmatprep.mubr.bf16.mxu0 0
    %3964 = vmatmul.mubr.bf16.gmra.mrb[0].mxu0 %v2932
    %v3965 = vpop.f32.mrb[0].mxu0
    %v3966 = vadd.f32 %v3773, %v3965
    %v3967 = vpop.f32.mrb[0].mxu0
    %v3968 = vadd.f32 %v3775, %v3967
    %v3969 = vpop.f32.mrb[0].mxu0
    %v3970 = vadd.f32 %v3777, %v3969
    %v3971 = vpop.f32.mrb[0].mxu0
    %v3972 = vadd.f32 %v3779, %v3971
    %3973 = vmatprep.mubr.bf16.mxu0 0
    %3974 = vmatmul.mubr.bf16.gmra.mrb[0].mxu0 %v2933
    %v3975 = vpop.f32.mrb[0].mxu0
    %v3976 = vadd.f32 %v3783, %v3975
    %v3977 = vpop.f32.mrb[0].mxu0
    %v3978 = vadd.f32 %v3785, %v3977
    %v3979 = vpop.f32.mrb[0].mxu0
    %v3980 = vadd.f32 %v3787, %v3979
    %v3981 = vpop.f32.mrb[0].mxu0
    %v3982 = vadd.f32 %v3789, %v3981
    %3983 = vmatprep.mubr.bf16.mxu0 0
    %3984 = vmatmul.mubr.bf16.gmra.mrb[0].mxu0 %v2934
    %v3985 = vpop.f32.mrb[0].mxu0
    %v3986 = vadd.f32 %v3793, %v3985
    %v3987 = vpop.f32.mrb[0].mxu0
    %v3988 = vadd.f32 %v3795, %v3987
    %v3989 = vpop.f32.mrb[0].mxu0
    %v3990 = vadd.f32 %v3797, %v3989
    %v3991 = vpop.f32.mrb[0].mxu0
    %v3992 = vadd.f32 %v3799, %v3991
    %3993 = vmatprep.mubr.bf16.mxu0 0
    %3994 = vmatmul.mubr.bf16.gmra.mrb[0].mxu0 %v2935
    %v3995 = vpop.f32.mrb[0].mxu0
    %v3996 = vadd.f32 %v3803, %v3995
    %v3997 = vpop.f32.mrb[0].mxu0
    %v3998 = vadd.f32 %v3805, %v3997
    %v3999 = vpop.f32.mrb[0].mxu0
    %v4000 = vadd.f32 %v3807, %v3999
    %v4001 = vpop.f32.mrb[0].mxu0
    %v4002 = vadd.f32 %v3809, %v4001
    %4003 = vmatprep.mubr.bf16.mxu0 0
    %4004 = vmatmul.mubr.bf16.gmra.mrb[0].mxu0 %v2936
    %v4005 = vpop.f32.mrb[0].mxu0
    %v4006 = vadd.f32 %v3813, %v4005
    %v4007 = vpop.f32.mrb[0].mxu0
    %v4008 = vadd.f32 %v3815, %v4007
    %v4009 = vpop.f32.mrb[0].mxu0
    %v4010 = vadd.f32 %v3817, %v4009
    %v4011 = vpop.f32.mrb[0].mxu0
    %v4012 = vadd.f32 %v3819, %v4011
    %4013 = vmatprep.mubr.bf16.mxu0 0
    %4014 = vmatmul.mubr.bf16.gmra.mrb[0].mxu0 %v2937
    %v4015 = vpop.f32.mrb[0].mxu0
    %v4016 = vadd.f32 %v3823, %v4015
    %v4017 = vpop.f32.mrb[0].mxu0
    %v4018 = vadd.f32 %v3825, %v4017
    %v4019 = vpop.f32.mrb[0].mxu0
    %v4020 = vadd.f32 %v3827, %v4019
    %v4021 = vpop.f32.mrb[0].mxu0
    %v4022 = vadd.f32 %v3829, %v4021
    %4023 = vmatprep.mubr.bf16.mxu0 0
    %4024 = vmatmul.mubr.bf16.gmra.mrb[0].mxu0 %v2938
    %v4025 = vpop.f32.mrb[0].mxu0
    %v4026 = vadd.f32 %v3833, %v4025
    %v4027 = vpop.f32.mrb[0].mxu0
    %v4028 = vadd.f32 %v3835, %v4027
    %v4029 = vpop.f32.mrb[0].mxu0
    %v4030 = vadd.f32 %v3837, %v4029
    %v4031 = vpop.f32.mrb[0].mxu0
    %v4032 = vadd.f32 %v3839, %v4031
    %4033 = vdwg.mxu0
    %4034 = vrot.lane.b32.xlu0 %v2139, 96
    %v4035 = vpop.permute.xlu0 %4034
    %4036 = vrot.lane.b32.xlu0 %v2140, 96
    %v4037 = vpop.permute.xlu0 %4036
    %4038 = vrot.lane.b32.xlu0 %v2141, 96
    %v4039 = vpop.permute.xlu0 %4038
    %4040 = vrot.lane.b32.xlu0 %v2142, 96
    %v4041 = vpop.permute.xlu0 %4040
    %4042 = vrot.lane.b32.xlu0 %v2143, 96
    %v4043 = vpop.permute.xlu0 %4042
    %4044 = vrot.lane.b32.xlu0 %v2144, 96
    %v4045 = vpop.permute.xlu0 %4044
    %4046 = vrot.lane.b32.xlu0 %v2145, 96
    %v4047 = vpop.permute.xlu0 %4046
    %4048 = vrot.lane.b32.xlu0 %v2146, 96
    %v4049 = vpop.permute.xlu0 %4048
    %v4051 = vsel %vm2238, %v4035, 0
    %v4054 = vsel %vm2238, %v4037, 0
    %v4057 = vsel %vm2238, %v4039, 0
    %v4060 = vsel %vm2238, %v4041, 0
    %v4063 = vsel %vm2238, %v4043, 0
    %v4066 = vsel %vm2238, %v4045, 0
    %v4069 = vsel %vm2238, %v4047, 0
    %v4072 = vsel %vm2238, %v4049, 0
    %4074 = vmatprep.subr.bf16.mxu0 0
    %4075 = vmatpush1.bf16.xpose.msra.mxu0 %v2264
    %4076 = vmatprep.subr.bf16.mxu0 0
    %4077 = vmatpush1.bf16.xpose.msra.mxu0 %v2267
    %4078 = vmatprep.subr.bf16.mxu0 0
    %4079 = vmatpush1.bf16.xpose.msra.mxu0 %v2270
    %4080 = vmatprep.subr.bf16.mxu0 0
    %4081 = vmatpush1.bf16.xpose.msra.mxu0 %v2273
    %4082 = vmatprep.subr.bf16.mxu0 0
    %4083 = vmatpush1.bf16.xpose.msra.mxu0 %v2276
    %4084 = vmatprep.subr.bf16.mxu0 0
    %4085 = vmatpush1.bf16.xpose.msra.mxu0 %v2279
    %4086 = vmatprep.subr.bf16.mxu0 0
    %4087 = vmatpush1.bf16.xpose.msra.mxu0 %v2282
    %4088 = vmatprep.subr.bf16.mxu0 0
    %4089 = vmatpush1.bf16.xpose.msra.mxu0 %v2285
    %4090 = vmatprep.subr.bf16.mxu0 0
    %4091 = vmatpush1.bf16.xpose.msra.mxu0 0
    %4092 = vmatprep.subr.bf16.mxu0 0
    %4093 = vmatpush1.bf16.xpose.msra.mxu0 0
    %4094 = vmatprep.subr.bf16.mxu0 0
    %4095 = vmatpush1.bf16.xpose.msra.mxu0 0
    %4096 = vmatprep.subr.bf16.mxu0 0
    %4097 = vmatpush1.bf16.xpose.msra.mxu0 0
    %4098 = vmatprep.subr.bf16.mxu0 0
    %4099 = vmatpush1.bf16.xpose.msra.mxu0 0
    %4100 = vmatprep.subr.bf16.mxu0 0
    %4101 = vmatpush1.bf16.xpose.msra.mxu0 0
    %4102 = vmatprep.subr.bf16.mxu0 0
    %4103 = vmatpush1.bf16.xpose.msra.mxu0 0
    %4104 = vmatprep.subr.bf16.mxu0 0
    %4105 = vmatpush1.bf16.xpose.msra.mxu0 0
    %4106 = vmatprep.mubr.bf16.mxu0 0
    %4107 = vmatmul.mubr.bf16.gmra.mrb[0].mxu0 %v4051
    %v4108 = vpop.f32.mrb[0].mxu0
    %v4109 = vadd.f32 0.0, %v4108
    %v4110 = vpop.f32.mrb[0].mxu0
    %v4111 = vpop.f32.mrb[0].mxu0
    %v4112 = vadd.f32 0.0, %v4111
    %v4113 = vpop.f32.mrb[0].mxu0
    %4114 = vmatprep.mubr.bf16.mxu0 0
    %4115 = vmatmul.mubr.bf16.gmra.mrb[0].mxu0 %v4054
    %v4116 = vpop.f32.mrb[0].mxu0
    %v4117 = vadd.f32 0.0, %v4116
    %v4118 = vpop.f32.mrb[0].mxu0
    %v4119 = vpop.f32.mrb[0].mxu0
    %v4120 = vadd.f32 0.0, %v4119
    %v4121 = vpop.f32.mrb[0].mxu0
    %4122 = vmatprep.mubr.bf16.mxu0 0
    %4123 = vmatmul.mubr.bf16.gmra.mrb[0].mxu0 %v4057
    %v4124 = vpop.f32.mrb[0].mxu0
    %v4125 = vadd.f32 0.0, %v4124
    %v4126 = vpop.f32.mrb[0].mxu0
    %v4127 = vpop.f32.mrb[0].mxu0
    %v4128 = vadd.f32 0.0, %v4127
    %v4129 = vpop.f32.mrb[0].mxu0
    %4130 = vmatprep.mubr.bf16.mxu0 0
    %4131 = vmatmul.mubr.bf16.gmra.mrb[0].mxu0 %v4060
    %v4132 = vpop.f32.mrb[0].mxu0
    %v4133 = vadd.f32 0.0, %v4132
    %v4134 = vpop.f32.mrb[0].mxu0
    %v4135 = vpop.f32.mrb[0].mxu0
    %v4136 = vadd.f32 0.0, %v4135
    %v4137 = vpop.f32.mrb[0].mxu0
    %4138 = vmatprep.mubr.bf16.mxu0 0
    %4139 = vmatmul.mubr.bf16.gmra.mrb[0].mxu0 %v4063
    %v4140 = vpop.f32.mrb[0].mxu0
    %v4141 = vadd.f32 0.0, %v4140
    %v4142 = vpop.f32.mrb[0].mxu0
    %v4143 = vpop.f32.mrb[0].mxu0
    %v4144 = vadd.f32 0.0, %v4143
    %v4145 = vpop.f32.mrb[0].mxu0
    %4146 = vmatprep.mubr.bf16.mxu0 0
    %4147 = vmatmul.mubr.bf16.gmra.mrb[0].mxu0 %v4066
    %v4148 = vpop.f32.mrb[0].mxu0
    %v4149 = vadd.f32 0.0, %v4148
    %v4150 = vpop.f32.mrb[0].mxu0
    %v4151 = vpop.f32.mrb[0].mxu0
    %v4152 = vadd.f32 0.0, %v4151
    %v4153 = vpop.f32.mrb[0].mxu0
    %4154 = vmatprep.mubr.bf16.mxu0 0
    %4155 = vmatmul.mubr.bf16.gmra.mrb[0].mxu0 %v4069
    %v4156 = vpop.f32.mrb[0].mxu0
    %v4157 = vadd.f32 0.0, %v4156
    %v4158 = vpop.f32.mrb[0].mxu0
    %v4159 = vpop.f32.mrb[0].mxu0
    %v4160 = vadd.f32 0.0, %v4159
    %v4161 = vpop.f32.mrb[0].mxu0
    %4162 = vmatprep.mubr.bf16.mxu0 0
    %4163 = vmatmul.mubr.bf16.gmra.mrb[0].mxu0 %v4072
    %v4164 = vpop.f32.mrb[0].mxu0
    %v4165 = vadd.f32 0.0, %v4164
    %v4166 = vpop.f32.mrb[0].mxu0
    %v4167 = vpop.f32.mrb[0].mxu0
    %v4168 = vadd.f32 0.0, %v4167
    %v4169 = vpop.f32.mrb[0].mxu0
    %4170 = vdwg.mxu0
    %4171 = vmatprep.subr.bf16.mxu0 0
    %4172 = vmatpush1.bf16.xpose.msra.mxu0 %v543
    %4173 = vmatprep.subr.bf16.mxu0 0
    %4174 = vmatpush1.bf16.xpose.msra.mxu0 %v544
    %4175 = vmatprep.subr.bf16.mxu0 0
    %4176 = vmatpush1.bf16.xpose.msra.mxu0 %v545
    %4177 = vmatprep.subr.bf16.mxu0 0
    %4178 = vmatpush1.bf16.xpose.msra.mxu0 %v546
    %4179 = vmatprep.subr.bf16.mxu0 0
    %4180 = vmatpush1.bf16.xpose.msra.mxu0 %v547
    %4181 = vmatprep.subr.bf16.mxu0 0
    %4182 = vmatpush1.bf16.xpose.msra.mxu0 %v548
    %4183 = vmatprep.subr.bf16.mxu0 0
    %4184 = vmatpush1.bf16.xpose.msra.mxu0 %v549
    %4185 = vmatprep.subr.bf16.mxu0 0
    %4186 = vmatpush1.bf16.xpose.msra.mxu0 %v550
    %4187 = vmatprep.subr.bf16.mxu0 0
    %4188 = vmatpush1.bf16.xpose.msra.mxu0 0
    %4189 = vmatprep.subr.bf16.mxu0 0
    %4190 = vmatpush1.bf16.xpose.msra.mxu0 0
    %4191 = vmatprep.subr.bf16.mxu0 0
    %4192 = vmatpush1.bf16.xpose.msra.mxu0 0
    %4193 = vmatprep.subr.bf16.mxu0 0
    %4194 = vmatpush1.bf16.xpose.msra.mxu0 0
    %4195 = vmatprep.subr.bf16.mxu0 0
    %4196 = vmatpush1.bf16.xpose.msra.mxu0 0
    %4197 = vmatprep.subr.bf16.mxu0 0
    %4198 = vmatpush1.bf16.xpose.msra.mxu0 0
    %4199 = vmatprep.subr.bf16.mxu0 0
    %4200 = vmatpush1.bf16.xpose.msra.mxu0 0
    %4201 = vmatprep.subr.bf16.mxu0 0
    %4202 = vmatpush1.bf16.xpose.msra.mxu0 0
    %4203 = vmatprep.mubr.bf16.mxu0 0
    %4204 = vmatmul.mubr.bf16.gmra.mrb[0].mxu0 %v1739
    %v4205 = vpop.f32.mrb[0].mxu0
    %v4206 = vadd.f32 %v4109, %v4205
    %v4207 = vpop.f32.mrb[0].mxu0
    %v4208 = vpop.f32.mrb[0].mxu0
    %v4209 = vadd.f32 %v4112, %v4208
    %v4210 = vpop.f32.mrb[0].mxu0
    %4211 = vmatprep.mubr.bf16.mxu0 0
    %4212 = vmatmul.mubr.bf16.gmra.mrb[0].mxu0 %v1743
    %v4213 = vpop.f32.mrb[0].mxu0
    %v4214 = vadd.f32 %v4117, %v4213
    %v4215 = vpop.f32.mrb[0].mxu0
    %v4216 = vpop.f32.mrb[0].mxu0
    %v4217 = vadd.f32 %v4120, %v4216
    %v4218 = vpop.f32.mrb[0].mxu0
    %4219 = vmatprep.mubr.bf16.mxu0 0
    %4220 = vmatmul.mubr.bf16.gmra.mrb[0].mxu0 %v1747
    %v4221 = vpop.f32.mrb[0].mxu0
    %v4222 = vadd.f32 %v4125, %v4221
    %v4223 = vpop.f32.mrb[0].mxu0
    %v4224 = vpop.f32.mrb[0].mxu0
    %v4225 = vadd.f32 %v4128, %v4224
    %v4226 = vpop.f32.mrb[0].mxu0
    %4227 = vmatprep.mubr.bf16.mxu0 0
    %4228 = vmatmul.mubr.bf16.gmra.mrb[0].mxu0 %v1751
    %v4229 = vpop.f32.mrb[0].mxu0
    %v4230 = vadd.f32 %v4133, %v4229
    %v4231 = vpop.f32.mrb[0].mxu0
    %v4232 = vpop.f32.mrb[0].mxu0
    %v4233 = vadd.f32 %v4136, %v4232
    %v4234 = vpop.f32.mrb[0].mxu0
    %4235 = vmatprep.mubr.bf16.mxu0 0
    %4236 = vmatmul.mubr.bf16.gmra.mrb[0].mxu0 %v1755
    %v4237 = vpop.f32.mrb[0].mxu0
    %v4238 = vadd.f32 %v4141, %v4237
    %v4239 = vpop.f32.mrb[0].mxu0
    %v4240 = vpop.f32.mrb[0].mxu0
    %v4241 = vadd.f32 %v4144, %v4240
    %v4242 = vpop.f32.mrb[0].mxu0
    %4243 = vmatprep.mubr.bf16.mxu0 0
    %4244 = vmatmul.mubr.bf16.gmra.mrb[0].mxu0 %v1759
    %v4245 = vpop.f32.mrb[0].mxu0
    %v4246 = vadd.f32 %v4149, %v4245
    %v4247 = vpop.f32.mrb[0].mxu0
    %v4248 = vpop.f32.mrb[0].mxu0
    %v4249 = vadd.f32 %v4152, %v4248
    %v4250 = vpop.f32.mrb[0].mxu0
    %4251 = vmatprep.mubr.bf16.mxu0 0
    %4252 = vmatmul.mubr.bf16.gmra.mrb[0].mxu0 %v1763
    %v4253 = vpop.f32.mrb[0].mxu0
    %v4254 = vadd.f32 %v4157, %v4253
    %v4255 = vpop.f32.mrb[0].mxu0
    %v4256 = vpop.f32.mrb[0].mxu0
    %v4257 = vadd.f32 %v4160, %v4256
    %v4258 = vpop.f32.mrb[0].mxu0
    %4259 = vmatprep.mubr.bf16.mxu0 0
    %4260 = vmatmul.mubr.bf16.gmra.mrb[0].mxu0 %v1767
    %v4261 = vpop.f32.mrb[0].mxu0
    %v4262 = vadd.f32 %v4165, %v4261
    %v4263 = vpop.f32.mrb[0].mxu0
    %v4264 = vpop.f32.mrb[0].mxu0
    %v4265 = vadd.f32 %v4168, %v4264
    %v4266 = vpop.f32.mrb[0].mxu0
    %4267 = vdwg.mxu0
    %4268 = vrot.lane.b32.xlu0 %v2195, 96
    %v4269 = vpop.permute.xlu0 %4268
    %4270 = vrot.lane.b32.xlu0 %v2196, 96
    %v4271 = vpop.permute.xlu0 %4270
    %4272 = vrot.lane.b32.xlu0 %v2197, 96
    %v4273 = vpop.permute.xlu0 %4272
    %4274 = vrot.lane.b32.xlu0 %v2198, 96
    %v4275 = vpop.permute.xlu0 %4274
    %4276 = vrot.lane.b32.xlu0 %v2199, 96
    %v4277 = vpop.permute.xlu0 %4276
    %4278 = vrot.lane.b32.xlu0 %v2200, 96
    %v4279 = vpop.permute.xlu0 %4278
    %4280 = vrot.lane.b32.xlu0 %v2201, 96
    %v4281 = vpop.permute.xlu0 %4280
    %4282 = vrot.lane.b32.xlu0 %v2202, 96
    %v4283 = vpop.permute.xlu0 %4282
    %v4285 = vsel %vm2238, %v4269, 0
    %v4288 = vsel %vm2238, %v4271, 0
    %v4291 = vsel %vm2238, %v4273, 0
    %v4294 = vsel %vm2238, %v4275, 0
    %v4297 = vsel %vm2238, %v4277, 0
    %v4300 = vsel %vm2238, %v4279, 0
    %v4303 = vsel %vm2238, %v4281, 0
    %v4306 = vsel %vm2238, %v4283, 0
    %4308 = vmatprep.subr.bf16.mxu0 0
    %4309 = vmatpush1.bf16.xpose.msra.mxu0 %v2530
    %4310 = vmatprep.subr.bf16.mxu0 0
    %4311 = vmatpush1.bf16.xpose.msra.mxu0 %v2533
    %4312 = vmatprep.subr.bf16.mxu0 0
    %4313 = vmatpush1.bf16.xpose.msra.mxu0 %v2536
    %4314 = vmatprep.subr.bf16.mxu0 0
    %4315 = vmatpush1.bf16.xpose.msra.mxu0 %v2539
    %4316 = vmatprep.subr.bf16.mxu0 0
    %4317 = vmatpush1.bf16.xpose.msra.mxu0 %v2542
    %4318 = vmatprep.subr.bf16.mxu0 0
    %4319 = vmatpush1.bf16.xpose.msra.mxu0 %v2545
    %4320 = vmatprep.subr.bf16.mxu0 0
    %4321 = vmatpush1.bf16.xpose.msra.mxu0 %v2548
    %4322 = vmatprep.subr.bf16.mxu0 0
    %4323 = vmatpush1.bf16.xpose.msra.mxu0 %v2551
    %4324 = vmatprep.subr.bf16.mxu0 0
    %4325 = vmatpush1.bf16.xpose.msra.mxu0 0
    %4326 = vmatprep.subr.bf16.mxu0 0
    %4327 = vmatpush1.bf16.xpose.msra.mxu0 0
    %4328 = vmatprep.subr.bf16.mxu0 0
    %4329 = vmatpush1.bf16.xpose.msra.mxu0 0
    %4330 = vmatprep.subr.bf16.mxu0 0
    %4331 = vmatpush1.bf16.xpose.msra.mxu0 0
    %4332 = vmatprep.subr.bf16.mxu0 0
    %4333 = vmatpush1.bf16.xpose.msra.mxu0 0
    %4334 = vmatprep.subr.bf16.mxu0 0
    %4335 = vmatpush1.bf16.xpose.msra.mxu0 0
    %4336 = vmatprep.subr.bf16.mxu0 0
    %4337 = vmatpush1.bf16.xpose.msra.mxu0 0
    %4338 = vmatprep.subr.bf16.mxu0 0
    %4339 = vmatpush1.bf16.xpose.msra.mxu0 0
    %4340 = vmatprep.mubr.bf16.mxu0 0
    %4341 = vmatmul.mubr.bf16.gmra.mrb[0].mxu0 %v4285
    %v4342 = vpop.f32.mrb[0].mxu0
    %v4343 = vadd.f32 0.0, %v4342
    %v4344 = vpop.f32.mrb[0].mxu0
    %v4345 = vpop.f32.mrb[0].mxu0
    %v4346 = vadd.f32 0.0, %v4345
    %v4347 = vpop.f32.mrb[0].mxu0
    %4348 = vmatprep.mubr.bf16.mxu0 0
    %4349 = vmatmul.mubr.bf16.gmra.mrb[0].mxu0 %v4288
    %v4350 = vpop.f32.mrb[0].mxu0
    %v4351 = vadd.f32 0.0, %v4350
    %v4352 = vpop.f32.mrb[0].mxu0
    %v4353 = vpop.f32.mrb[0].mxu0
    %v4354 = vadd.f32 0.0, %v4353
    %v4355 = vpop.f32.mrb[0].mxu0
    %4356 = vmatprep.mubr.bf16.mxu0 0
    %4357 = vmatmul.mubr.bf16.gmra.mrb[0].mxu0 %v4291
    %v4358 = vpop.f32.mrb[0].mxu0
    %v4359 = vadd.f32 0.0, %v4358
    %v4360 = vpop.f32.mrb[0].mxu0
    %v4361 = vpop.f32.mrb[0].mxu0
    %v4362 = vadd.f32 0.0, %v4361
    %v4363 = vpop.f32.mrb[0].mxu0
    %4364 = vmatprep.mubr.bf16.mxu0 0
    %4365 = vmatmul.mubr.bf16.gmra.mrb[0].mxu0 %v4294
    %v4366 = vpop.f32.mrb[0].mxu0
    %v4367 = vadd.f32 0.0, %v4366
    %v4368 = vpop.f32.mrb[0].mxu0
    %v4369 = vpop.f32.mrb[0].mxu0
    %v4370 = vadd.f32 0.0, %v4369
    %v4371 = vpop.f32.mrb[0].mxu0
    %4372 = vmatprep.mubr.bf16.mxu0 0
    %4373 = vmatmul.mubr.bf16.gmra.mrb[0].mxu0 %v4297
    %v4374 = vpop.f32.mrb[0].mxu0
    %v4375 = vadd.f32 0.0, %v4374
    %v4376 = vpop.f32.mrb[0].mxu0
    %v4377 = vpop.f32.mrb[0].mxu0
    %v4378 = vadd.f32 0.0, %v4377
    %v4379 = vpop.f32.mrb[0].mxu0
    %4380 = vmatprep.mubr.bf16.mxu0 0
    %4381 = vmatmul.mubr.bf16.gmra.mrb[0].mxu0 %v4300
    %v4382 = vpop.f32.mrb[0].mxu0
    %v4383 = vadd.f32 0.0, %v4382
    %v4384 = vpop.f32.mrb[0].mxu0
    %v4385 = vpop.f32.mrb[0].mxu0
    %v4386 = vadd.f32 0.0, %v4385
    %v4387 = vpop.f32.mrb[0].mxu0
    %4388 = vmatprep.mubr.bf16.mxu0 0
    %4389 = vmatmul.mubr.bf16.gmra.mrb[0].mxu0 %v4303
    %v4390 = vpop.f32.mrb[0].mxu0
    %v4391 = vadd.f32 0.0, %v4390
    %v4392 = vpop.f32.mrb[0].mxu0
    %v4393 = vpop.f32.mrb[0].mxu0
    %v4394 = vadd.f32 0.0, %v4393
    %v4395 = vpop.f32.mrb[0].mxu0
    %4396 = vmatprep.mubr.bf16.mxu0 0
    %4397 = vmatmul.mubr.bf16.gmra.mrb[0].mxu0 %v4306
    %v4398 = vpop.f32.mrb[0].mxu0
    %v4399 = vadd.f32 0.0, %v4398
    %v4400 = vpop.f32.mrb[0].mxu0
    %v4401 = vpop.f32.mrb[0].mxu0
    %v4402 = vadd.f32 0.0, %v4401
    %v4403 = vpop.f32.mrb[0].mxu0
    %4404 = vdwg.mxu0
    %v4405 = vadd.f32 %v4206, %v4343
    %v4406 = vadd.f32 %v4209, %v4346
    %v4407 = vadd.f32 %v4214, %v4351
    %v4408 = vadd.f32 %v4217, %v4354
    %v4409 = vadd.f32 %v4222, %v4359
    %v4410 = vadd.f32 %v4225, %v4362
    %v4411 = vadd.f32 %v4230, %v4367
    %v4412 = vadd.f32 %v4233, %v4370
    %v4413 = vadd.f32 %v4238, %v4375
    %v4414 = vadd.f32 %v4241, %v4378
    %v4415 = vadd.f32 %v4246, %v4383
    %v4416 = vadd.f32 %v4249, %v4386
    %v4417 = vadd.f32 %v4254, %v4391
    %v4418 = vadd.f32 %v4257, %v4394
    %v4419 = vadd.f32 %v4262, %v4399
    %v4420 = vadd.f32 %v4265, %v4402
    %v4421 = vsel %vm2222, %v4405, -1e+30
    %v4422 = vsel %vm2223, %v4406, -1e+30
    %v4423 = vsel %vm2224, %v4407, -1e+30
    %v4424 = vsel %vm2225, %v4408, -1e+30
    %v4425 = vsel %vm2226, %v4409, -1e+30
    %v4426 = vsel %vm2227, %v4410, -1e+30
    %v4427 = vsel %vm2228, %v4411, -1e+30
    %v4428 = vsel %vm2229, %v4412, -1e+30
    %v4429 = vsel %vm2230, %v4413, -1e+30
    %v4430 = vsel %vm2231, %v4414, -1e+30
    %v4431 = vsel %vm2232, %v4415, -1e+30
    %v4432 = vsel %vm2233, %v4416, -1e+30
    %v4433 = vsel %vm2234, %v4417, -1e+30
    %v4434 = vsel %vm2235, %v4418, -1e+30
    %v4435 = vsel %vm2236, %v4419, -1e+30
    %v4436 = vsel %vm2237, %v4420, -1e+30
    %4437 = vmax.xlane.f32.xlu0 %v4421
    %v4438 = vpop.xlane.xlu0 %4437
    %4439 = vmax.xlane.f32.xlu0 %v4422
    %v4440 = vpop.xlane.xlu0 %4439
    %4441 = vmax.xlane.f32.xlu0 %v4423
    %v4442 = vpop.xlane.xlu0 %4441
    %4443 = vmax.xlane.f32.xlu0 %v4424
    %v4444 = vpop.xlane.xlu0 %4443
    %4445 = vmax.xlane.f32.xlu0 %v4425
    %v4446 = vpop.xlane.xlu0 %4445
    %4447 = vmax.xlane.f32.xlu0 %v4426
    %v4448 = vpop.xlane.xlu0 %4447
    %4449 = vmax.xlane.f32.xlu0 %v4427
    %v4450 = vpop.xlane.xlu0 %4449
    %4451 = vmax.xlane.f32.xlu0 %v4428
    %v4452 = vpop.xlane.xlu0 %4451
    %4453 = vmax.xlane.f32.xlu0 %v4429
    %v4454 = vpop.xlane.xlu0 %4453
    %4455 = vmax.xlane.f32.xlu0 %v4430
    %v4456 = vpop.xlane.xlu0 %4455
    %4457 = vmax.xlane.f32.xlu0 %v4431
    %v4458 = vpop.xlane.xlu0 %4457
    %4459 = vmax.xlane.f32.xlu0 %v4432
    %v4460 = vpop.xlane.xlu0 %4459
    %4461 = vmax.xlane.f32.xlu0 %v4433
    %v4462 = vpop.xlane.xlu0 %4461
    %4463 = vmax.xlane.f32.xlu0 %v4434
    %v4464 = vpop.xlane.xlu0 %4463
    %4465 = vmax.xlane.f32.xlu0 %v4435
    %v4466 = vpop.xlane.xlu0 %4465
    %4467 = vmax.xlane.f32.xlu0 %v4436
    %v4468 = vpop.xlane.xlu0 %4467
    %v4469 = vsub.f32 %v4421, %v4438
    %v4470 = vsub.f32 %v4422, %v4440
    %v4471 = vsub.f32 %v4423, %v4442
    %v4472 = vsub.f32 %v4424, %v4444
    %v4473 = vsub.f32 %v4425, %v4446
    %v4474 = vsub.f32 %v4426, %v4448
    %v4475 = vsub.f32 %v4427, %v4450
    %v4476 = vsub.f32 %v4428, %v4452
    %v4477 = vsub.f32 %v4429, %v4454
    %v4478 = vsub.f32 %v4430, %v4456
    %v4479 = vsub.f32 %v4431, %v4458
    %v4480 = vsub.f32 %v4432, %v4460
    %v4481 = vsub.f32 %v4433, %v4462
    %v4482 = vsub.f32 %v4434, %v4464
    %v4483 = vsub.f32 %v4435, %v4466
    %v4484 = vsub.f32 %v4436, %v4468
    %v4485 = vmul.f32 %v4469, 1.442695
    %v4486 = vpow.pop %v4485
    %v4487 = vmul.f32 %v4470, 1.442695
    %v4488 = vpow.pop %v4487
    %v4489 = vmul.f32 %v4471, 1.442695
    %v4490 = vpow.pop %v4489
    %v4491 = vmul.f32 %v4472, 1.442695
    %v4492 = vpow.pop %v4491
    %v4493 = vmul.f32 %v4473, 1.442695
    %v4494 = vpow.pop %v4493
    %v4495 = vmul.f32 %v4474, 1.442695
    %v4496 = vpow.pop %v4495
    %v4497 = vmul.f32 %v4475, 1.442695
    %v4498 = vpow.pop %v4497
    %v4499 = vmul.f32 %v4476, 1.442695
    %v4500 = vpow.pop %v4499
    %v4501 = vmul.f32 %v4477, 1.442695
    %v4502 = vpow.pop %v4501
    %v4503 = vmul.f32 %v4478, 1.442695
    %v4504 = vpow.pop %v4503
    %v4505 = vmul.f32 %v4479, 1.442695
    %v4506 = vpow.pop %v4505
    %v4507 = vmul.f32 %v4480, 1.442695
    %v4508 = vpow.pop %v4507
    %v4509 = vmul.f32 %v4481, 1.442695
    %v4510 = vpow.pop %v4509
    %v4511 = vmul.f32 %v4482, 1.442695
    %v4512 = vpow.pop %v4511
    %v4513 = vmul.f32 %v4483, 1.442695
    %v4514 = vpow.pop %v4513
    %v4515 = vmul.f32 %v4484, 1.442695
    %v4516 = vpow.pop %v4515
    %4517 = vadd.xlane.f32.xlu0 %v4486
    %v4518 = vpop.xlane.xlu0 %4517
    %4519 = vadd.xlane.f32.xlu0 %v4488
    %v4520 = vpop.xlane.xlu0 %4519
    %4521 = vadd.xlane.f32.xlu0 %v4490
    %v4522 = vpop.xlane.xlu0 %4521
    %4523 = vadd.xlane.f32.xlu0 %v4492
    %v4524 = vpop.xlane.xlu0 %4523
    %4525 = vadd.xlane.f32.xlu0 %v4494
    %v4526 = vpop.xlane.xlu0 %4525
    %4527 = vadd.xlane.f32.xlu0 %v4496
    %v4528 = vpop.xlane.xlu0 %4527
    %4529 = vadd.xlane.f32.xlu0 %v4498
    %v4530 = vpop.xlane.xlu0 %4529
    %4531 = vadd.xlane.f32.xlu0 %v4500
    %v4532 = vpop.xlane.xlu0 %4531
    %4533 = vadd.xlane.f32.xlu0 %v4502
    %v4534 = vpop.xlane.xlu0 %4533
    %4535 = vadd.xlane.f32.xlu0 %v4504
    %v4536 = vpop.xlane.xlu0 %4535
    %4537 = vadd.xlane.f32.xlu0 %v4506
    %v4538 = vpop.xlane.xlu0 %4537
    %4539 = vadd.xlane.f32.xlu0 %v4508
    %v4540 = vpop.xlane.xlu0 %4539
    %4541 = vadd.xlane.f32.xlu0 %v4510
    %v4542 = vpop.xlane.xlu0 %4541
    %4543 = vadd.xlane.f32.xlu0 %v4512
    %v4544 = vpop.xlane.xlu0 %4543
    %4545 = vadd.xlane.f32.xlu0 %v4514
    %v4546 = vpop.xlane.xlu0 %4545
    %4547 = vadd.xlane.f32.xlu0 %v4516
    %v4548 = vpop.xlane.xlu0 %4547
    %v4549 = vrcp.pop %v4518
    %v4550 = vmul.f32 %v4486, %v4549
    %v4551 = vrcp.pop %v4520
    %v4552 = vmul.f32 %v4488, %v4551
    %v4553 = vrcp.pop %v4522
    %v4554 = vmul.f32 %v4490, %v4553
    %v4555 = vrcp.pop %v4524
    %v4556 = vmul.f32 %v4492, %v4555
    %v4557 = vrcp.pop %v4526
    %v4558 = vmul.f32 %v4494, %v4557
    %v4559 = vrcp.pop %v4528
    %v4560 = vmul.f32 %v4496, %v4559
    %v4561 = vrcp.pop %v4530
    %v4562 = vmul.f32 %v4498, %v4561
    %v4563 = vrcp.pop %v4532
    %v4564 = vmul.f32 %v4500, %v4563
    %v4565 = vrcp.pop %v4534
    %v4566 = vmul.f32 %v4502, %v4565
    %v4567 = vrcp.pop %v4536
    %v4568 = vmul.f32 %v4504, %v4567
    %v4569 = vrcp.pop %v4538
    %v4570 = vmul.f32 %v4506, %v4569
    %v4571 = vrcp.pop %v4540
    %v4572 = vmul.f32 %v4508, %v4571
    %v4573 = vrcp.pop %v4542
    %v4574 = vmul.f32 %v4510, %v4573
    %v4575 = vrcp.pop %v4544
    %v4576 = vmul.f32 %v4512, %v4575
    %v4577 = vrcp.pop %v4546
    %v4578 = vmul.f32 %v4514, %v4577
    %v4579 = vrcp.pop %v4548
    %v4580 = vmul.f32 %v4516, %v4579
    %v4581 = vpack.c.bf16 %v4552, %v4550
    %v4582 = vpack.c.bf16 %v4556, %v4554
    %v4583 = vpack.c.bf16 %v4560, %v4558
    %v4584 = vpack.c.bf16 %v4564, %v4562
    %v4585 = vpack.c.bf16 %v4568, %v4566
    %v4586 = vpack.c.bf16 %v4572, %v4570
    %v4587 = vpack.c.bf16 %v4576, %v4574
    %v4588 = vpack.c.bf16 %v4580, %v4578
    %4589 = vmatprep.subr.bf16.mxu0 0
    %4590 = vmatpush1.bf16.msra.mxu0 %v543
    %4591 = vmatprep.subr.bf16.mxu0 0
    %4592 = vmatpush1.bf16.msra.mxu0 %v544
    %4593 = vmatprep.subr.bf16.mxu0 0
    %4594 = vmatpush1.bf16.msra.mxu0 %v545
    %4595 = vmatprep.subr.bf16.mxu0 0
    %4596 = vmatpush1.bf16.msra.mxu0 %v546
    %4597 = vmatprep.subr.bf16.mxu0 0
    %4598 = vmatpush1.bf16.msra.mxu0 %v547
    %4599 = vmatprep.subr.bf16.mxu0 0
    %4600 = vmatpush1.bf16.msra.mxu0 %v548
    %4601 = vmatprep.subr.bf16.mxu0 0
    %4602 = vmatpush1.bf16.msra.mxu0 %v549
    %4603 = vmatprep.subr.bf16.mxu0 0
    %4604 = vmatpush1.bf16.msra.mxu0 %v550
    %4605 = vmatprep.subr.bf16.mxu0 0
    %4606 = vmatpush1.bf16.msra.mxu0 0
    %4607 = vmatprep.subr.bf16.mxu0 0
    %4608 = vmatpush1.bf16.msra.mxu0 0
    %4609 = vmatprep.subr.bf16.mxu0 0
    %4610 = vmatpush1.bf16.msra.mxu0 0
    %4611 = vmatprep.subr.bf16.mxu0 0
    %4612 = vmatpush1.bf16.msra.mxu0 0
    %4613 = vmatprep.subr.bf16.mxu0 0
    %4614 = vmatpush1.bf16.msra.mxu0 0
    %4615 = vmatprep.subr.bf16.mxu0 0
    %4616 = vmatpush1.bf16.msra.mxu0 0
    %4617 = vmatprep.subr.bf16.mxu0 0
    %4618 = vmatpush1.bf16.msra.mxu0 0
    %4619 = vmatprep.subr.bf16.mxu0 0
    %4620 = vmatpush1.bf16.msra.mxu0 0
    %4621 = vmatprep.mubr.bf16.mxu0 0
    %4622 = vmatmul.mubr.bf16.gmra.mrb[0].mxu0 %v4581
    %v4623 = vpop.f32.mrb[0].mxu0
    %v4624 = vadd.f32 0.0, %v4623
    %v4625 = vpop.f32.mrb[0].mxu0
    %v4626 = vpop.f32.mrb[0].mxu0
    %v4627 = vadd.f32 0.0, %v4626
    %v4628 = vpop.f32.mrb[0].mxu0
    %4629 = vmatprep.mubr.bf16.mxu0 0
    %4630 = vmatmul.mubr.bf16.gmra.mrb[0].mxu0 %v4582
    %v4631 = vpop.f32.mrb[0].mxu0
    %v4632 = vadd.f32 0.0, %v4631
    %v4633 = vpop.f32.mrb[0].mxu0
    %v4634 = vpop.f32.mrb[0].mxu0
    %v4635 = vadd.f32 0.0, %v4634
    %v4636 = vpop.f32.mrb[0].mxu0
    %4637 = vmatprep.mubr.bf16.mxu0 0
    %4638 = vmatmul.mubr.bf16.gmra.mrb[0].mxu0 %v4583
    %v4639 = vpop.f32.mrb[0].mxu0
    %v4640 = vadd.f32 0.0, %v4639
    %v4641 = vpop.f32.mrb[0].mxu0
    %v4642 = vpop.f32.mrb[0].mxu0
    %v4643 = vadd.f32 0.0, %v4642
    %v4644 = vpop.f32.mrb[0].mxu0
    %4645 = vmatprep.mubr.bf16.mxu0 0
    %4646 = vmatmul.mubr.bf16.gmra.mrb[0].mxu0 %v4584
    %v4647 = vpop.f32.mrb[0].mxu0
    %v4648 = vadd.f32 0.0, %v4647
    %v4649 = vpop.f32.mrb[0].mxu0
    %v4650 = vpop.f32.mrb[0].mxu0
    %v4651 = vadd.f32 0.0, %v4650
    %v4652 = vpop.f32.mrb[0].mxu0
    %4653 = vmatprep.mubr.bf16.mxu0 0
    %4654 = vmatmul.mubr.bf16.gmra.mrb[0].mxu0 %v4585
    %v4655 = vpop.f32.mrb[0].mxu0
    %v4656 = vadd.f32 0.0, %v4655
    %v4657 = vpop.f32.mrb[0].mxu0
    %v4658 = vpop.f32.mrb[0].mxu0
    %v4659 = vadd.f32 0.0, %v4658
    %v4660 = vpop.f32.mrb[0].mxu0
    %4661 = vmatprep.mubr.bf16.mxu0 0
    %4662 = vmatmul.mubr.bf16.gmra.mrb[0].mxu0 %v4586
    %v4663 = vpop.f32.mrb[0].mxu0
    %v4664 = vadd.f32 0.0, %v4663
    %v4665 = vpop.f32.mrb[0].mxu0
    %v4666 = vpop.f32.mrb[0].mxu0
    %v4667 = vadd.f32 0.0, %v4666
    %v4668 = vpop.f32.mrb[0].mxu0
    %4669 = vmatprep.mubr.bf16.mxu0 0
    %4670 = vmatmul.mubr.bf16.gmra.mrb[0].mxu0 %v4587
    %v4671 = vpop.f32.mrb[0].mxu0
    %v4672 = vadd.f32 0.0, %v4671
    %v4673 = vpop.f32.mrb[0].mxu0
    %v4674 = vpop.f32.mrb[0].mxu0
    %v4675 = vadd.f32 0.0, %v4674
    %v4676 = vpop.f32.mrb[0].mxu0
    %4677 = vmatprep.mubr.bf16.mxu0 0
    %4678 = vmatmul.mubr.bf16.gmra.mrb[0].mxu0 %v4588
    %v4679 = vpop.f32.mrb[0].mxu0
    %v4680 = vadd.f32 0.0, %v4679
    %v4681 = vpop.f32.mrb[0].mxu0
    %v4682 = vpop.f32.mrb[0].mxu0
    %v4683 = vadd.f32 0.0, %v4682
    %v4684 = vpop.f32.mrb[0].mxu0
    %4685 = vdwg.mxu0
    %v4686 = vpack.c.bf16 %v4627, %v4624
    %v4687 = vpack.c.bf16 %v4635, %v4632
    %v4688 = vpack.c.bf16 %v4643, %v4640
    %v4689 = vpack.c.bf16 %v4651, %v4648
    %v4690 = vpack.c.bf16 %v4659, %v4656
    %v4691 = vpack.c.bf16 %v4667, %v4664
    %v4692 = vpack.c.bf16 %v4675, %v4672
    %v4693 = vpack.c.bf16 %v4683, %v4680
    %s4694 = scalar_lea.vmem %s8, 256
    %v4695 = vld [vmem:[%s4694] sm:$0xff]
    %v4696 = vld [vmem:[%s4694 + $0x8] sm:$0xff]
    %v4697 = vld [vmem:[%s4694 + $0x10] sm:$0xff]
    %v4698 = vld [vmem:[%s4694 + $0x18] sm:$0xff]
    %v4699 = vld [vmem:[%s4694 + $0x20] sm:$0xff]
    %v4700 = vld [vmem:[%s4694 + $0x28] sm:$0xff]
    %v4701 = vld [vmem:[%s4694 + $0x30] sm:$0xff]
    %v4702 = vld [vmem:[%s4694 + $0x38] sm:$0xff]
    %v4703 = vld [vmem:[%s4694 + $0x40] sm:$0xff]
    %v4704 = vld [vmem:[%s4694 + $0x48] sm:$0xff]
    %v4705 = vld [vmem:[%s4694 + $0x50] sm:$0xff]
    %v4706 = vld [vmem:[%s4694 + $0x58] sm:$0xff]
    %v4707 = vld [vmem:[%s4694 + $0x60] sm:$0xff]
    %v4708 = vld [vmem:[%s4694 + $0x68] sm:$0xff]
    %v4709 = vld [vmem:[%s4694 + $0x70] sm:$0xff]
    %v4710 = vld [vmem:[%s4694 + $0x78] sm:$0xff]
    %v4727 = vunpack.c.l.b16 %v4695
    %v4728 = vunpack.c.h.b16 %v4695
    %v4729 = vunpack.c.l.b16 %v4696
    %v4730 = vunpack.c.h.b16 %v4696
    %v4731 = vunpack.c.l.b16 %v4697
    %v4732 = vunpack.c.h.b16 %v4697
    %v4733 = vunpack.c.l.b16 %v4698
    %v4734 = vunpack.c.h.b16 %v4698
    %v4735 = vunpack.c.l.b16 %v4699
    %v4736 = vunpack.c.h.b16 %v4699
    %v4737 = vunpack.c.l.b16 %v4700
    %v4738 = vunpack.c.h.b16 %v4700
    %v4739 = vunpack.c.l.b16 %v4701
    %v4740 = vunpack.c.h.b16 %v4701
    %v4741 = vunpack.c.l.b16 %v4702
    %v4742 = vunpack.c.h.b16 %v4702
    %v4743 = vunpack.c.l.b16 %v4703
    %v4744 = vunpack.c.h.b16 %v4703
    %v4745 = vunpack.c.l.b16 %v4704
    %v4746 = vunpack.c.h.b16 %v4704
    %v4747 = vunpack.c.l.b16 %v4705
    %v4748 = vunpack.c.h.b16 %v4705
    %v4749 = vunpack.c.l.b16 %v4706
    %v4750 = vunpack.c.h.b16 %v4706
    %v4751 = vunpack.c.l.b16 %v4707
    %v4752 = vunpack.c.h.b16 %v4707
    %v4753 = vunpack.c.l.b16 %v4708
    %v4754 = vunpack.c.h.b16 %v4708
    %v4755 = vunpack.c.l.b16 %v4709
    %v4756 = vunpack.c.h.b16 %v4709
    %v4757 = vunpack.c.l.b16 %v4710
    %v4758 = vunpack.c.h.b16 %v4710
    %v4759 = vpack.c.b16 %v4729, %v4727
    %v4760 = vpack.c.b16 %v4730, %v4728
    %v4761 = vpack.c.b16 %v4733, %v4731
    %v4762 = vpack.c.b16 %v4734, %v4732
    %v4763 = vpack.c.b16 %v4737, %v4735
    %v4764 = vpack.c.b16 %v4738, %v4736
    %v4765 = vpack.c.b16 %v4741, %v4739
    %v4766 = vpack.c.b16 %v4742, %v4740
    %v4767 = vpack.c.b16 %v4745, %v4743
    %v4768 = vpack.c.b16 %v4746, %v4744
    %v4769 = vpack.c.b16 %v4749, %v4747
    %v4770 = vpack.c.b16 %v4750, %v4748
    %v4771 = vpack.c.b16 %v4753, %v4751
    %v4772 = vpack.c.b16 %v4754, %v4752
    %v4773 = vpack.c.b16 %v4757, %v4755
    %v4774 = vpack.c.b16 %v4758, %v4756
    %4791 = vmatprep.subr.bf16.mxu0 %v4760
    %4792 = vmatpush1.bf16.msra.mxu0 %v4759
    %4793 = vmatprep.subr.bf16.mxu0 %v4762
    %4794 = vmatpush1.bf16.msra.mxu0 %v4761
    %4795 = vmatprep.subr.bf16.mxu0 %v4764
    %4796 = vmatpush1.bf16.msra.mxu0 %v4763
    %4797 = vmatprep.subr.bf16.mxu0 %v4766
    %4798 = vmatpush1.bf16.msra.mxu0 %v4765
    %4799 = vmatprep.subr.bf16.mxu0 %v4768
    %4800 = vmatpush1.bf16.msra.mxu0 %v4767
    %4801 = vmatprep.subr.bf16.mxu0 %v4770
    %4802 = vmatpush1.bf16.msra.mxu0 %v4769
    %4803 = vmatprep.subr.bf16.mxu0 %v4772
    %4804 = vmatpush1.bf16.msra.mxu0 %v4771
    %4805 = vmatprep.subr.bf16.mxu0 %v4774
    %4806 = vmatpush1.bf16.msra.mxu0 %v4773
    %4807 = vmatprep.subr.bf16.mxu0 0
    %4808 = vmatpush1.bf16.msra.mxu0 0
    %4809 = vmatprep.subr.bf16.mxu0 0
    %4810 = vmatpush1.bf16.msra.mxu0 0
    %4811 = vmatprep.subr.bf16.mxu0 0
    %4812 = vmatpush1.bf16.msra.mxu0 0
    %4813 = vmatprep.subr.bf16.mxu0 0
    %4814 = vmatpush1.bf16.msra.mxu0 0
    %4815 = vmatprep.subr.bf16.mxu0 0
    %4816 = vmatpush1.bf16.msra.mxu0 0
    %4817 = vmatprep.subr.bf16.mxu0 0
    %4818 = vmatpush1.bf16.msra.mxu0 0
    %4819 = vmatprep.subr.bf16.mxu0 0
    %4820 = vmatpush1.bf16.msra.mxu0 0
    %4821 = vmatprep.subr.bf16.mxu0 0
    %4822 = vmatpush1.bf16.msra.mxu0 0
    %4823 = vmatprep.mubr.bf16.mxu0 0
    %4824 = vmatmul.mubr.bf16.gmra.mrb[0].mxu0 %v4686
    %v4825 = vpop.f32.mrb[0].mxu0
    %v4826 = vadd.f32 0.0, %v4825
    %v4827 = vpop.f32.mrb[0].mxu0
    %v4828 = vadd.f32 0.0, %v4827
    %v4829 = vpop.f32.mrb[0].mxu0
    %v4830 = vadd.f32 0.0, %v4829
    %v4831 = vpop.f32.mrb[0].mxu0
    %v4832 = vadd.f32 0.0, %v4831
    %4833 = vmatprep.mubr.bf16.mxu0 0
    %4834 = vmatmul.mubr.bf16.gmra.mrb[0].mxu0 %v4687
    %v4835 = vpop.f32.mrb[0].mxu0
    %v4836 = vadd.f32 0.0, %v4835
    %v4837 = vpop.f32.mrb[0].mxu0
    %v4838 = vadd.f32 0.0, %v4837
    %v4839 = vpop.f32.mrb[0].mxu0
    %v4840 = vadd.f32 0.0, %v4839
    %v4841 = vpop.f32.mrb[0].mxu0
    %v4842 = vadd.f32 0.0, %v4841
    %4843 = vmatprep.mubr.bf16.mxu0 0
    %4844 = vmatmul.mubr.bf16.gmra.mrb[0].mxu0 %v4688
    %v4845 = vpop.f32.mrb[0].mxu0
    %v4846 = vadd.f32 0.0, %v4845
    %v4847 = vpop.f32.mrb[0].mxu0
    %v4848 = vadd.f32 0.0, %v4847
    %v4849 = vpop.f32.mrb[0].mxu0
    %v4850 = vadd.f32 0.0, %v4849
    %v4851 = vpop.f32.mrb[0].mxu0
    %v4852 = vadd.f32 0.0, %v4851
    %4853 = vmatprep.mubr.bf16.mxu0 0
    %4854 = vmatmul.mubr.bf16.gmra.mrb[0].mxu0 %v4689
    %v4855 = vpop.f32.mrb[0].mxu0
    %v4856 = vadd.f32 0.0, %v4855
    %v4857 = vpop.f32.mrb[0].mxu0
    %v4858 = vadd.f32 0.0, %v4857
    %v4859 = vpop.f32.mrb[0].mxu0
    %v4860 = vadd.f32 0.0, %v4859
    %v4861 = vpop.f32.mrb[0].mxu0
    %v4862 = vadd.f32 0.0, %v4861
    %4863 = vmatprep.mubr.bf16.mxu0 0
    %4864 = vmatmul.mubr.bf16.gmra.mrb[0].mxu0 %v4690
    %v4865 = vpop.f32.mrb[0].mxu0
    %v4866 = vadd.f32 0.0, %v4865
    %v4867 = vpop.f32.mrb[0].mxu0
    %v4868 = vadd.f32 0.0, %v4867
    %v4869 = vpop.f32.mrb[0].mxu0
    %v4870 = vadd.f32 0.0, %v4869
    %v4871 = vpop.f32.mrb[0].mxu0
    %v4872 = vadd.f32 0.0, %v4871
    %4873 = vmatprep.mubr.bf16.mxu0 0
    %4874 = vmatmul.mubr.bf16.gmra.mrb[0].mxu0 %v4691
    %v4875 = vpop.f32.mrb[0].mxu0
    %v4876 = vadd.f32 0.0, %v4875
    %v4877 = vpop.f32.mrb[0].mxu0
    %v4878 = vadd.f32 0.0, %v4877
    %v4879 = vpop.f32.mrb[0].mxu0
    %v4880 = vadd.f32 0.0, %v4879
    %v4881 = vpop.f32.mrb[0].mxu0
    %v4882 = vadd.f32 0.0, %v4881
    %4883 = vmatprep.mubr.bf16.mxu0 0
    %4884 = vmatmul.mubr.bf16.gmra.mrb[0].mxu0 %v4692
    %v4885 = vpop.f32.mrb[0].mxu0
    %v4886 = vadd.f32 0.0, %v4885
    %v4887 = vpop.f32.mrb[0].mxu0
    %v4888 = vadd.f32 0.0, %v4887
    %v4889 = vpop.f32.mrb[0].mxu0
    %v4890 = vadd.f32 0.0, %v4889
    %v4891 = vpop.f32.mrb[0].mxu0
    %v4892 = vadd.f32 0.0, %v4891
    %4893 = vmatprep.mubr.bf16.mxu0 0
    %4894 = vmatmul.mubr.bf16.gmra.mrb[0].mxu0 %v4693
    %v4895 = vpop.f32.mrb[0].mxu0
    %v4896 = vadd.f32 0.0, %v4895
    %v4897 = vpop.f32.mrb[0].mxu0
    %v4898 = vadd.f32 0.0, %v4897
    %v4899 = vpop.f32.mrb[0].mxu0
    %v4900 = vadd.f32 0.0, %v4899
    %v4901 = vpop.f32.mrb[0].mxu0
    %v4902 = vadd.f32 0.0, %v4901
    %4903 = vdwg.mxu0
    %v4904 = vadd.f32 %v3956, %v4826
    %v4905 = vadd.f32 %v3958, %v4828
    %v4906 = vadd.f32 %v3960, %v4830
    %v4907 = vadd.f32 %v3962, %v4832
    %v4908 = vadd.f32 %v3966, %v4836
    %v4909 = vadd.f32 %v3968, %v4838
    %v4910 = vadd.f32 %v3970, %v4840
    %v4911 = vadd.f32 %v3972, %v4842
    %v4912 = vadd.f32 %v3976, %v4846
    %v4913 = vadd.f32 %v3978, %v4848
    %v4914 = vadd.f32 %v3980, %v4850
    %v4915 = vadd.f32 %v3982, %v4852
    %v4916 = vadd.f32 %v3986, %v4856
    %v4917 = vadd.f32 %v3988, %v4858
    %v4918 = vadd.f32 %v3990, %v4860
    %v4919 = vadd.f32 %v3992, %v4862
    %v4920 = vadd.f32 %v3996, %v4866
    %v4921 = vadd.f32 %v3998, %v4868
    %v4922 = vadd.f32 %v4000, %v4870
    %v4923 = vadd.f32 %v4002, %v4872
    %v4924 = vadd.f32 %v4006, %v4876
    %v4925 = vadd.f32 %v4008, %v4878
    %v4926 = vadd.f32 %v4010, %v4880
    %v4927 = vadd.f32 %v4012, %v4882
    %v4928 = vadd.f32 %v4016, %v4886
    %v4929 = vadd.f32 %v4018, %v4888
    %v4930 = vadd.f32 %v4020, %v4890
    %v4931 = vadd.f32 %v4022, %v4892
    %v4932 = vadd.f32 %v4026, %v4896
    %v4933 = vadd.f32 %v4028, %v4898
    %v4934 = vadd.f32 %v4030, %v4900
    %v4935 = vadd.f32 %v4032, %v4902
    %4936 = vrot.lane.b32.xlu0 %v2139, 80
    %v4937 = vpop.permute.xlu0 %4936
    %4938 = vrot.lane.b32.xlu0 %v2140, 80
    %v4939 = vpop.permute.xlu0 %4938
    %4940 = vrot.lane.b32.xlu0 %v2141, 80
    %v4941 = vpop.permute.xlu0 %4940
    %4942 = vrot.lane.b32.xlu0 %v2142, 80
    %v4943 = vpop.permute.xlu0 %4942
    %4944 = vrot.lane.b32.xlu0 %v2143, 80
    %v4945 = vpop.permute.xlu0 %4944
    %4946 = vrot.lane.b32.xlu0 %v2144, 80
    %v4947 = vpop.permute.xlu0 %4946
    %4948 = vrot.lane.b32.xlu0 %v2145, 80
    %v4949 = vpop.permute.xlu0 %4948
    %4950 = vrot.lane.b32.xlu0 %v2146, 80
    %v4951 = vpop.permute.xlu0 %4950
    %v4953 = vsel %vm2238, %v4937, 0
    %v4956 = vsel %vm2238, %v4939, 0
    %v4959 = vsel %vm2238, %v4941, 0
    %v4962 = vsel %vm2238, %v4943, 0
    %v4965 = vsel %vm2238, %v4945, 0
    %v4968 = vsel %vm2238, %v4947, 0
    %v4971 = vsel %vm2238, %v4949, 0
    %v4974 = vsel %vm2238, %v4951, 0
    %4976 = vmatprep.subr.bf16.mxu0 0
    %4977 = vmatpush1.bf16.xpose.msra.mxu0 %v2264
    %4978 = vmatprep.subr.bf16.mxu0 0
    %4979 = vmatpush1.bf16.xpose.msra.mxu0 %v2267
    %4980 = vmatprep.subr.bf16.mxu0 0
    %4981 = vmatpush1.bf16.xpose.msra.mxu0 %v2270
    %4982 = vmatprep.subr.bf16.mxu0 0
    %4983 = vmatpush1.bf16.xpose.msra.mxu0 %v2273
    %4984 = vmatprep.subr.bf16.mxu0 0
    %4985 = vmatpush1.bf16.xpose.msra.mxu0 %v2276
    %4986 = vmatprep.subr.bf16.mxu0 0
    %4987 = vmatpush1.bf16.xpose.msra.mxu0 %v2279
    %4988 = vmatprep.subr.bf16.mxu0 0
    %4989 = vmatpush1.bf16.xpose.msra.mxu0 %v2282
    %4990 = vmatprep.subr.bf16.mxu0 0
    %4991 = vmatpush1.bf16.xpose.msra.mxu0 %v2285
    %4992 = vmatprep.subr.bf16.mxu0 0
    %4993 = vmatpush1.bf16.xpose.msra.mxu0 0
    %4994 = vmatprep.subr.bf16.mxu0 0
    %4995 = vmatpush1.bf16.xpose.msra.mxu0 0
    %4996 = vmatprep.subr.bf16.mxu0 0
    %4997 = vmatpush1.bf16.xpose.msra.mxu0 0
    %4998 = vmatprep.subr.bf16.mxu0 0
    %4999 = vmatpush1.bf16.xpose.msra.mxu0 0
    %5000 = vmatprep.subr.bf16.mxu0 0
    %5001 = vmatpush1.bf16.xpose.msra.mxu0 0
    %5002 = vmatprep.subr.bf16.mxu0 0
    %5003 = vmatpush1.bf16.xpose.msra.mxu0 0
    %5004 = vmatprep.subr.bf16.mxu0 0
    %5005 = vmatpush1.bf16.xpose.msra.mxu0 0
    %5006 = vmatprep.subr.bf16.mxu0 0
    %5007 = vmatpush1.bf16.xpose.msra.mxu0 0
    %5008 = vmatprep.mubr.bf16.mxu0 0
    %5009 = vmatmul.mubr.bf16.gmra.mrb[0].mxu0 %v4953
    %v5010 = vpop.f32.mrb[0].mxu0
    %v5011 = vadd.f32 0.0, %v5010
    %v5012 = vpop.f32.mrb[0].mxu0
    %v5013 = vpop.f32.mrb[0].mxu0
    %v5014 = vadd.f32 0.0, %v5013
    %v5015 = vpop.f32.mrb[0].mxu0
    %5016 = vmatprep.mubr.bf16.mxu0 0
    %5017 = vmatmul.mubr.bf16.gmra.mrb[0].mxu0 %v4956
    %v5018 = vpop.f32.mrb[0].mxu0
    %v5019 = vadd.f32 0.0, %v5018
    %v5020 = vpop.f32.mrb[0].mxu0
    %v5021 = vpop.f32.mrb[0].mxu0
    %v5022 = vadd.f32 0.0, %v5021
    %v5023 = vpop.f32.mrb[0].mxu0
    %5024 = vmatprep.mubr.bf16.mxu0 0
    %5025 = vmatmul.mubr.bf16.gmra.mrb[0].mxu0 %v4959
    %v5026 = vpop.f32.mrb[0].mxu0
    %v5027 = vadd.f32 0.0, %v5026
    %v5028 = vpop.f32.mrb[0].mxu0
    %v5029 = vpop.f32.mrb[0].mxu0
    %v5030 = vadd.f32 0.0, %v5029
    %v5031 = vpop.f32.mrb[0].mxu0
    %5032 = vmatprep.mubr.bf16.mxu0 0
    %5033 = vmatmul.mubr.bf16.gmra.mrb[0].mxu0 %v4962
    %v5034 = vpop.f32.mrb[0].mxu0
    %v5035 = vadd.f32 0.0, %v5034
    %v5036 = vpop.f32.mrb[0].mxu0
    %v5037 = vpop.f32.mrb[0].mxu0
    %v5038 = vadd.f32 0.0, %v5037
    %v5039 = vpop.f32.mrb[0].mxu0
    %5040 = vmatprep.mubr.bf16.mxu0 0
    %5041 = vmatmul.mubr.bf16.gmra.mrb[0].mxu0 %v4965
    %v5042 = vpop.f32.mrb[0].mxu0
    %v5043 = vadd.f32 0.0, %v5042
    %v5044 = vpop.f32.mrb[0].mxu0
    %v5045 = vpop.f32.mrb[0].mxu0
    %v5046 = vadd.f32 0.0, %v5045
    %v5047 = vpop.f32.mrb[0].mxu0
    %5048 = vmatprep.mubr.bf16.mxu0 0
    %5049 = vmatmul.mubr.bf16.gmra.mrb[0].mxu0 %v4968
    %v5050 = vpop.f32.mrb[0].mxu0
    %v5051 = vadd.f32 0.0, %v5050
    %v5052 = vpop.f32.mrb[0].mxu0
    %v5053 = vpop.f32.mrb[0].mxu0
    %v5054 = vadd.f32 0.0, %v5053
    %v5055 = vpop.f32.mrb[0].mxu0
    %5056 = vmatprep.mubr.bf16.mxu0 0
    %5057 = vmatmul.mubr.bf16.gmra.mrb[0].mxu0 %v4971
    %v5058 = vpop.f32.mrb[0].mxu0
    %v5059 = vadd.f32 0.0, %v5058
    %v5060 = vpop.f32.mrb[0].mxu0
    %v5061 = vpop.f32.mrb[0].mxu0
    %v5062 = vadd.f32 0.0, %v5061
    %v5063 = vpop.f32.mrb[0].mxu0
    %5064 = vmatprep.mubr.bf16.mxu0 0
    %5065 = vmatmul.mubr.bf16.gmra.mrb[0].mxu0 %v4974
    %v5066 = vpop.f32.mrb[0].mxu0
    %v5067 = vadd.f32 0.0, %v5066
    %v5068 = vpop.f32.mrb[0].mxu0
    %v5069 = vpop.f32.mrb[0].mxu0
    %v5070 = vadd.f32 0.0, %v5069
    %v5071 = vpop.f32.mrb[0].mxu0
    %5072 = vdwg.mxu0
    %5073 = vmatprep.subr.bf16.mxu0 0
    %5074 = vmatpush1.bf16.xpose.msra.mxu0 %v543
    %5075 = vmatprep.subr.bf16.mxu0 0
    %5076 = vmatpush1.bf16.xpose.msra.mxu0 %v544
    %5077 = vmatprep.subr.bf16.mxu0 0
    %5078 = vmatpush1.bf16.xpose.msra.mxu0 %v545
    %5079 = vmatprep.subr.bf16.mxu0 0
    %5080 = vmatpush1.bf16.xpose.msra.mxu0 %v546
    %5081 = vmatprep.subr.bf16.mxu0 0
    %5082 = vmatpush1.bf16.xpose.msra.mxu0 %v547
    %5083 = vmatprep.subr.bf16.mxu0 0
    %5084 = vmatpush1.bf16.xpose.msra.mxu0 %v548
    %5085 = vmatprep.subr.bf16.mxu0 0
    %5086 = vmatpush1.bf16.xpose.msra.mxu0 %v549
    %5087 = vmatprep.subr.bf16.mxu0 0
    %5088 = vmatpush1.bf16.xpose.msra.mxu0 %v550
    %5089 = vmatprep.subr.bf16.mxu0 0
    %5090 = vmatpush1.bf16.xpose.msra.mxu0 0
    %5091 = vmatprep.subr.bf16.mxu0 0
    %5092 = vmatpush1.bf16.xpose.msra.mxu0 0
    %5093 = vmatprep.subr.bf16.mxu0 0
    %5094 = vmatpush1.bf16.xpose.msra.mxu0 0
    %5095 = vmatprep.subr.bf16.mxu0 0
    %5096 = vmatpush1.bf16.xpose.msra.mxu0 0
    %5097 = vmatprep.subr.bf16.mxu0 0
    %5098 = vmatpush1.bf16.xpose.msra.mxu0 0
    %5099 = vmatprep.subr.bf16.mxu0 0
    %5100 = vmatpush1.bf16.xpose.msra.mxu0 0
    %5101 = vmatprep.subr.bf16.mxu0 0
    %5102 = vmatpush1.bf16.xpose.msra.mxu0 0
    %5103 = vmatprep.subr.bf16.mxu0 0
    %5104 = vmatpush1.bf16.xpose.msra.mxu0 0
    %5105 = vmatprep.mubr.bf16.mxu0 0
    %5106 = vmatmul.mubr.bf16.gmra.mrb[0].mxu0 %v1740
    %v5107 = vpop.f32.mrb[0].mxu0
    %v5108 = vadd.f32 %v5011, %v5107
    %v5109 = vpop.f32.mrb[0].mxu0
    %v5110 = vpop.f32.mrb[0].mxu0
    %v5111 = vadd.f32 %v5014, %v5110
    %v5112 = vpop.f32.mrb[0].mxu0
    %5113 = vmatprep.mubr.bf16.mxu0 0
    %5114 = vmatmul.mubr.bf16.gmra.mrb[0].mxu0 %v1744
    %v5115 = vpop.f32.mrb[0].mxu0
    %v5116 = vadd.f32 %v5019, %v5115
    %v5117 = vpop.f32.mrb[0].mxu0
    %v5118 = vpop.f32.mrb[0].mxu0
    %v5119 = vadd.f32 %v5022, %v5118
    %v5120 = vpop.f32.mrb[0].mxu0
    %5121 = vmatprep.mubr.bf16.mxu0 0
    %5122 = vmatmul.mubr.bf16.gmra.mrb[0].mxu0 %v1748
    %v5123 = vpop.f32.mrb[0].mxu0
    %v5124 = vadd.f32 %v5027, %v5123
    %v5125 = vpop.f32.mrb[0].mxu0
    %v5126 = vpop.f32.mrb[0].mxu0
    %v5127 = vadd.f32 %v5030, %v5126
    %v5128 = vpop.f32.mrb[0].mxu0
    %5129 = vmatprep.mubr.bf16.mxu0 0
    %5130 = vmatmul.mubr.bf16.gmra.mrb[0].mxu0 %v1752
    %v5131 = vpop.f32.mrb[0].mxu0
    %v5132 = vadd.f32 %v5035, %v5131
    %v5133 = vpop.f32.mrb[0].mxu0
    %v5134 = vpop.f32.mrb[0].mxu0
    %v5135 = vadd.f32 %v5038, %v5134
    %v5136 = vpop.f32.mrb[0].mxu0
    %5137 = vmatprep.mubr.bf16.mxu0 0
    %5138 = vmatmul.mubr.bf16.gmra.mrb[0].mxu0 %v1756
    %v5139 = vpop.f32.mrb[0].mxu0
    %v5140 = vadd.f32 %v5043, %v5139
    %v5141 = vpop.f32.mrb[0].mxu0
    %v5142 = vpop.f32.mrb[0].mxu0
    %v5143 = vadd.f32 %v5046, %v5142
    %v5144 = vpop.f32.mrb[0].mxu0
    %5145 = vmatprep.mubr.bf16.mxu0 0
    %5146 = vmatmul.mubr.bf16.gmra.mrb[0].mxu0 %v1760
    %v5147 = vpop.f32.mrb[0].mxu0
    %v5148 = vadd.f32 %v5051, %v5147
    %v5149 = vpop.f32.mrb[0].mxu0
    %v5150 = vpop.f32.mrb[0].mxu0
    %v5151 = vadd.f32 %v5054, %v5150
    %v5152 = vpop.f32.mrb[0].mxu0
    %5153 = vmatprep.mubr.bf16.mxu0 0
    %5154 = vmatmul.mubr.bf16.gmra.mrb[0].mxu0 %v1764
    %v5155 = vpop.f32.mrb[0].mxu0
    %v5156 = vadd.f32 %v5059, %v5155
    %v5157 = vpop.f32.mrb[0].mxu0
    %v5158 = vpop.f32.mrb[0].mxu0
    %v5159 = vadd.f32 %v5062, %v5158
    %v5160 = vpop.f32.mrb[0].mxu0
    %5161 = vmatprep.mubr.bf16.mxu0 0
    %5162 = vmatmul.mubr.bf16.gmra.mrb[0].mxu0 %v1768
    %v5163 = vpop.f32.mrb[0].mxu0
    %v5164 = vadd.f32 %v5067, %v5163
    %v5165 = vpop.f32.mrb[0].mxu0
    %v5166 = vpop.f32.mrb[0].mxu0
    %v5167 = vadd.f32 %v5070, %v5166
    %v5168 = vpop.f32.mrb[0].mxu0
    %5169 = vdwg.mxu0
    %5170 = vrot.lane.b32.xlu0 %v2195, 80
    %v5171 = vpop.permute.xlu0 %5170
    %5172 = vrot.lane.b32.xlu0 %v2196, 80
    %v5173 = vpop.permute.xlu0 %5172
    %5174 = vrot.lane.b32.xlu0 %v2197, 80
    %v5175 = vpop.permute.xlu0 %5174
    %5176 = vrot.lane.b32.xlu0 %v2198, 80
    %v5177 = vpop.permute.xlu0 %5176
    %5178 = vrot.lane.b32.xlu0 %v2199, 80
    %v5179 = vpop.permute.xlu0 %5178
    %5180 = vrot.lane.b32.xlu0 %v2200, 80
    %v5181 = vpop.permute.xlu0 %5180
    %5182 = vrot.lane.b32.xlu0 %v2201, 80
    %v5183 = vpop.permute.xlu0 %5182
    %5184 = vrot.lane.b32.xlu0 %v2202, 80
    %v5185 = vpop.permute.xlu0 %5184
    %v5187 = vsel %vm2238, %v5171, 0
    %v5190 = vsel %vm2238, %v5173, 0
    %v5193 = vsel %vm2238, %v5175, 0
    %v5196 = vsel %vm2238, %v5177, 0
    %v5199 = vsel %vm2238, %v5179, 0
    %v5202 = vsel %vm2238, %v5181, 0
    %v5205 = vsel %vm2238, %v5183, 0
    %v5208 = vsel %vm2238, %v5185, 0
    %5210 = vmatprep.subr.bf16.mxu0 0
    %5211 = vmatpush1.bf16.xpose.msra.mxu0 %v2530
    %5212 = vmatprep.subr.bf16.mxu0 0
    %5213 = vmatpush1.bf16.xpose.msra.mxu0 %v2533
    %5214 = vmatprep.subr.bf16.mxu0 0
    %5215 = vmatpush1.bf16.xpose.msra.mxu0 %v2536
    %5216 = vmatprep.subr.bf16.mxu0 0
    %5217 = vmatpush1.bf16.xpose.msra.mxu0 %v2539
    %5218 = vmatprep.subr.bf16.mxu0 0
    %5219 = vmatpush1.bf16.xpose.msra.mxu0 %v2542
    %5220 = vmatprep.subr.bf16.mxu0 0
    %5221 = vmatpush1.bf16.xpose.msra.mxu0 %v2545
    %5222 = vmatprep.subr.bf16.mxu0 0
    %5223 = vmatpush1.bf16.xpose.msra.mxu0 %v2548
    %5224 = vmatprep.subr.bf16.mxu0 0
    %5225 = vmatpush1.bf16.xpose.msra.mxu0 %v2551
    %5226 = vmatprep.subr.bf16.mxu0 0
    %5227 = vmatpush1.bf16.xpose.msra.mxu0 0
    %5228 = vmatprep.subr.bf16.mxu0 0
    %5229 = vmatpush1.bf16.xpose.msra.mxu0 0
    %5230 = vmatprep.subr.bf16.mxu0 0
    %5231 = vmatpush1.bf16.xpose.msra.mxu0 0
    %5232 = vmatprep.subr.bf16.mxu0 0
    %5233 = vmatpush1.bf16.xpose.msra.mxu0 0
    %5234 = vmatprep.subr.bf16.mxu0 0
    %5235 = vmatpush1.bf16.xpose.msra.mxu0 0
    %5236 = vmatprep.subr.bf16.mxu0 0
    %5237 = vmatpush1.bf16.xpose.msra.mxu0 0
    %5238 = vmatprep.subr.bf16.mxu0 0
    %5239 = vmatpush1.bf16.xpose.msra.mxu0 0
    %5240 = vmatprep.subr.bf16.mxu0 0
    %5241 = vmatpush1.bf16.xpose.msra.mxu0 0
    %5242 = vmatprep.mubr.bf16.mxu0 0
    %5243 = vmatmul.mubr.bf16.gmra.mrb[0].mxu0 %v5187
    %v5244 = vpop.f32.mrb[0].mxu0
    %v5245 = vadd.f32 0.0, %v5244
    %v5246 = vpop.f32.mrb[0].mxu0
    %v5247 = vpop.f32.mrb[0].mxu0
    %v5248 = vadd.f32 0.0, %v5247
    %v5249 = vpop.f32.mrb[0].mxu0
    %5250 = vmatprep.mubr.bf16.mxu0 0
    %5251 = vmatmul.mubr.bf16.gmra.mrb[0].mxu0 %v5190
    %v5252 = vpop.f32.mrb[0].mxu0
    %v5253 = vadd.f32 0.0, %v5252
    %v5254 = vpop.f32.mrb[0].mxu0
    %v5255 = vpop.f32.mrb[0].mxu0
    %v5256 = vadd.f32 0.0, %v5255
    %v5257 = vpop.f32.mrb[0].mxu0
    %5258 = vmatprep.mubr.bf16.mxu0 0
    %5259 = vmatmul.mubr.bf16.gmra.mrb[0].mxu0 %v5193
    %v5260 = vpop.f32.mrb[0].mxu0
    %v5261 = vadd.f32 0.0, %v5260
    %v5262 = vpop.f32.mrb[0].mxu0
    %v5263 = vpop.f32.mrb[0].mxu0
    %v5264 = vadd.f32 0.0, %v5263
    %v5265 = vpop.f32.mrb[0].mxu0
    %5266 = vmatprep.mubr.bf16.mxu0 0
    %5267 = vmatmul.mubr.bf16.gmra.mrb[0].mxu0 %v5196
    %v5268 = vpop.f32.mrb[0].mxu0
    %v5269 = vadd.f32 0.0, %v5268
    %v5270 = vpop.f32.mrb[0].mxu0
    %v5271 = vpop.f32.mrb[0].mxu0
    %v5272 = vadd.f32 0.0, %v5271
    %v5273 = vpop.f32.mrb[0].mxu0
    %5274 = vmatprep.mubr.bf16.mxu0 0
    %5275 = vmatmul.mubr.bf16.gmra.mrb[0].mxu0 %v5199
    %v5276 = vpop.f32.mrb[0].mxu0
    %v5277 = vadd.f32 0.0, %v5276
    %v5278 = vpop.f32.mrb[0].mxu0
    %v5279 = vpop.f32.mrb[0].mxu0
    %v5280 = vadd.f32 0.0, %v5279
    %v5281 = vpop.f32.mrb[0].mxu0
    %5282 = vmatprep.mubr.bf16.mxu0 0
    %5283 = vmatmul.mubr.bf16.gmra.mrb[0].mxu0 %v5202
    %v5284 = vpop.f32.mrb[0].mxu0
    %v5285 = vadd.f32 0.0, %v5284
    %v5286 = vpop.f32.mrb[0].mxu0
    %v5287 = vpop.f32.mrb[0].mxu0
    %v5288 = vadd.f32 0.0, %v5287
    %v5289 = vpop.f32.mrb[0].mxu0
    %5290 = vmatprep.mubr.bf16.mxu0 0
    %5291 = vmatmul.mubr.bf16.gmra.mrb[0].mxu0 %v5205
    %v5292 = vpop.f32.mrb[0].mxu0
    %v5293 = vadd.f32 0.0, %v5292
    %v5294 = vpop.f32.mrb[0].mxu0
    %v5295 = vpop.f32.mrb[0].mxu0
    %v5296 = vadd.f32 0.0, %v5295
    %v5297 = vpop.f32.mrb[0].mxu0
    %5298 = vmatprep.mubr.bf16.mxu0 0
    %5299 = vmatmul.mubr.bf16.gmra.mrb[0].mxu0 %v5208
    %v5300 = vpop.f32.mrb[0].mxu0
    %v5301 = vadd.f32 0.0, %v5300
    %v5302 = vpop.f32.mrb[0].mxu0
    %v5303 = vpop.f32.mrb[0].mxu0
    %v5304 = vadd.f32 0.0, %v5303
    %v5305 = vpop.f32.mrb[0].mxu0
    %5306 = vdwg.mxu0
    %v5307 = vadd.f32 %v5108, %v5245
    %v5308 = vadd.f32 %v5111, %v5248
    %v5309 = vadd.f32 %v5116, %v5253
    %v5310 = vadd.f32 %v5119, %v5256
    %v5311 = vadd.f32 %v5124, %v5261
    %v5312 = vadd.f32 %v5127, %v5264
    %v5313 = vadd.f32 %v5132, %v5269
    %v5314 = vadd.f32 %v5135, %v5272
    %v5315 = vadd.f32 %v5140, %v5277
    %v5316 = vadd.f32 %v5143, %v5280
    %v5317 = vadd.f32 %v5148, %v5285
    %v5318 = vadd.f32 %v5151, %v5288
    %v5319 = vadd.f32 %v5156, %v5293
    %v5320 = vadd.f32 %v5159, %v5296
    %v5321 = vadd.f32 %v5164, %v5301
    %v5322 = vadd.f32 %v5167, %v5304
    %v5323 = vsel %vm2222, %v5307, -1e+30
    %v5324 = vsel %vm2223, %v5308, -1e+30
    %v5325 = vsel %vm2224, %v5309, -1e+30
    %v5326 = vsel %vm2225, %v5310, -1e+30
    %v5327 = vsel %vm2226, %v5311, -1e+30
    %v5328 = vsel %vm2227, %v5312, -1e+30
    %v5329 = vsel %vm2228, %v5313, -1e+30
    %v5330 = vsel %vm2229, %v5314, -1e+30
    %v5331 = vsel %vm2230, %v5315, -1e+30
    %v5332 = vsel %vm2231, %v5316, -1e+30
    %v5333 = vsel %vm2232, %v5317, -1e+30
    %v5334 = vsel %vm2233, %v5318, -1e+30
    %v5335 = vsel %vm2234, %v5319, -1e+30
    %v5336 = vsel %vm2235, %v5320, -1e+30
    %v5337 = vsel %vm2236, %v5321, -1e+30
    %v5338 = vsel %vm2237, %v5322, -1e+30
    %5339 = vmax.xlane.f32.xlu0 %v5323
    %v5340 = vpop.xlane.xlu0 %5339
    %5341 = vmax.xlane.f32.xlu0 %v5324
    %v5342 = vpop.xlane.xlu0 %5341
    %5343 = vmax.xlane.f32.xlu0 %v5325
    %v5344 = vpop.xlane.xlu0 %5343
    %5345 = vmax.xlane.f32.xlu0 %v5326
    %v5346 = vpop.xlane.xlu0 %5345
    %5347 = vmax.xlane.f32.xlu0 %v5327
    %v5348 = vpop.xlane.xlu0 %5347
    %5349 = vmax.xlane.f32.xlu0 %v5328
    %v5350 = vpop.xlane.xlu0 %5349
    %5351 = vmax.xlane.f32.xlu0 %v5329
    %v5352 = vpop.xlane.xlu0 %5351
    %5353 = vmax.xlane.f32.xlu0 %v5330
    %v5354 = vpop.xlane.xlu0 %5353
    %5355 = vmax.xlane.f32.xlu0 %v5331
    %v5356 = vpop.xlane.xlu0 %5355
    %5357 = vmax.xlane.f32.xlu0 %v5332
    %v5358 = vpop.xlane.xlu0 %5357
    %5359 = vmax.xlane.f32.xlu0 %v5333
    %v5360 = vpop.xlane.xlu0 %5359
    %5361 = vmax.xlane.f32.xlu0 %v5334
    %v5362 = vpop.xlane.xlu0 %5361
    %5363 = vmax.xlane.f32.xlu0 %v5335
    %v5364 = vpop.xlane.xlu0 %5363
    %5365 = vmax.xlane.f32.xlu0 %v5336
    %v5366 = vpop.xlane.xlu0 %5365
    %5367 = vmax.xlane.f32.xlu0 %v5337
    %v5368 = vpop.xlane.xlu0 %5367
    %5369 = vmax.xlane.f32.xlu0 %v5338
    %v5370 = vpop.xlane.xlu0 %5369
    %v5371 = vsub.f32 %v5323, %v5340
    %v5372 = vsub.f32 %v5324, %v5342
    %v5373 = vsub.f32 %v5325, %v5344
    %v5374 = vsub.f32 %v5326, %v5346
    %v5375 = vsub.f32 %v5327, %v5348
    %v5376 = vsub.f32 %v5328, %v5350
    %v5377 = vsub.f32 %v5329, %v5352
    %v5378 = vsub.f32 %v5330, %v5354
    %v5379 = vsub.f32 %v5331, %v5356
    %v5380 = vsub.f32 %v5332, %v5358
    %v5381 = vsub.f32 %v5333, %v5360
    %v5382 = vsub.f32 %v5334, %v5362
    %v5383 = vsub.f32 %v5335, %v5364
    %v5384 = vsub.f32 %v5336, %v5366
    %v5385 = vsub.f32 %v5337, %v5368
    %v5386 = vsub.f32 %v5338, %v5370
    %v5387 = vmul.f32 %v5371, 1.442695
    %v5388 = vpow.pop %v5387
    %v5389 = vmul.f32 %v5372, 1.442695
    %v5390 = vpow.pop %v5389
    %v5391 = vmul.f32 %v5373, 1.442695
    %v5392 = vpow.pop %v5391
    %v5393 = vmul.f32 %v5374, 1.442695
    %v5394 = vpow.pop %v5393
    %v5395 = vmul.f32 %v5375, 1.442695
    %v5396 = vpow.pop %v5395
    %v5397 = vmul.f32 %v5376, 1.442695
    %v5398 = vpow.pop %v5397
    %v5399 = vmul.f32 %v5377, 1.442695
    %v5400 = vpow.pop %v5399
    %v5401 = vmul.f32 %v5378, 1.442695
    %v5402 = vpow.pop %v5401
    %v5403 = vmul.f32 %v5379, 1.442695
    %v5404 = vpow.pop %v5403
    %v5405 = vmul.f32 %v5380, 1.442695
    %v5406 = vpow.pop %v5405
    %v5407 = vmul.f32 %v5381, 1.442695
    %v5408 = vpow.pop %v5407
    %v5409 = vmul.f32 %v5382, 1.442695
    %v5410 = vpow.pop %v5409
    %v5411 = vmul.f32 %v5383, 1.442695
    %v5412 = vpow.pop %v5411
    %v5413 = vmul.f32 %v5384, 1.442695
    %v5414 = vpow.pop %v5413
    %v5415 = vmul.f32 %v5385, 1.442695
    %v5416 = vpow.pop %v5415
    %v5417 = vmul.f32 %v5386, 1.442695
    %v5418 = vpow.pop %v5417
    %5419 = vadd.xlane.f32.xlu0 %v5388
    %v5420 = vpop.xlane.xlu0 %5419
    %5421 = vadd.xlane.f32.xlu0 %v5390
    %v5422 = vpop.xlane.xlu0 %5421
    %5423 = vadd.xlane.f32.xlu0 %v5392
    %v5424 = vpop.xlane.xlu0 %5423
    %5425 = vadd.xlane.f32.xlu0 %v5394
    %v5426 = vpop.xlane.xlu0 %5425
    %5427 = vadd.xlane.f32.xlu0 %v5396
    %v5428 = vpop.xlane.xlu0 %5427
    %5429 = vadd.xlane.f32.xlu0 %v5398
    %v5430 = vpop.xlane.xlu0 %5429
    %5431 = vadd.xlane.f32.xlu0 %v5400
    %v5432 = vpop.xlane.xlu0 %5431
    %5433 = vadd.xlane.f32.xlu0 %v5402
    %v5434 = vpop.xlane.xlu0 %5433
    %5435 = vadd.xlane.f32.xlu0 %v5404
    %v5436 = vpop.xlane.xlu0 %5435
    %5437 = vadd.xlane.f32.xlu0 %v5406
    %v5438 = vpop.xlane.xlu0 %5437
    %5439 = vadd.xlane.f32.xlu0 %v5408
    %v5440 = vpop.xlane.xlu0 %5439
    %5441 = vadd.xlane.f32.xlu0 %v5410
    %v5442 = vpop.xlane.xlu0 %5441
    %5443 = vadd.xlane.f32.xlu0 %v5412
    %v5444 = vpop.xlane.xlu0 %5443
    %5445 = vadd.xlane.f32.xlu0 %v5414
    %v5446 = vpop.xlane.xlu0 %5445
    %5447 = vadd.xlane.f32.xlu0 %v5416
    %v5448 = vpop.xlane.xlu0 %5447
    %5449 = vadd.xlane.f32.xlu0 %v5418
    %v5450 = vpop.xlane.xlu0 %5449
    %v5451 = vrcp.pop %v5420
    %v5452 = vmul.f32 %v5388, %v5451
    %v5453 = vrcp.pop %v5422
    %v5454 = vmul.f32 %v5390, %v5453
    %v5455 = vrcp.pop %v5424
    %v5456 = vmul.f32 %v5392, %v5455
    %v5457 = vrcp.pop %v5426
    %v5458 = vmul.f32 %v5394, %v5457
    %v5459 = vrcp.pop %v5428
    %v5460 = vmul.f32 %v5396, %v5459
    %v5461 = vrcp.pop %v5430
    %v5462 = vmul.f32 %v5398, %v5461
    %v5463 = vrcp.pop %v5432
    %v5464 = vmul.f32 %v5400, %v5463
    %v5465 = vrcp.pop %v5434
    %v5466 = vmul.f32 %v5402, %v5465
    %v5467 = vrcp.pop %v5436
    %v5468 = vmul.f32 %v5404, %v5467
    %v5469 = vrcp.pop %v5438
    %v5470 = vmul.f32 %v5406, %v5469
    %v5471 = vrcp.pop %v5440
    %v5472 = vmul.f32 %v5408, %v5471
    %v5473 = vrcp.pop %v5442
    %v5474 = vmul.f32 %v5410, %v5473
    %v5475 = vrcp.pop %v5444
    %v5476 = vmul.f32 %v5412, %v5475
    %v5477 = vrcp.pop %v5446
    %v5478 = vmul.f32 %v5414, %v5477
    %v5479 = vrcp.pop %v5448
    %v5480 = vmul.f32 %v5416, %v5479
    %v5481 = vrcp.pop %v5450
    %v5482 = vmul.f32 %v5418, %v5481
    %v5483 = vpack.c.bf16 %v5454, %v5452
    %v5484 = vpack.c.bf16 %v5458, %v5456
    %v5485 = vpack.c.bf16 %v5462, %v5460
    %v5486 = vpack.c.bf16 %v5466, %v5464
    %v5487 = vpack.c.bf16 %v5470, %v5468
    %v5488 = vpack.c.bf16 %v5474, %v5472
    %v5489 = vpack.c.bf16 %v5478, %v5476
    %v5490 = vpack.c.bf16 %v5482, %v5480
    %5491 = vmatprep.subr.bf16.mxu0 0
    %5492 = vmatpush1.bf16.msra.mxu0 %v543
    %5493 = vmatprep.subr.bf16.mxu0 0
    %5494 = vmatpush1.bf16.msra.mxu0 %v544
    %5495 = vmatprep.subr.bf16.mxu0 0
    %5496 = vmatpush1.bf16.msra.mxu0 %v545
    %5497 = vmatprep.subr.bf16.mxu0 0
    %5498 = vmatpush1.bf16.msra.mxu0 %v546
    %5499 = vmatprep.subr.bf16.mxu0 0
    %5500 = vmatpush1.bf16.msra.mxu0 %v547
    %5501 = vmatprep.subr.bf16.mxu0 0
    %5502 = vmatpush1.bf16.msra.mxu0 %v548
    %5503 = vmatprep.subr.bf16.mxu0 0
    %5504 = vmatpush1.bf16.msra.mxu0 %v549
    %5505 = vmatprep.subr.bf16.mxu0 0
    %5506 = vmatpush1.bf16.msra.mxu0 %v550
    %5507 = vmatprep.subr.bf16.mxu0 0
    %5508 = vmatpush1.bf16.msra.mxu0 0
    %5509 = vmatprep.subr.bf16.mxu0 0
    %5510 = vmatpush1.bf16.msra.mxu0 0
    %5511 = vmatprep.subr.bf16.mxu0 0
    %5512 = vmatpush1.bf16.msra.mxu0 0
    %5513 = vmatprep.subr.bf16.mxu0 0
    %5514 = vmatpush1.bf16.msra.mxu0 0
    %5515 = vmatprep.subr.bf16.mxu0 0
    %5516 = vmatpush1.bf16.msra.mxu0 0
    %5517 = vmatprep.subr.bf16.mxu0 0
    %5518 = vmatpush1.bf16.msra.mxu0 0
    %5519 = vmatprep.subr.bf16.mxu0 0
    %5520 = vmatpush1.bf16.msra.mxu0 0
    %5521 = vmatprep.subr.bf16.mxu0 0
    %5522 = vmatpush1.bf16.msra.mxu0 0
    %5523 = vmatprep.mubr.bf16.mxu0 0
    %5524 = vmatmul.mubr.bf16.gmra.mrb[0].mxu0 %v5483
    %v5525 = vpop.f32.mrb[0].mxu0
    %v5526 = vadd.f32 0.0, %v5525
    %v5527 = vpop.f32.mrb[0].mxu0
    %v5528 = vpop.f32.mrb[0].mxu0
    %v5529 = vadd.f32 0.0, %v5528
    %v5530 = vpop.f32.mrb[0].mxu0
    %5531 = vmatprep.mubr.bf16.mxu0 0
    %5532 = vmatmul.mubr.bf16.gmra.mrb[0].mxu0 %v5484
    %v5533 = vpop.f32.mrb[0].mxu0
    %v5534 = vadd.f32 0.0, %v5533
    %v5535 = vpop.f32.mrb[0].mxu0
    %v5536 = vpop.f32.mrb[0].mxu0
    %v5537 = vadd.f32 0.0, %v5536
    %v5538 = vpop.f32.mrb[0].mxu0
    %5539 = vmatprep.mubr.bf16.mxu0 0
    %5540 = vmatmul.mubr.bf16.gmra.mrb[0].mxu0 %v5485
    %v5541 = vpop.f32.mrb[0].mxu0
    %v5542 = vadd.f32 0.0, %v5541
    %v5543 = vpop.f32.mrb[0].mxu0
    %v5544 = vpop.f32.mrb[0].mxu0
    %v5545 = vadd.f32 0.0, %v5544
    %v5546 = vpop.f32.mrb[0].mxu0
    %5547 = vmatprep.mubr.bf16.mxu0 0
    %5548 = vmatmul.mubr.bf16.gmra.mrb[0].mxu0 %v5486
    %v5549 = vpop.f32.mrb[0].mxu0
    %v5550 = vadd.f32 0.0, %v5549
    %v5551 = vpop.f32.mrb[0].mxu0
    %v5552 = vpop.f32.mrb[0].mxu0
    %v5553 = vadd.f32 0.0, %v5552
    %v5554 = vpop.f32.mrb[0].mxu0
    %5555 = vmatprep.mubr.bf16.mxu0 0
    %5556 = vmatmul.mubr.bf16.gmra.mrb[0].mxu0 %v5487
    %v5557 = vpop.f32.mrb[0].mxu0
    %v5558 = vadd.f32 0.0, %v5557
    %v5559 = vpop.f32.mrb[0].mxu0
    %v5560 = vpop.f32.mrb[0].mxu0
    %v5561 = vadd.f32 0.0, %v5560
    %v5562 = vpop.f32.mrb[0].mxu0
    %5563 = vmatprep.mubr.bf16.mxu0 0
    %5564 = vmatmul.mubr.bf16.gmra.mrb[0].mxu0 %v5488
    %v5565 = vpop.f32.mrb[0].mxu0
    %v5566 = vadd.f32 0.0, %v5565
    %v5567 = vpop.f32.mrb[0].mxu0
    %v5568 = vpop.f32.mrb[0].mxu0
    %v5569 = vadd.f32 0.0, %v5568
    %v5570 = vpop.f32.mrb[0].mxu0
    %5571 = vmatprep.mubr.bf16.mxu0 0
    %5572 = vmatmul.mubr.bf16.gmra.mrb[0].mxu0 %v5489
    %v5573 = vpop.f32.mrb[0].mxu0
    %v5574 = vadd.f32 0.0, %v5573
    %v5575 = vpop.f32.mrb[0].mxu0
    %v5576 = vpop.f32.mrb[0].mxu0
    %v5577 = vadd.f32 0.0, %v5576
    %v5578 = vpop.f32.mrb[0].mxu0
    %5579 = vmatprep.mubr.bf16.mxu0 0
    %5580 = vmatmul.mubr.bf16.gmra.mrb[0].mxu0 %v5490
    %v5581 = vpop.f32.mrb[0].mxu0
    %v5582 = vadd.f32 0.0, %v5581
    %v5583 = vpop.f32.mrb[0].mxu0
    %v5584 = vpop.f32.mrb[0].mxu0
    %v5585 = vadd.f32 0.0, %v5584
    %v5586 = vpop.f32.mrb[0].mxu0
    %5587 = vdwg.mxu0
    %v5588 = vpack.c.bf16 %v5529, %v5526
    %v5589 = vpack.c.bf16 %v5537, %v5534
    %v5590 = vpack.c.bf16 %v5545, %v5542
    %v5591 = vpack.c.bf16 %v5553, %v5550
    %v5592 = vpack.c.bf16 %v5561, %v5558
    %v5593 = vpack.c.bf16 %v5569, %v5566
    %v5594 = vpack.c.bf16 %v5577, %v5574
    %v5595 = vpack.c.bf16 %v5585, %v5582
    %s5596 = scalar_lea.vmem %s8, 384
    %v5597 = vld [vmem:[%s5596] sm:$0xff]
    %v5598 = vld [vmem:[%s5596 + $0x8] sm:$0xff]
    %v5599 = vld [vmem:[%s5596 + $0x10] sm:$0xff]
    %v5600 = vld [vmem:[%s5596 + $0x18] sm:$0xff]
    %v5601 = vld [vmem:[%s5596 + $0x20] sm:$0xff]
    %v5602 = vld [vmem:[%s5596 + $0x28] sm:$0xff]
    %v5603 = vld [vmem:[%s5596 + $0x30] sm:$0xff]
    %v5604 = vld [vmem:[%s5596 + $0x38] sm:$0xff]
    %v5605 = vld [vmem:[%s5596 + $0x40] sm:$0xff]
    %v5606 = vld [vmem:[%s5596 + $0x48] sm:$0xff]
    %v5607 = vld [vmem:[%s5596 + $0x50] sm:$0xff]
    %v5608 = vld [vmem:[%s5596 + $0x58] sm:$0xff]
    %v5609 = vld [vmem:[%s5596 + $0x60] sm:$0xff]
    %v5610 = vld [vmem:[%s5596 + $0x68] sm:$0xff]
    %v5611 = vld [vmem:[%s5596 + $0x70] sm:$0xff]
    %v5612 = vld [vmem:[%s5596 + $0x78] sm:$0xff]
    %v5629 = vunpack.c.l.b16 %v5597
    %v5630 = vunpack.c.h.b16 %v5597
    %v5631 = vunpack.c.l.b16 %v5598
    %v5632 = vunpack.c.h.b16 %v5598
    %v5633 = vunpack.c.l.b16 %v5599
    %v5634 = vunpack.c.h.b16 %v5599
    %v5635 = vunpack.c.l.b16 %v5600
    %v5636 = vunpack.c.h.b16 %v5600
    %v5637 = vunpack.c.l.b16 %v5601
    %v5638 = vunpack.c.h.b16 %v5601
    %v5639 = vunpack.c.l.b16 %v5602
    %v5640 = vunpack.c.h.b16 %v5602
    %v5641 = vunpack.c.l.b16 %v5603
    %v5642 = vunpack.c.h.b16 %v5603
    %v5643 = vunpack.c.l.b16 %v5604
    %v5644 = vunpack.c.h.b16 %v5604
    %v5645 = vunpack.c.l.b16 %v5605
    %v5646 = vunpack.c.h.b16 %v5605
    %v5647 = vunpack.c.l.b16 %v5606
    %v5648 = vunpack.c.h.b16 %v5606
    %v5649 = vunpack.c.l.b16 %v5607
    %v5650 = vunpack.c.h.b16 %v5607
    %v5651 = vunpack.c.l.b16 %v5608
    %v5652 = vunpack.c.h.b16 %v5608
    %v5653 = vunpack.c.l.b16 %v5609
    %v5654 = vunpack.c.h.b16 %v5609
    %v5655 = vunpack.c.l.b16 %v5610
    %v5656 = vunpack.c.h.b16 %v5610
    %v5657 = vunpack.c.l.b16 %v5611
    %v5658 = vunpack.c.h.b16 %v5611
    %v5659 = vunpack.c.l.b16 %v5612
    %v5660 = vunpack.c.h.b16 %v5612
    %v5661 = vpack.c.b16 %v5631, %v5629
    %v5662 = vpack.c.b16 %v5632, %v5630
    %v5663 = vpack.c.b16 %v5635, %v5633
    %v5664 = vpack.c.b16 %v5636, %v5634
    %v5665 = vpack.c.b16 %v5639, %v5637
    %v5666 = vpack.c.b16 %v5640, %v5638
    %v5667 = vpack.c.b16 %v5643, %v5641
    %v5668 = vpack.c.b16 %v5644, %v5642
    %v5669 = vpack.c.b16 %v5647, %v5645
    %v5670 = vpack.c.b16 %v5648, %v5646
    %v5671 = vpack.c.b16 %v5651, %v5649
    %v5672 = vpack.c.b16 %v5652, %v5650
    %v5673 = vpack.c.b16 %v5655, %v5653
    %v5674 = vpack.c.b16 %v5656, %v5654
    %v5675 = vpack.c.b16 %v5659, %v5657
    %v5676 = vpack.c.b16 %v5660, %v5658
    %5693 = vmatprep.subr.bf16.mxu0 %v5662
    %5694 = vmatpush1.bf16.msra.mxu0 %v5661
    %5695 = vmatprep.subr.bf16.mxu0 %v5664
    %5696 = vmatpush1.bf16.msra.mxu0 %v5663
    %5697 = vmatprep.subr.bf16.mxu0 %v5666
    %5698 = vmatpush1.bf16.msra.mxu0 %v5665
    %5699 = vmatprep.subr.bf16.mxu0 %v5668
    %5700 = vmatpush1.bf16.msra.mxu0 %v5667
    %5701 = vmatprep.subr.bf16.mxu0 %v5670
    %5702 = vmatpush1.bf16.msra.mxu0 %v5669
    %5703 = vmatprep.subr.bf16.mxu0 %v5672
    %5704 = vmatpush1.bf16.msra.mxu0 %v5671
    %5705 = vmatprep.subr.bf16.mxu0 %v5674
    %5706 = vmatpush1.bf16.msra.mxu0 %v5673
    %5707 = vmatprep.subr.bf16.mxu0 %v5676
    %5708 = vmatpush1.bf16.msra.mxu0 %v5675
    %5709 = vmatprep.subr.bf16.mxu0 0
    %5710 = vmatpush1.bf16.msra.mxu0 0
    %5711 = vmatprep.subr.bf16.mxu0 0
    %5712 = vmatpush1.bf16.msra.mxu0 0
    %5713 = vmatprep.subr.bf16.mxu0 0
    %5714 = vmatpush1.bf16.msra.mxu0 0
    %5715 = vmatprep.subr.bf16.mxu0 0
    %5716 = vmatpush1.bf16.msra.mxu0 0
    %5717 = vmatprep.subr.bf16.mxu0 0
    %5718 = vmatpush1.bf16.msra.mxu0 0
    %5719 = vmatprep.subr.bf16.mxu0 0
    %5720 = vmatpush1.bf16.msra.mxu0 0
    %5721 = vmatprep.subr.bf16.mxu0 0
    %5722 = vmatpush1.bf16.msra.mxu0 0
    %5723 = vmatprep.subr.bf16.mxu0 0
    %5724 = vmatpush1.bf16.msra.mxu0 0
    %5725 = vmatprep.mubr.bf16.mxu0 0
    %5726 = vmatmul.mubr.bf16.gmra.mrb[0].mxu0 %v5588
    %v5727 = vpop.f32.mrb[0].mxu0
    %v5728 = vadd.f32 0.0, %v5727
    %v5729 = vpop.f32.mrb[0].mxu0
    %v5730 = vadd.f32 0.0, %v5729
    %v5731 = vpop.f32.mrb[0].mxu0
    %v5732 = vadd.f32 0.0, %v5731
    %v5733 = vpop.f32.mrb[0].mxu0
    %v5734 = vadd.f32 0.0, %v5733
    %5735 = vmatprep.mubr.bf16.mxu0 0
    %5736 = vmatmul.mubr.bf16.gmra.mrb[0].mxu0 %v5589
    %v5737 = vpop.f32.mrb[0].mxu0
    %v5738 = vadd.f32 0.0, %v5737
    %v5739 = vpop.f32.mrb[0].mxu0
    %v5740 = vadd.f32 0.0, %v5739
    %v5741 = vpop.f32.mrb[0].mxu0
    %v5742 = vadd.f32 0.0, %v5741
    %v5743 = vpop.f32.mrb[0].mxu0
    %v5744 = vadd.f32 0.0, %v5743
    %5745 = vmatprep.mubr.bf16.mxu0 0
    %5746 = vmatmul.mubr.bf16.gmra.mrb[0].mxu0 %v5590
    %v5747 = vpop.f32.mrb[0].mxu0
    %v5748 = vadd.f32 0.0, %v5747
    %v5749 = vpop.f32.mrb[0].mxu0
    %v5750 = vadd.f32 0.0, %v5749
    %v5751 = vpop.f32.mrb[0].mxu0
    %v5752 = vadd.f32 0.0, %v5751
    %v5753 = vpop.f32.mrb[0].mxu0
    %v5754 = vadd.f32 0.0, %v5753
    %5755 = vmatprep.mubr.bf16.mxu0 0
    %5756 = vmatmul.mubr.bf16.gmra.mrb[0].mxu0 %v5591
    %v5757 = vpop.f32.mrb[0].mxu0
    %v5758 = vadd.f32 0.0, %v5757
    %v5759 = vpop.f32.mrb[0].mxu0
    %v5760 = vadd.f32 0.0, %v5759
    %v5761 = vpop.f32.mrb[0].mxu0
    %v5762 = vadd.f32 0.0, %v5761
    %v5763 = vpop.f32.mrb[0].mxu0
    %v5764 = vadd.f32 0.0, %v5763
    %5765 = vmatprep.mubr.bf16.mxu0 0
    %5766 = vmatmul.mubr.bf16.gmra.mrb[0].mxu0 %v5592
    %v5767 = vpop.f32.mrb[0].mxu0
    %v5768 = vadd.f32 0.0, %v5767
    %v5769 = vpop.f32.mrb[0].mxu0
    %v5770 = vadd.f32 0.0, %v5769
    %v5771 = vpop.f32.mrb[0].mxu0
    %v5772 = vadd.f32 0.0, %v5771
    %v5773 = vpop.f32.mrb[0].mxu0
    %v5774 = vadd.f32 0.0, %v5773
    %5775 = vmatprep.mubr.bf16.mxu0 0
    %5776 = vmatmul.mubr.bf16.gmra.mrb[0].mxu0 %v5593
    %v5777 = vpop.f32.mrb[0].mxu0
    %v5778 = vadd.f32 0.0, %v5777
    %v5779 = vpop.f32.mrb[0].mxu0
    %v5780 = vadd.f32 0.0, %v5779
    %v5781 = vpop.f32.mrb[0].mxu0
    %v5782 = vadd.f32 0.0, %v5781
    %v5783 = vpop.f32.mrb[0].mxu0
    %v5784 = vadd.f32 0.0, %v5783
    %5785 = vmatprep.mubr.bf16.mxu0 0
    %5786 = vmatmul.mubr.bf16.gmra.mrb[0].mxu0 %v5594
    %v5787 = vpop.f32.mrb[0].mxu0
    %v5788 = vadd.f32 0.0, %v5787
    %v5789 = vpop.f32.mrb[0].mxu0
    %v5790 = vadd.f32 0.0, %v5789
    %v5791 = vpop.f32.mrb[0].mxu0
    %v5792 = vadd.f32 0.0, %v5791
    %v5793 = vpop.f32.mrb[0].mxu0
    %v5794 = vadd.f32 0.0, %v5793
    %5795 = vmatprep.mubr.bf16.mxu0 0
    %5796 = vmatmul.mubr.bf16.gmra.mrb[0].mxu0 %v5595
    %v5797 = vpop.f32.mrb[0].mxu0
    %v5798 = vadd.f32 0.0, %v5797
    %v5799 = vpop.f32.mrb[0].mxu0
    %v5800 = vadd.f32 0.0, %v5799
    %v5801 = vpop.f32.mrb[0].mxu0
    %v5802 = vadd.f32 0.0, %v5801
    %v5803 = vpop.f32.mrb[0].mxu0
    %v5804 = vadd.f32 0.0, %v5803
    %5805 = vdwg.mxu0
    %v5806 = vadd.f32 %v4904, %v5728
    %v5807 = vadd.f32 %v4905, %v5730
    %v5808 = vadd.f32 %v4906, %v5732
    %v5809 = vadd.f32 %v4907, %v5734
    %v5810 = vadd.f32 %v4908, %v5738
    %v5811 = vadd.f32 %v4909, %v5740
    %v5812 = vadd.f32 %v4910, %v5742
    %v5813 = vadd.f32 %v4911, %v5744
    %v5814 = vadd.f32 %v4912, %v5748
    %v5815 = vadd.f32 %v4913, %v5750
    %v5816 = vadd.f32 %v4914, %v5752
    %v5817 = vadd.f32 %v4915, %v5754
    %v5818 = vadd.f32 %v4916, %v5758
    %v5819 = vadd.f32 %v4917, %v5760
    %v5820 = vadd.f32 %v4918, %v5762
    %v5821 = vadd.f32 %v4919, %v5764
    %v5822 = vadd.f32 %v4920, %v5768
    %v5823 = vadd.f32 %v4921, %v5770
    %v5824 = vadd.f32 %v4922, %v5772
    %v5825 = vadd.f32 %v4923, %v5774
    %v5826 = vadd.f32 %v4924, %v5778
    %v5827 = vadd.f32 %v4925, %v5780
    %v5828 = vadd.f32 %v4926, %v5782
    %v5829 = vadd.f32 %v4927, %v5784
    %v5830 = vadd.f32 %v4928, %v5788
    %v5831 = vadd.f32 %v4929, %v5790
    %v5832 = vadd.f32 %v4930, %v5792
    %v5833 = vadd.f32 %v4931, %v5794
    %v5834 = vadd.f32 %v4932, %v5798
    %v5835 = vadd.f32 %v4933, %v5800
    %v5836 = vadd.f32 %v4934, %v5802
    %v5837 = vadd.f32 %v4935, %v5804
    %5838 = vst [vmem:[#allocation5] sm:$0xff] %v5806
    %5839 = vst [vmem:[#allocation5 + $0x8] sm:$0xff] %v5807
    %5840 = vst [vmem:[#allocation5 + $0x10] sm:$0xff] %v5808
    %5841 = vst [vmem:[#allocation5 + $0x18] sm:$0xff] %v5809
    %5842 = vst [vmem:[#allocation5 + $0x20] sm:$0xff] %v5810
    %5843 = vst [vmem:[#allocation5 + $0x28] sm:$0xff] %v5811
    %5844 = vst [vmem:[#allocation5 + $0x30] sm:$0xff] %v5812
    %5845 = vst [vmem:[#allocation5 + $0x38] sm:$0xff] %v5813
    %5846 = vst [vmem:[#allocation5 + $0x40] sm:$0xff] %v5814
    %5847 = vst [vmem:[#allocation5 + $0x48] sm:$0xff] %v5815
    %5848 = vst [vmem:[#allocation5 + $0x50] sm:$0xff] %v5816
    %5849 = vst [vmem:[#allocation5 + $0x58] sm:$0xff] %v5817
    %5850 = vst [vmem:[#allocation5 + $0x60] sm:$0xff] %v5818
    %5851 = vst [vmem:[#allocation5 + $0x68] sm:$0xff] %v5819
    %5852 = vst [vmem:[#allocation5 + $0x70] sm:$0xff] %v5820
    %5853 = vst [vmem:[#allocation5 + $0x78] sm:$0xff] %v5821
    %5854 = vst [vmem:[#allocation5 + $0x80] sm:$0xff] %v5822
    %5855 = vst [vmem:[#allocation5 + $0x88] sm:$0xff] %v5823
    %5856 = vst [vmem:[#allocation5 + $0x90] sm:$0xff] %v5824
    %5857 = vst [vmem:[#allocation5 + $0x98] sm:$0xff] %v5825
    %5858 = vst [vmem:[#allocation5 + $0xa0] sm:$0xff] %v5826
    %5859 = vst [vmem:[#allocation5 + $0xa8] sm:$0xff] %v5827
    %5860 = vst [vmem:[#allocation5 + $0xb0] sm:$0xff] %v5828
    %5861 = vst [vmem:[#allocation5 + $0xb8] sm:$0xff] %v5829
    %5862 = vst [vmem:[#allocation5 + $0xc0] sm:$0xff] %v5830
    %5863 = vst [vmem:[#allocation5 + $0xc8] sm:$0xff] %v5831
    %5864 = vst [vmem:[#allocation5 + $0xd0] sm:$0xff] %v5832
    %5865 = vst [vmem:[#allocation5 + $0xd8] sm:$0xff] %v5833
    %5866 = vst [vmem:[#allocation5 + $0xe0] sm:$0xff] %v5834
    %5867 = vst [vmem:[#allocation5 + $0xe8] sm:$0xff] %v5835
    %5868 = vst [vmem:[#allocation5 + $0xf0] sm:$0xff] %v5836
    %5869 = vst [vmem:[#allocation5 + $0xf8] sm:$0xff] %v5837
    // Predicated region
    $region50: #{mla_forward.1} parent=1 // pred_check
      _
    $region51: #{mla_forward.1} parent=1 // pred_check_branch
      %5871 = sbr.rel (0) target = $region53
    $region52: #{mla_forward.1} parent=1 // pred_region
      %s5873 = ssub.s32 4096, 4096
      %5874 = vsyncadd [#allocation4], %s5873
      %s5875 = sshll.u32 [#allocation5], 4
      %s5876 = int_to_ptr.vmem [resolvable:$true] %s5875
      %5881 = dma.vmem_to_hbm [thread:$0]  %s5876, 4096, %s11, [#allocation4], 256, 256, 16
    $region53: #{mla_forward.1} parent=1 // pred_fallthru
      _
    // Predicated region
    $region54: #{mla_forward.1} parent=1 // pred_check
      _
    $region55: #{mla_forward.1} parent=1 // pred_check_branch
      %5883 = sbr.rel (0) target = $region57
    $region56: #{mla_forward.1} parent=1 // pred_region
      %5884 = dma.done [#allocation4], 4096
    $region57: #{mla_forward.1} parent=1 // pred_fallthru
      _
    %5885 = vsyncpa [#allocation3], 1
    %5886 = vsyncpa [#allocation4], 1

</llo_original>
